<compile_context>
chip_gen: v5e
topology: v5e:2x2
jax: 0.10.0
libtpu: 0.0.40
codegen_flags: <defaults>
</compile_context>

<pallas_src>
import jax
import jax.numpy as jnp
from jax import lax
from jax.experimental import pallas as pl
from jax.experimental.pallas import tpu as pltpu


# ----------------------------------------------------------------------------
# Helper reproduced from the PyTorch source (for the fc1 input dimension).
# ----------------------------------------------------------------------------
def get_output_conv_dims(frame_size, kernel_sizes, strides, padding):
    conv_out_w = frame_size[0]
    conv_out_h = frame_size[1]
    for kernel_size, stride, pad in zip(kernel_sizes, strides, padding):
        conv_out_w = int((conv_out_w - (kernel_size - 1) - 1) / stride + 1)
        conv_out_h = int((conv_out_h - (kernel_size - 1) - 1) / stride + 1)
        if pad:
            conv_out_w += 2
            conv_out_h += 2
    return (conv_out_w, conv_out_h)


# ----------------------------------------------------------------------------
# Fused kernel: conv (one MXU matmul) + bias + ReLU + 2x2 maxpool + fc1 + ReLU
# + fc2 + log_softmax, one batch block per grid step.
# ----------------------------------------------------------------------------
def model_one_kernel(xcol_ref, wc_ref, bc_ref, w1_ref, b1_ref, w2_ref, b2_ref,
                     o_ref, pool_ref):
    # xcol_ref: (bblk, 16, 16, 25*Cin)  im2col'd frame, taps ordered (kh,kw,ci).
    #           The conv output is computed on an aligned 16x16 grid; rows/cols
    #           14-15 are padding garbage; the pooled index 7 they produce is
    #           never read by fc1.
    # wc_ref:   (25*Cin, 20)   conv weight in the same K order
    # bc_ref:   (1, 20)
    # w1_ref:   (49, 20, 100)  fc1 weight, one (20 -> 100) tile per pooled (h,w)
    # b1_ref:   (1, 100)
    # w2_ref:   (100, 10)
    # b2_ref:   (1, 10)
    # o_ref:    (bblk, 10)     log-probabilities
    # pool_ref: (bblk, 8, 8, 20) VMEM scratch holding the pooled conv features
    bblk = xcol_ref.shape[0]
    kdim = xcol_ref.shape[-1]
    m = bblk * 256

    # Conv as ONE MXU matmul over K = 25*Cin, then bias + ReLU.
    lhs = xcol_ref[...].reshape(m, kdim)                       # fold, lanes unchanged
    acc = jnp.dot(lhs, wc_ref[...], preferred_element_type=jnp.float32)
    acc = jnp.maximum(acc + bc_ref[...], 0.0)                  # (m, 20)

    # MaxPool 2x2 stride 2.  acc row index r = b*256 + h16*16 + w16.
    wmax = jnp.max(acc.reshape(m // 2, 2, 20), axis=1)         # pair w16 -> (b*128+h16*8+w2, 20)
    hmax = jnp.max(wmax.reshape(bblk * 8, 2, 8, 20), axis=1)   # pair h16 -> (b*8+h, 8, 20)
    pool_ref[...] = hmax.reshape(bblk, 8, 8, 20)

    # fc1 + ReLU: 49 accumulated (bblk,20)@(20,100) dots, one per valid pooled
    # position (h, w) in [0,7).  Sidesteps any lane-dim reshape of the pooled
    # activations; MXU cost is negligible vs. the conv matmul above.
    h1 = jnp.zeros((bblk, 100), jnp.float32)
    for p in range(49):
        hh, ww = divmod(p, 7)
        h1 = h1 + jnp.dot(pool_ref[:, hh, ww, :], w1_ref[p],
                          preferred_element_type=jnp.float32)
    h1 = jnp.maximum(h1 + b1_ref[...], 0.0)

    # fc2 + log_softmax(dim=1).
    logits = jnp.dot(h1, w2_ref[...],
                     preferred_element_type=jnp.float32) + b2_ref[...]
    z = logits - jnp.max(logits, axis=-1, keepdims=True)
    lse = jnp.log(jnp.sum(jnp.exp(z), axis=-1, keepdims=True))
    o_ref[...] = (z - lse).astype(o_ref.dtype)


# ----------------------------------------------------------------------------
# VMEM-derived batch-block size.
# ----------------------------------------------------------------------------
def _pick_batch_block(batch, cin):
    """Pick the batch block from a VMEM budget (f32, 128-lane padded):
         input block (double-buffered): 2 * 256 * roundup(25*cin,128) * 4
         pooled scratch:                64 * 128 * 4
         conv/pool intermediates:       ~ (256 + 8*128) * 128 * 4
       plus ~1.5 MiB of resident (double-buffered) weights.  A 10 MiB budget
       stays inside v5e's 16 MiB default scoped-VMEM limit (v6e/v7x: 32 MiB)
       without raising vmem_limit_bytes."""
    lane = lambda n: ((n + 127) // 128) * 128
    per_sample = (2 * 256 * lane(25 * cin) + 64 * 128 + (256 + 8 * 128) * 128) * 4
    fixed = int(1.5 * 1024 * 1024)
    budget = 10 * 1024 * 1024
    cap = max(1, (budget - fixed) // per_sample)
    if batch <= 8:
        bblk = batch                      # single block; out block == full array
    else:
        cap8 = max(8, (cap // 8) * 8)     # multiple of 8 -> valid (bblk, 10) out tile
        bblk = min(cap8, max(8, (batch // 16) * 8))   # keep >= 2 steps for megacore
    nblk = -(-batch // bblk)
    return bblk, nblk, nblk * bblk


# ----------------------------------------------------------------------------
# One-time parameter re-layout (hoisted out of the per-call path).
# ----------------------------------------------------------------------------
def prepare_params(params):
    """Re-layout PyTorch-style parameters into kernel layouts.  Call ONCE and
    pass the result to model_one_forward; none of this work repeats per call."""
    cout, cin, kh, kw = params["wc"].shape
    assert (cout, kh, kw) == (20, 5, 5)
    assert params["w1"].shape == (100, 980)
    # Conv weight -> (25*cin, 20) with K ordered (kh, kw, ci), matching im2col.
    wc = jnp.transpose(params["wc"], (2, 3, 1, 0)).reshape(25 * cin, 20)
    bc = params["bc"].reshape(1, 20)
    # fc1 weight: PyTorch flattens the pooled NCHW map in (c, h, w) order;
    # regroup into one (20, 100) tile per spatial position p = h*7 + w.
    w1 = jnp.transpose(params["w1"].reshape(100, 20, 7, 7), (2, 3, 1, 0))
    w1 = w1.reshape(49, 20, 100)
    b1 = params["b1"].reshape(1, 100)
    w2 = params["w2"].T                                       # (100, 10)
    b2 = params["b2"].reshape(1, 10)
    return dict(wc=wc, bc=bc, w1=w1, b1=b1, w2=w2, b2=b2)


# ----------------------------------------------------------------------------
# Forward wrapper.
# ----------------------------------------------------------------------------
def model_one_forward(x_nchw, prepped):
    B, cin, H, W = x_nchw.shape
    assert (H, W) == (16, 16), "kernel is specialized to frame_size=(16, 16)"
    K = 25 * cin

    # NHWC + pad to an aligned 20x20 frame (1 conv pad + 3 extra zero rows/cols)
    # so the conv output lives on an aligned 16x16 grid (rows/cols 14-15 are
    # garbage that is never read after pooling).  The 5x5 tap gather (im2col)
    # is trace-time layout glue producing a lane-dense 25*cin channel axis so
    # the kernel does a single MXU matmul.
    x_nhwc = jnp.transpose(x_nchw, (0, 2, 3, 1))                    # (B,16,16,cin)
    xpad = jnp.pad(x_nhwc, ((0, 0), (1, 3), (1, 3), (0, 0)))        # (B,20,20,cin)
    xcol = jnp.concatenate(
        [xpad[:, kh:kh + 16, kw:kw + 16, :] for kh in range(5) for kw in range(5)],
        axis=-1)                                                    # (B,16,16,K)

    bblk, nblk, Bp = _pick_batch_block(B, cin)
    if Bp != B:
        xcol = jnp.pad(xcol, ((0, Bp - B), (0, 0), (0, 0), (0, 0)))

    out = pl.pallas_call(
        model_one_kernel,
        out_shape=jax.ShapeDtypeStruct((Bp, 10), jnp.float32),
        grid=(nblk,),
        in_specs=[
            pl.BlockSpec((bblk, 16, 16, K), lambda i: (i, 0, 0, 0)),
            pl.BlockSpec((K, 20), lambda i: (0, 0)),
            pl.BlockSpec((1, 20), lambda i: (0, 0)),
            pl.BlockSpec((49, 20, 100), lambda i: (0, 0, 0)),
            pl.BlockSpec((1, 100), lambda i: (0, 0)),
            pl.BlockSpec((100, 10), lambda i: (0, 0)),
            pl.BlockSpec((1, 10), lambda i: (0, 0)),
        ],
        out_specs=pl.BlockSpec((bblk, 10), lambda i: (i, 0)),
        scratch_shapes=[pltpu.VMEM((bblk, 8, 8, 20), jnp.float32)],
        compiler_params=pltpu.CompilerParams(dimension_semantics=("parallel",)),
    )(xcol, prepped["wc"], prepped["bc"], prepped["w1"], prepped["b1"],
      prepped["w2"], prepped["b2"])
    return out[:B]


# ----------------------------------------------------------------------------
# Pure-JAX reference (correctness check only).
# ----------------------------------------------------------------------------
def model_one_reference(x_nchw, params):
    B = x_nchw.shape[0]
    y = lax.conv_general_dilated(
        x_nchw, params["wc"], window_strides=(1, 1),
        padding=((1, 1), (1, 1)),
        dimension_numbers=("NCHW", "OIHW", "NCHW"))
    y = jnp.maximum(y + params["bc"][None, :, None, None], 0.0)      # (B,20,14,14)
    y = y.reshape(B, 20, 7, 2, 7, 2).max(axis=(3, 5))                # (B,20,7,7)
    h = jnp.maximum(y.reshape(B, -1) @ params["w1"].T + params["b1"], 0.0)
    logits = h @ params["w2"].T + params["b2"]
    return jax.nn.log_softmax(logits, axis=1)


def make_params(key, cin, conv_out_dim):
    ks = jax.random.split(key, 6)
    return dict(
        wc=jax.random.normal(ks[0], (20, cin, 5, 5), jnp.float32) * 0.1,    # OIHW
        bc=jax.random.normal(ks[1], (20,), jnp.float32) * 0.1,
        w1=jax.random.normal(ks[2], (100, conv_out_dim), jnp.float32) * 0.05,
        b1=jax.random.normal(ks[3], (100,), jnp.float32) * 0.05,
        w2=jax.random.normal(ks[4], (10, 100), jnp.float32) * 0.1,
        b2=jax.random.normal(ks[5], (10,), jnp.float32) * 0.1,
    )


if __name__ == "__main__":
    B, Cin, H, W = 2, 4, 16, 16
    cw, ch = get_output_conv_dims((H, W), [5, 2], [1, 2], [1, 0])
    conv_out_dim = cw * ch * 20
    assert conv_out_dim == 980

    key = jax.random.PRNGKey(0)
    kx, kp = jax.random.split(key)
    x = jax.random.normal(kx, (B, Cin, H, W), jnp.float32)
    params = make_params(kp, Cin, conv_out_dim)

    prepped = prepare_params(params)          # one-time weight re-layout (hoisted)
    fwd = jax.jit(model_one_forward)
    out = jax.block_until_ready(fwd(x, prepped))

    ref = model_one_reference(x, params)
    assert out.shape == (B, 10) and out.dtype == jnp.float32
    if not jnp.allclose(out, ref, atol=1e-4, rtol=1e-4):
        raise AssertionError(
            f"mismatch vs reference, max abs diff = {jnp.max(jnp.abs(out - ref))}")
    print("KERNEL_OK")
</pallas_src>

<mosaic_0001>
module attributes {stable_mosaic.version = 11 : i64} {
  func.func @model_one_kernel(%arg0: i32, %arg1: memref<2x16x16x100xf32, #tpu.memory_space<vmem>>, %arg2: memref<100x20xf32, #tpu.memory_space<vmem>>, %arg3: memref<1x20xf32, #tpu.memory_space<vmem>>, %arg4: memref<49x20x100xf32, #tpu.memory_space<vmem>>, %arg5: memref<1x100xf32, #tpu.memory_space<vmem>>, %arg6: memref<100x10xf32, #tpu.memory_space<vmem>>, %arg7: memref<1x10xf32, #tpu.memory_space<vmem>>, %arg8: memref<2x10xf32, #tpu.memory_space<vmem>>, %arg9: memref<2x8x8x20xf32, #tpu.memory_space<vmem>>) attributes {dimension_semantics = [#tpu.dimension_semantics<parallel>], iteration_bounds = array<i64: 1>, scalar_prefetch = 0 : i64, scratch_operands = 1 : i64, tpu.core_type = #tpu.core_type<tc>, window_params = [{transform_indices = @transform_0, window_bounds = array<i64: 2, 16, 16, 100>}, {pipeline_mode = #tpu.pipeline_mode<synchronous>, transform_indices = @transform_1, window_bounds = array<i64: 100, 20>}, {pipeline_mode = #tpu.pipeline_mode<synchronous>, transform_indices = @transform_2, window_bounds = array<i64: 1, 20>}, {pipeline_mode = #tpu.pipeline_mode<synchronous>, transform_indices = @transform_3, window_bounds = array<i64: 49, 20, 100>}, {pipeline_mode = #tpu.pipeline_mode<synchronous>, transform_indices = @transform_4, window_bounds = array<i64: 1, 100>}, {pipeline_mode = #tpu.pipeline_mode<synchronous>, transform_indices = @transform_5, window_bounds = array<i64: 100, 10>}, {pipeline_mode = #tpu.pipeline_mode<synchronous>, transform_indices = @transform_6, window_bounds = array<i64: 1, 10>}, {transform_indices = @transform_7, window_bounds = array<i64: 2, 10>}]} {
    %c0 = arith.constant 0 : index
    %c0_0 = arith.constant 0 : index
    %c0_1 = arith.constant 0 : index
    %c0_2 = arith.constant 0 : index
    %0 = vector.load %arg1[%c0, %c0_0, %c0_1, %c0_2] : memref<2x16x16x100xf32, #tpu.memory_space<vmem>>, vector<2x16x16x100xf32>
    %1 = vector.shape_cast %0 : vector<2x16x16x100xf32> to vector<512x100xf32>
    %c0_3 = arith.constant 0 : index
    %c0_4 = arith.constant 0 : index
    %2 = vector.load %arg2[%c0_3, %c0_4] : memref<100x20xf32, #tpu.memory_space<vmem>>, vector<100x20xf32>
    %cst = arith.constant dense<0.000000e+00> : vector<512x20xf32>
    %3 = tpu.matmul %1, %2, %cst {dimension_numbers = #tpu.dot_dimension_numbers<[1], [0], [0], [1], [0, 0, 1, 1], [], []>} : vector<512x100xf32>, vector<100x20xf32>, vector<512x20xf32> -> vector<512x20xf32>
    %c0_5 = arith.constant 0 : index
    %c0_6 = arith.constant 0 : index
    %4 = vector.load %arg3[%c0_5, %c0_6] : memref<1x20xf32, #tpu.memory_space<vmem>>, vector<1x20xf32>
    %5 = vector.broadcast %4 : vector<1x20xf32> to vector<512x20xf32>
    %6 = arith.addf %3, %5 : vector<512x20xf32>
    %cst_7 = arith.constant 0.000000e+00 : f32
    %7 = vector.broadcast %cst_7 : f32 to vector<512x20xf32>
    %8 = arith.maximumf %6, %7 : vector<512x20xf32>
    %9 = vector.shape_cast %8 : vector<512x20xf32> to vector<256x2x20xf32>
    %cst_8 = arith.constant dense<0xFF800000> : vector<256x20xf32>
    %10 = vector.multi_reduction <maximumf>, %9, %cst_8 [1] : vector<256x2x20xf32> to vector<256x20xf32>
    %11 = vector.shape_cast %10 : vector<256x20xf32> to vector<16x2x8x20xf32>
    %cst_9 = arith.constant dense<0xFF800000> : vector<16x8x20xf32>
    %12 = vector.multi_reduction <maximumf>, %11, %cst_9 [1] : vector<16x2x8x20xf32> to vector<16x8x20xf32>
    %13 = vector.shape_cast %12 : vector<16x8x20xf32> to vector<2x8x8x20xf32>
    %c0_10 = arith.constant 0 : index
    %c0_11 = arith.constant 0 : index
    %c0_12 = arith.constant 0 : index
    %c0_13 = arith.constant 0 : index
    %14 = vector.load %arg9[%c0_10, %c0_11, %c0_12, %c0_13] : memref<2x8x8x20xf32, #tpu.memory_space<vmem>>, vector<2x8x8x20xf32>
    tpu.vector_store %arg9[%c0_10, %c0_11, %c0_12, %c0_13], %13 {strides = array<i32>} : memref<2x8x8x20xf32, #tpu.memory_space<vmem>>, vector<2x8x8x20xf32>,
    %cst_14 = arith.constant 0.000000e+00 : f32
    %15 = vector.broadcast %cst_14 : f32 to vector<2x100xf32>
    %c0_15 = arith.constant 0 : index
    %c0_16 = arith.constant 0 : index
    %c0_17 = arith.constant 0 : index
    %c0_18 = arith.constant 0 : index
    %16 = vector.load %arg9[%c0_15, %c0_16, %c0_17, %c0_18] : memref<2x8x8x20xf32, #tpu.memory_space<vmem>>, vector<2x1x1x20xf32>
    %17 = vector.shape_cast %16 : vector<2x1x1x20xf32> to vector<2x20xf32>
    %c0_19 = arith.constant 0 : index
    %c0_20 = arith.constant 0 : index
    %c0_21 = arith.constant 0 : index
    %18 = vector.load %arg4[%c0_19, %c0_20, %c0_21] : memref<49x20x100xf32, #tpu.memory_space<vmem>>, vector<1x20x100xf32>
    %19 = vector.shape_cast %18 : vector<1x20x100xf32> to vector<20x100xf32>
    %cst_22 = arith.constant dense<0.000000e+00> : vector<2x100xf32>
    %20 = tpu.matmul %17, %19, %cst_22 {dimension_numbers = #tpu.dot_dimension_numbers<[1], [0], [0], [1], [0, 0, 1, 1], [], []>} : vector<2x20xf32>, vector<20x100xf32>, vector<2x100xf32> -> vector<2x100xf32>
    %21 = arith.addf %15, %20 : vector<2x100xf32>
    %c0_23 = arith.constant 0 : index
    %c0_24 = arith.constant 0 : index
    %c1 = arith.constant 1 : index
    %c0_25 = arith.constant 0 : index
    %22 = vector.load %arg9[%c0_23, %c0_24, %c1, %c0_25] : memref<2x8x8x20xf32, #tpu.memory_space<vmem>>, vector<2x1x1x20xf32>
    %23 = vector.shape_cast %22 : vector<2x1x1x20xf32> to vector<2x20xf32>
    %c1_26 = arith.constant 1 : index
    %c0_27 = arith.constant 0 : index
    %c0_28 = arith.constant 0 : index
    %24 = vector.load %arg4[%c1_26, %c0_27, %c0_28] : memref<49x20x100xf32, #tpu.memory_space<vmem>>, vector<1x20x100xf32>
    %25 = vector.shape_cast %24 : vector<1x20x100xf32> to vector<20x100xf32>
    %cst_29 = arith.constant dense<0.000000e+00> : vector<2x100xf32>
    %26 = tpu.matmul %23, %25, %cst_29 {dimension_numbers = #tpu.dot_dimension_numbers<[1], [0], [0], [1], [0, 0, 1, 1], [], []>} : vector<2x20xf32>, vector<20x100xf32>, vector<2x100xf32> -> vector<2x100xf32>
    %27 = arith.addf %21, %26 : vector<2x100xf32>
    %c0_30 = arith.constant 0 : index
    %c0_31 = arith.constant 0 : index
    %c2 = arith.constant 2 : index
    %c0_32 = arith.constant 0 : index
    %28 = vector.load %arg9[%c0_30, %c0_31, %c2, %c0_32] : memref<2x8x8x20xf32, #tpu.memory_space<vmem>>, vector<2x1x1x20xf32>
    %29 = vector.shape_cast %28 : vector<2x1x1x20xf32> to vector<2x20xf32>
    %c2_33 = arith.constant 2 : index
    %c0_34 = arith.constant 0 : index
    %c0_35 = arith.constant 0 : index
    %30 = vector.load %arg4[%c2_33, %c0_34, %c0_35] : memref<49x20x100xf32, #tpu.memory_space<vmem>>, vector<1x20x100xf32>
    %31 = vector.shape_cast %30 : vector<1x20x100xf32> to vector<20x100xf32>
    %cst_36 = arith.constant dense<0.000000e+00> : vector<2x100xf32>
    %32 = tpu.matmul %29, %31, %cst_36 {dimension_numbers = #tpu.dot_dimension_numbers<[1], [0], [0], [1], [0, 0, 1, 1], [], []>} : vector<2x20xf32>, vector<20x100xf32>, vector<2x100xf32> -> vector<2x100xf32>
    %33 = arith.addf %27, %32 : vector<2x100xf32>
    %c0_37 = arith.constant 0 : index
    %c0_38 = arith.constant 0 : index
    %c3 = arith.constant 3 : index
    %c0_39 = arith.constant 0 : index
    %34 = vector.load %arg9[%c0_37, %c0_38, %c3, %c0_39] : memref<2x8x8x20xf32, #tpu.memory_space<vmem>>, vector<2x1x1x20xf32>
    %35 = vector.shape_cast %34 : vector<2x1x1x20xf32> to vector<2x20xf32>
    %c3_40 = arith.constant 3 : index
    %c0_41 = arith.constant 0 : index
    %c0_42 = arith.constant 0 : index
    %36 = vector.load %arg4[%c3_40, %c0_41, %c0_42] : memref<49x20x100xf32, #tpu.memory_space<vmem>>, vector<1x20x100xf32>
    %37 = vector.shape_cast %36 : vector<1x20x100xf32> to vector<20x100xf32>
    %cst_43 = arith.constant dense<0.000000e+00> : vector<2x100xf32>
    %38 = tpu.matmul %35, %37, %cst_43 {dimension_numbers = #tpu.dot_dimension_numbers<[1], [0], [0], [1], [0, 0, 1, 1], [], []>} : vector<2x20xf32>, vector<20x100xf32>, vector<2x100xf32> -> vector<2x100xf32>
    %39 = arith.addf %33, %38 : vector<2x100xf32>
    %c0_44 = arith.constant 0 : index
    %c0_45 = arith.constant 0 : index
    %c4 = arith.constant 4 : index
    %c0_46 = arith.constant 0 : index
    %40 = vector.load %arg9[%c0_44, %c0_45, %c4, %c0_46] : memref<2x8x8x20xf32, #tpu.memory_space<vmem>>, vector<2x1x1x20xf32>
    %41 = vector.shape_cast %40 : vector<2x1x1x20xf32> to vector<2x20xf32>
    %c4_47 = arith.constant 4 : index
    %c0_48 = arith.constant 0 : index
    %c0_49 = arith.constant 0 : index
    %42 = vector.load %arg4[%c4_47, %c0_48, %c0_49] : memref<49x20x100xf32, #tpu.memory_space<vmem>>, vector<1x20x100xf32>
    %43 = vector.shape_cast %42 : vector<1x20x100xf32> to vector<20x100xf32>
    %cst_50 = arith.constant dense<0.000000e+00> : vector<2x100xf32>
    %44 = tpu.matmul %41, %43, %cst_50 {dimension_numbers = #tpu.dot_dimension_numbers<[1], [0], [0], [1], [0, 0, 1, 1], [], []>} : vector<2x20xf32>, vector<20x100xf32>, vector<2x100xf32> -> vector<2x100xf32>
    %45 = arith.addf %39, %44 : vector<2x100xf32>
    %c0_51 = arith.constant 0 : index
    %c0_52 = arith.constant 0 : index
    %c5 = arith.constant 5 : index
    %c0_53 = arith.constant 0 : index
    %46 = vector.load %arg9[%c0_51, %c0_52, %c5, %c0_53] : memref<2x8x8x20xf32, #tpu.memory_space<vmem>>, vector<2x1x1x20xf32>
    %47 = vector.shape_cast %46 : vector<2x1x1x20xf32> to vector<2x20xf32>
    %c5_54 = arith.constant 5 : index
    %c0_55 = arith.constant 0 : index
    %c0_56 = arith.constant 0 : index
    %48 = vector.load %arg4[%c5_54, %c0_55, %c0_56] : memref<49x20x100xf32, #tpu.memory_space<vmem>>, vector<1x20x100xf32>
    %49 = vector.shape_cast %48 : vector<1x20x100xf32> to vector<20x100xf32>
    %cst_57 = arith.constant dense<0.000000e+00> : vector<2x100xf32>
    %50 = tpu.matmul %47, %49, %cst_57 {dimension_numbers = #tpu.dot_dimension_numbers<[1], [0], [0], [1], [0, 0, 1, 1], [], []>} : vector<2x20xf32>, vector<20x100xf32>, vector<2x100xf32> -> vector<2x100xf32>
    %51 = arith.addf %45, %50 : vector<2x100xf32>
    %c0_58 = arith.constant 0 : index
    %c0_59 = arith.constant 0 : index
    %c6 = arith.constant 6 : index
    %c0_60 = arith.constant 0 : index
    %52 = vector.load %arg9[%c0_58, %c0_59, %c6, %c0_60] : memref<2x8x8x20xf32, #tpu.memory_space<vmem>>, vector<2x1x1x20xf32>
    %53 = vector.shape_cast %52 : vector<2x1x1x20xf32> to vector<2x20xf32>
    %c6_61 = arith.constant 6 : index
    %c0_62 = arith.constant 0 : index
    %c0_63 = arith.constant 0 : index
    %54 = vector.load %arg4[%c6_61, %c0_62, %c0_63] : memref<49x20x100xf32, #tpu.memory_space<vmem>>, vector<1x20x100xf32>
    %55 = vector.shape_cast %54 : vector<1x20x100xf32> to vector<20x100xf32>
    %cst_64 = arith.constant dense<0.000000e+00> : vector<2x100xf32>
    %56 = tpu.matmul %53, %55, %cst_64 {dimension_numbers = #tpu.dot_dimension_numbers<[1], [0], [0], [1], [0, 0, 1, 1], [], []>} : vector<2x20xf32>, vector<20x100xf32>, vector<2x100xf32> -> vector<2x100xf32>
    %57 = arith.addf %51, %56 : vector<2x100xf32>
    %c0_65 = arith.constant 0 : index
    %c1_66 = arith.constant 1 : index
    %c0_67 = arith.constant 0 : index
    %c0_68 = arith.constant 0 : index
    %58 = vector.load %arg9[%c0_65, %c1_66, %c0_67, %c0_68] : memref<2x8x8x20xf32, #tpu.memory_space<vmem>>, vector<2x1x1x20xf32>
    %59 = vector.shape_cast %58 : vector<2x1x1x20xf32> to vector<2x20xf32>
    %c7 = arith.constant 7 : index
    %c0_69 = arith.constant 0 : index
    %c0_70 = arith.constant 0 : index
    %60 = vector.load %arg4[%c7, %c0_69, %c0_70] : memref<49x20x100xf32, #tpu.memory_space<vmem>>, vector<1x20x100xf32>
    %61 = vector.shape_cast %60 : vector<1x20x100xf32> to vector<20x100xf32>
    %cst_71 = arith.constant dense<0.000000e+00> : vector<2x100xf32>
    %62 = tpu.matmul %59, %61, %cst_71 {dimension_numbers = #tpu.dot_dimension_numbers<[1], [0], [0], [1], [0, 0, 1, 1], [], []>} : vector<2x20xf32>, vector<20x100xf32>, vector<2x100xf32> -> vector<2x100xf32>
    %63 = arith.addf %57, %62 : vector<2x100xf32>
    %c0_72 = arith.constant 0 : index
    %c1_73 = arith.constant 1 : index
    %c1_74 = arith.constant 1 : index
    %c0_75 = arith.constant 0 : index
    %64 = vector.load %arg9[%c0_72, %c1_73, %c1_74, %c0_75] : memref<2x8x8x20xf32, #tpu.memory_space<vmem>>, vector<2x1x1x20xf32>
    %65 = vector.shape_cast %64 : vector<2x1x1x20xf32> to vector<2x20xf32>
    %c8 = arith.constant 8 : index
    %c0_76 = arith.constant 0 : index
    %c0_77 = arith.constant 0 : index
    %66 = vector.load %arg4[%c8, %c0_76, %c0_77] : memref<49x20x100xf32, #tpu.memory_space<vmem>>, vector<1x20x100xf32>
    %67 = vector.shape_cast %66 : vector<1x20x100xf32> to vector<20x100xf32>
    %cst_78 = arith.constant dense<0.000000e+00> : vector<2x100xf32>
    %68 = tpu.matmul %65, %67, %cst_78 {dimension_numbers = #tpu.dot_dimension_numbers<[1], [0], [0], [1], [0, 0, 1, 1], [], []>} : vector<2x20xf32>, vector<20x100xf32>, vector<2x100xf32> -> vector<2x100xf32>
    %69 = arith.addf %63, %68 : vector<2x100xf32>
    %c0_79 = arith.constant 0 : index
    %c1_80 = arith.constant 1 : index
    %c2_81 = arith.constant 2 : index
    %c0_82 = arith.constant 0 : index
    %70 = vector.load %arg9[%c0_79, %c1_80, %c2_81, %c0_82] : memref<2x8x8x20xf32, #tpu.memory_space<vmem>>, vector<2x1x1x20xf32>
    %71 = vector.shape_cast %70 : vector<2x1x1x20xf32> to vector<2x20xf32>
    %c9 = arith.constant 9 : index
    %c0_83 = arith.constant 0 : index
    %c0_84 = arith.constant 0 : index
    %72 = vector.load %arg4[%c9, %c0_83, %c0_84] : memref<49x20x100xf32, #tpu.memory_space<vmem>>, vector<1x20x100xf32>
    %73 = vector.shape_cast %72 : vector<1x20x100xf32> to vector<20x100xf32>
    %cst_85 = arith.constant dense<0.000000e+00> : vector<2x100xf32>
    %74 = tpu.matmul %71, %73, %cst_85 {dimension_numbers = #tpu.dot_dimension_numbers<[1], [0], [0], [1], [0, 0, 1, 1], [], []>} : vector<2x20xf32>, vector<20x100xf32>, vector<2x100xf32> -> vector<2x100xf32>
    %75 = arith.addf %69, %74 : vector<2x100xf32>
    %c0_86 = arith.constant 0 : index
    %c1_87 = arith.constant 1 : index
    %c3_88 = arith.constant 3 : index
    %c0_89 = arith.constant 0 : index
    %76 = vector.load %arg9[%c0_86, %c1_87, %c3_88, %c0_89] : memref<2x8x8x20xf32, #tpu.memory_space<vmem>>, vector<2x1x1x20xf32>
    %77 = vector.shape_cast %76 : vector<2x1x1x20xf32> to vector<2x20xf32>
    %c10 = arith.constant 10 : index
    %c0_90 = arith.constant 0 : index
    %c0_91 = arith.constant 0 : index
    %78 = vector.load %arg4[%c10, %c0_90, %c0_91] : memref<49x20x100xf32, #tpu.memory_space<vmem>>, vector<1x20x100xf32>
    %79 = vector.shape_cast %78 : vector<1x20x100xf32> to vector<20x100xf32>
    %cst_92 = arith.constant dense<0.000000e+00> : vector<2x100xf32>
    %80 = tpu.matmul %77, %79, %cst_92 {dimension_numbers = #tpu.dot_dimension_numbers<[1], [0], [0], [1], [0, 0, 1, 1], [], []>} : vector<2x20xf32>, vector<20x100xf32>, vector<2x100xf32> -> vector<2x100xf32>
    %81 = arith.addf %75, %80 : vector<2x100xf32>
    %c0_93 = arith.constant 0 : index
    %c1_94 = arith.constant 1 : index
    %c4_95 = arith.constant 4 : index
    %c0_96 = arith.constant 0 : index
    %82 = vector.load %arg9[%c0_93, %c1_94, %c4_95, %c0_96] : memref<2x8x8x20xf32, #tpu.memory_space<vmem>>, vector<2x1x1x20xf32>
    %83 = vector.shape_cast %82 : vector<2x1x1x20xf32> to vector<2x20xf32>
    %c11 = arith.constant 11 : index
    %c0_97 = arith.constant 0 : index
    %c0_98 = arith.constant 0 : index
    %84 = vector.load %arg4[%c11, %c0_97, %c0_98] : memref<49x20x100xf32, #tpu.memory_space<vmem>>, vector<1x20x100xf32>
    %85 = vector.shape_cast %84 : vector<1x20x100xf32> to vector<20x100xf32>
    %cst_99 = arith.constant dense<0.000000e+00> : vector<2x100xf32>
    %86 = tpu.matmul %83, %85, %cst_99 {dimension_numbers = #tpu.dot_dimension_numbers<[1], [0], [0], [1], [0, 0, 1, 1], [], []>} : vector<2x20xf32>, vector<20x100xf32>, vector<2x100xf32> -> vector<2x100xf32>
    %87 = arith.addf %81, %86 : vector<2x100xf32>
    %c0_100 = arith.constant 0 : index
    %c1_101 = arith.constant 1 : index
    %c5_102 = arith.constant 5 : index
    %c0_103 = arith.constant 0 : index
    %88 = vector.load %arg9[%c0_100, %c1_101, %c5_102, %c0_103] : memref<2x8x8x20xf32, #tpu.memory_space<vmem>>, vector<2x1x1x20xf32>
    %89 = vector.shape_cast %88 : vector<2x1x1x20xf32> to vector<2x20xf32>
    %c12 = arith.constant 12 : index
    %c0_104 = arith.constant 0 : index
    %c0_105 = arith.constant 0 : index
    %90 = vector.load %arg4[%c12, %c0_104, %c0_105] : memref<49x20x100xf32, #tpu.memory_space<vmem>>, vector<1x20x100xf32>
    %91 = vector.shape_cast %90 : vector<1x20x100xf32> to vector<20x100xf32>
    %cst_106 = arith.constant dense<0.000000e+00> : vector<2x100xf32>
    %92 = tpu.matmul %89, %91, %cst_106 {dimension_numbers = #tpu.dot_dimension_numbers<[1], [0], [0], [1], [0, 0, 1, 1], [], []>} : vector<2x20xf32>, vector<20x100xf32>, vector<2x100xf32> -> vector<2x100xf32>
    %93 = arith.addf %87, %92 : vector<2x100xf32>
    %c0_107 = arith.constant 0 : index
    %c1_108 = arith.constant 1 : index
    %c6_109 = arith.constant 6 : index
    %c0_110 = arith.constant 0 : index
    %94 = vector.load %arg9[%c0_107, %c1_108, %c6_109, %c0_110] : memref<2x8x8x20xf32, #tpu.memory_space<vmem>>, vector<2x1x1x20xf32>
    %95 = vector.shape_cast %94 : vector<2x1x1x20xf32> to vector<2x20xf32>
    %c13 = arith.constant 13 : index
    %c0_111 = arith.constant 0 : index
    %c0_112 = arith.constant 0 : index
    %96 = vector.load %arg4[%c13, %c0_111, %c0_112] : memref<49x20x100xf32, #tpu.memory_space<vmem>>, vector<1x20x100xf32>
    %97 = vector.shape_cast %96 : vector<1x20x100xf32> to vector<20x100xf32>
    %cst_113 = arith.constant dense<0.000000e+00> : vector<2x100xf32>
    %98 = tpu.matmul %95, %97, %cst_113 {dimension_numbers = #tpu.dot_dimension_numbers<[1], [0], [0], [1], [0, 0, 1, 1], [], []>} : vector<2x20xf32>, vector<20x100xf32>, vector<2x100xf32> -> vector<2x100xf32>
    %99 = arith.addf %93, %98 : vector<2x100xf32>
    %c0_114 = arith.constant 0 : index
    %c2_115 = arith.constant 2 : index
    %c0_116 = arith.constant 0 : index
    %c0_117 = arith.constant 0 : index
    %100 = vector.load %arg9[%c0_114, %c2_115, %c0_116, %c0_117] : memref<2x8x8x20xf32, #tpu.memory_space<vmem>>, vector<2x1x1x20xf32>
    %101 = vector.shape_cast %100 : vector<2x1x1x20xf32> to vector<2x20xf32>
    %c14 = arith.constant 14 : index
    %c0_118 = arith.constant 0 : index
    %c0_119 = arith.constant 0 : index
    %102 = vector.load %arg4[%c14, %c0_118, %c0_119] : memref<49x20x100xf32, #tpu.memory_space<vmem>>, vector<1x20x100xf32>
    %103 = vector.shape_cast %102 : vector<1x20x100xf32> to vector<20x100xf32>
    %cst_120 = arith.constant dense<0.000000e+00> : vector<2x100xf32>
    %104 = tpu.matmul %101, %103, %cst_120 {dimension_numbers = #tpu.dot_dimension_numbers<[1], [0], [0], [1], [0, 0, 1, 1], [], []>} : vector<2x20xf32>, vector<20x100xf32>, vector<2x100xf32> -> vector<2x100xf32>
    %105 = arith.addf %99, %104 : vector<2x100xf32>
    %c0_121 = arith.constant 0 : index
    %c2_122 = arith.constant 2 : index
    %c1_123 = arith.constant 1 : index
    %c0_124 = arith.constant 0 : index
    %106 = vector.load %arg9[%c0_121, %c2_122, %c1_123, %c0_124] : memref<2x8x8x20xf32, #tpu.memory_space<vmem>>, vector<2x1x1x20xf32>
    %107 = vector.shape_cast %106 : vector<2x1x1x20xf32> to vector<2x20xf32>
    %c15 = arith.constant 15 : index
    %c0_125 = arith.constant 0 : index
    %c0_126 = arith.constant 0 : index
    %108 = vector.load %arg4[%c15, %c0_125, %c0_126] : memref<49x20x100xf32, #tpu.memory_space<vmem>>, vector<1x20x100xf32>
    %109 = vector.shape_cast %108 : vector<1x20x100xf32> to vector<20x100xf32>
    %cst_127 = arith.constant dense<0.000000e+00> : vector<2x100xf32>
    %110 = tpu.matmul %107, %109, %cst_127 {dimension_numbers = #tpu.dot_dimension_numbers<[1], [0], [0], [1], [0, 0, 1, 1], [], []>} : vector<2x20xf32>, vector<20x100xf32>, vector<2x100xf32> -> vector<2x100xf32>
    %111 = arith.addf %105, %110 : vector<2x100xf32>
    %c0_128 = arith.constant 0 : index
    %c2_129 = arith.constant 2 : index
    %c2_130 = arith.constant 2 : index
    %c0_131 = arith.constant 0 : index
    %112 = vector.load %arg9[%c0_128, %c2_129, %c2_130, %c0_131] : memref<2x8x8x20xf32, #tpu.memory_space<vmem>>, vector<2x1x1x20xf32>
    %113 = vector.shape_cast %112 : vector<2x1x1x20xf32> to vector<2x20xf32>
    %c16 = arith.constant 16 : index
    %c0_132 = arith.constant 0 : index
    %c0_133 = arith.constant 0 : index
    %114 = vector.load %arg4[%c16, %c0_132, %c0_133] : memref<49x20x100xf32, #tpu.memory_space<vmem>>, vector<1x20x100xf32>
    %115 = vector.shape_cast %114 : vector<1x20x100xf32> to vector<20x100xf32>
    %cst_134 = arith.constant dense<0.000000e+00> : vector<2x100xf32>
    %116 = tpu.matmul %113, %115, %cst_134 {dimension_numbers = #tpu.dot_dimension_numbers<[1], [0], [0], [1], [0, 0, 1, 1], [], []>} : vector<2x20xf32>, vector<20x100xf32>, vector<2x100xf32> -> vector<2x100xf32>
    %117 = arith.addf %111, %116 : vector<2x100xf32>
    %c0_135 = arith.constant 0 : index
    %c2_136 = arith.constant 2 : index
    %c3_137 = arith.constant 3 : index
    %c0_138 = arith.constant 0 : index
    %118 = vector.load %arg9[%c0_135, %c2_136, %c3_137, %c0_138] : memref<2x8x8x20xf32, #tpu.memory_space<vmem>>, vector<2x1x1x20xf32>
    %119 = vector.shape_cast %118 : vector<2x1x1x20xf32> to vector<2x20xf32>
    %c17 = arith.constant 17 : index
    %c0_139 = arith.constant 0 : index
    %c0_140 = arith.constant 0 : index
    %120 = vector.load %arg4[%c17, %c0_139, %c0_140] : memref<49x20x100xf32, #tpu.memory_space<vmem>>, vector<1x20x100xf32>
    %121 = vector.shape_cast %120 : vector<1x20x100xf32> to vector<20x100xf32>
    %cst_141 = arith.constant dense<0.000000e+00> : vector<2x100xf32>
    %122 = tpu.matmul %119, %121, %cst_141 {dimension_numbers = #tpu.dot_dimension_numbers<[1], [0], [0], [1], [0, 0, 1, 1], [], []>} : vector<2x20xf32>, vector<20x100xf32>, vector<2x100xf32> -> vector<2x100xf32>
    %123 = arith.addf %117, %122 : vector<2x100xf32>
    %c0_142 = arith.constant 0 : index
    %c2_143 = arith.constant 2 : index
    %c4_144 = arith.constant 4 : index
    %c0_145 = arith.constant 0 : index
    %124 = vector.load %arg9[%c0_142, %c2_143, %c4_144, %c0_145] : memref<2x8x8x20xf32, #tpu.memory_space<vmem>>, vector<2x1x1x20xf32>
    %125 = vector.shape_cast %124 : vector<2x1x1x20xf32> to vector<2x20xf32>
    %c18 = arith.constant 18 : index
    %c0_146 = arith.constant 0 : index
    %c0_147 = arith.constant 0 : index
    %126 = vector.load %arg4[%c18, %c0_146, %c0_147] : memref<49x20x100xf32, #tpu.memory_space<vmem>>, vector<1x20x100xf32>
    %127 = vector.shape_cast %126 : vector<1x20x100xf32> to vector<20x100xf32>
    %cst_148 = arith.constant dense<0.000000e+00> : vector<2x100xf32>
    %128 = tpu.matmul %125, %127, %cst_148 {dimension_numbers = #tpu.dot_dimension_numbers<[1], [0], [0], [1], [0, 0, 1, 1], [], []>} : vector<2x20xf32>, vector<20x100xf32>, vector<2x100xf32> -> vector<2x100xf32>
    %129 = arith.addf %123, %128 : vector<2x100xf32>
    %c0_149 = arith.constant 0 : index
    %c2_150 = arith.constant 2 : index
    %c5_151 = arith.constant 5 : index
    %c0_152 = arith.constant 0 : index
    %130 = vector.load %arg9[%c0_149, %c2_150, %c5_151, %c0_152] : memref<2x8x8x20xf32, #tpu.memory_space<vmem>>, vector<2x1x1x20xf32>
    %131 = vector.shape_cast %130 : vector<2x1x1x20xf32> to vector<2x20xf32>
    %c19 = arith.constant 19 : index
    %c0_153 = arith.constant 0 : index
    %c0_154 = arith.constant 0 : index
    %132 = vector.load %arg4[%c19, %c0_153, %c0_154] : memref<49x20x100xf32, #tpu.memory_space<vmem>>, vector<1x20x100xf32>
    %133 = vector.shape_cast %132 : vector<1x20x100xf32> to vector<20x100xf32>
    %cst_155 = arith.constant dense<0.000000e+00> : vector<2x100xf32>
    %134 = tpu.matmul %131, %133, %cst_155 {dimension_numbers = #tpu.dot_dimension_numbers<[1], [0], [0], [1], [0, 0, 1, 1], [], []>} : vector<2x20xf32>, vector<20x100xf32>, vector<2x100xf32> -> vector<2x100xf32>
    %135 = arith.addf %129, %134 : vector<2x100xf32>
    %c0_156 = arith.constant 0 : index
    %c2_157 = arith.constant 2 : index
    %c6_158 = arith.constant 6 : index
    %c0_159 = arith.constant 0 : index
    %136 = vector.load %arg9[%c0_156, %c2_157, %c6_158, %c0_159] : memref<2x8x8x20xf32, #tpu.memory_space<vmem>>, vector<2x1x1x20xf32>
    %137 = vector.shape_cast %136 : vector<2x1x1x20xf32> to vector<2x20xf32>
    %c20 = arith.constant 20 : index
    %c0_160 = arith.constant 0 : index
    %c0_161 = arith.constant 0 : index
    %138 = vector.load %arg4[%c20, %c0_160, %c0_161] : memref<49x20x100xf32, #tpu.memory_space<vmem>>, vector<1x20x100xf32>
    %139 = vector.shape_cast %138 : vector<1x20x100xf32> to vector<20x100xf32>
    %cst_162 = arith.constant dense<0.000000e+00> : vector<2x100xf32>
    %140 = tpu.matmul %137, %139, %cst_162 {dimension_numbers = #tpu.dot_dimension_numbers<[1], [0], [0], [1], [0, 0, 1, 1], [], []>} : vector<2x20xf32>, vector<20x100xf32>, vector<2x100xf32> -> vector<2x100xf32>
    %141 = arith.addf %135, %140 : vector<2x100xf32>
    %c0_163 = arith.constant 0 : index
    %c3_164 = arith.constant 3 : index
    %c0_165 = arith.constant 0 : index
    %c0_166 = arith.constant 0 : index
    %142 = vector.load %arg9[%c0_163, %c3_164, %c0_165, %c0_166] : memref<2x8x8x20xf32, #tpu.memory_space<vmem>>, vector<2x1x1x20xf32>
    %143 = vector.shape_cast %142 : vector<2x1x1x20xf32> to vector<2x20xf32>
    %c21 = arith.constant 21 : index
    %c0_167 = arith.constant 0 : index
    %c0_168 = arith.constant 0 : index
    %144 = vector.load %arg4[%c21, %c0_167, %c0_168] : memref<49x20x100xf32, #tpu.memory_space<vmem>>, vector<1x20x100xf32>
    %145 = vector.shape_cast %144 : vector<1x20x100xf32> to vector<20x100xf32>
    %cst_169 = arith.constant dense<0.000000e+00> : vector<2x100xf32>
    %146 = tpu.matmul %143, %145, %cst_169 {dimension_numbers = #tpu.dot_dimension_numbers<[1], [0], [0], [1], [0, 0, 1, 1], [], []>} : vector<2x20xf32>, vector<20x100xf32>, vector<2x100xf32> -> vector<2x100xf32>
    %147 = arith.addf %141, %146 : vector<2x100xf32>
    %c0_170 = arith.constant 0 : index
    %c3_171 = arith.constant 3 : index
    %c1_172 = arith.constant 1 : index
    %c0_173 = arith.constant 0 : index
    %148 = vector.load %arg9[%c0_170, %c3_171, %c1_172, %c0_173] : memref<2x8x8x20xf32, #tpu.memory_space<vmem>>, vector<2x1x1x20xf32>
    %149 = vector.shape_cast %148 : vector<2x1x1x20xf32> to vector<2x20xf32>
    %c22 = arith.constant 22 : index
    %c0_174 = arith.constant 0 : index
    %c0_175 = arith.constant 0 : index
    %150 = vector.load %arg4[%c22, %c0_174, %c0_175] : memref<49x20x100xf32, #tpu.memory_space<vmem>>, vector<1x20x100xf32>
    %151 = vector.shape_cast %150 : vector<1x20x100xf32> to vector<20x100xf32>
    %cst_176 = arith.constant dense<0.000000e+00> : vector<2x100xf32>
    %152 = tpu.matmul %149, %151, %cst_176 {dimension_numbers = #tpu.dot_dimension_numbers<[1], [0], [0], [1], [0, 0, 1, 1], [], []>} : vector<2x20xf32>, vector<20x100xf32>, vector<2x100xf32> -> vector<2x100xf32>
    %153 = arith.addf %147, %152 : vector<2x100xf32>
    %c0_177 = arith.constant 0 : index
    %c3_178 = arith.constant 3 : index
    %c2_179 = arith.constant 2 : index
    %c0_180 = arith.constant 0 : index
    %154 = vector.load %arg9[%c0_177, %c3_178, %c2_179, %c0_180] : memref<2x8x8x20xf32, #tpu.memory_space<vmem>>, vector<2x1x1x20xf32>
    %155 = vector.shape_cast %154 : vector<2x1x1x20xf32> to vector<2x20xf32>
    %c23 = arith.constant 23 : index
    %c0_181 = arith.constant 0 : index
    %c0_182 = arith.constant 0 : index
    %156 = vector.load %arg4[%c23, %c0_181, %c0_182] : memref<49x20x100xf32, #tpu.memory_space<vmem>>, vector<1x20x100xf32>
    %157 = vector.shape_cast %156 : vector<1x20x100xf32> to vector<20x100xf32>
    %cst_183 = arith.constant dense<0.000000e+00> : vector<2x100xf32>
    %158 = tpu.matmul %155, %157, %cst_183 {dimension_numbers = #tpu.dot_dimension_numbers<[1], [0], [0], [1], [0, 0, 1, 1], [], []>} : vector<2x20xf32>, vector<20x100xf32>, vector<2x100xf32> -> vector<2x100xf32>
    %159 = arith.addf %153, %158 : vector<2x100xf32>
    %c0_184 = arith.constant 0 : index
    %c3_185 = arith.constant 3 : index
    %c3_186 = arith.constant 3 : index
    %c0_187 = arith.constant 0 : index
    %160 = vector.load %arg9[%c0_184, %c3_185, %c3_186, %c0_187] : memref<2x8x8x20xf32, #tpu.memory_space<vmem>>, vector<2x1x1x20xf32>
    %161 = vector.shape_cast %160 : vector<2x1x1x20xf32> to vector<2x20xf32>
    %c24 = arith.constant 24 : index
    %c0_188 = arith.constant 0 : index
    %c0_189 = arith.constant 0 : index
    %162 = vector.load %arg4[%c24, %c0_188, %c0_189] : memref<49x20x100xf32, #tpu.memory_space<vmem>>, vector<1x20x100xf32>
    %163 = vector.shape_cast %162 : vector<1x20x100xf32> to vector<20x100xf32>
    %cst_190 = arith.constant dense<0.000000e+00> : vector<2x100xf32>
    %164 = tpu.matmul %161, %163, %cst_190 {dimension_numbers = #tpu.dot_dimension_numbers<[1], [0], [0], [1], [0, 0, 1, 1], [], []>} : vector<2x20xf32>, vector<20x100xf32>, vector<2x100xf32> -> vector<2x100xf32>
    %165 = arith.addf %159, %164 : vector<2x100xf32>
    %c0_191 = arith.constant 0 : index
    %c3_192 = arith.constant 3 : index
    %c4_193 = arith.constant 4 : index
    %c0_194 = arith.constant 0 : index
    %166 = vector.load %arg9[%c0_191, %c3_192, %c4_193, %c0_194] : memref<2x8x8x20xf32, #tpu.memory_space<vmem>>, vector<2x1x1x20xf32>
    %167 = vector.shape_cast %166 : vector<2x1x1x20xf32> to vector<2x20xf32>
    %c25 = arith.constant 25 : index
    %c0_195 = arith.constant 0 : index
    %c0_196 = arith.constant 0 : index
    %168 = vector.load %arg4[%c25, %c0_195, %c0_196] : memref<49x20x100xf32, #tpu.memory_space<vmem>>, vector<1x20x100xf32>
    %169 = vector.shape_cast %168 : vector<1x20x100xf32> to vector<20x100xf32>
    %cst_197 = arith.constant dense<0.000000e+00> : vector<2x100xf32>
    %170 = tpu.matmul %167, %169, %cst_197 {dimension_numbers = #tpu.dot_dimension_numbers<[1], [0], [0], [1], [0, 0, 1, 1], [], []>} : vector<2x20xf32>, vector<20x100xf32>, vector<2x100xf32> -> vector<2x100xf32>
    %171 = arith.addf %165, %170 : vector<2x100xf32>
    %c0_198 = arith.constant 0 : index
    %c3_199 = arith.constant 3 : index
    %c5_200 = arith.constant 5 : index
    %c0_201 = arith.constant 0 : index
    %172 = vector.load %arg9[%c0_198, %c3_199, %c5_200, %c0_201] : memref<2x8x8x20xf32, #tpu.memory_space<vmem>>, vector<2x1x1x20xf32>
    %173 = vector.shape_cast %172 : vector<2x1x1x20xf32> to vector<2x20xf32>
    %c26 = arith.constant 26 : index
    %c0_202 = arith.constant 0 : index
    %c0_203 = arith.constant 0 : index
    %174 = vector.load %arg4[%c26, %c0_202, %c0_203] : memref<49x20x100xf32, #tpu.memory_space<vmem>>, vector<1x20x100xf32>
    %175 = vector.shape_cast %174 : vector<1x20x100xf32> to vector<20x100xf32>
    %cst_204 = arith.constant dense<0.000000e+00> : vector<2x100xf32>
    %176 = tpu.matmul %173, %175, %cst_204 {dimension_numbers = #tpu.dot_dimension_numbers<[1], [0], [0], [1], [0, 0, 1, 1], [], []>} : vector<2x20xf32>, vector<20x100xf32>, vector<2x100xf32> -> vector<2x100xf32>
    %177 = arith.addf %171, %176 : vector<2x100xf32>
    %c0_205 = arith.constant 0 : index
    %c3_206 = arith.constant 3 : index
    %c6_207 = arith.constant 6 : index
    %c0_208 = arith.constant 0 : index
    %178 = vector.load %arg9[%c0_205, %c3_206, %c6_207, %c0_208] : memref<2x8x8x20xf32, #tpu.memory_space<vmem>>, vector<2x1x1x20xf32>
    %179 = vector.shape_cast %178 : vector<2x1x1x20xf32> to vector<2x20xf32>
    %c27 = arith.constant 27 : index
    %c0_209 = arith.constant 0 : index
    %c0_210 = arith.constant 0 : index
    %180 = vector.load %arg4[%c27, %c0_209, %c0_210] : memref<49x20x100xf32, #tpu.memory_space<vmem>>, vector<1x20x100xf32>
    %181 = vector.shape_cast %180 : vector<1x20x100xf32> to vector<20x100xf32>
    %cst_211 = arith.constant dense<0.000000e+00> : vector<2x100xf32>
    %182 = tpu.matmul %179, %181, %cst_211 {dimension_numbers = #tpu.dot_dimension_numbers<[1], [0], [0], [1], [0, 0, 1, 1], [], []>} : vector<2x20xf32>, vector<20x100xf32>, vector<2x100xf32> -> vector<2x100xf32>
    %183 = arith.addf %177, %182 : vector<2x100xf32>
    %c0_212 = arith.constant 0 : index
    %c4_213 = arith.constant 4 : index
    %c0_214 = arith.constant 0 : index
    %c0_215 = arith.constant 0 : index
    %184 = vector.load %arg9[%c0_212, %c4_213, %c0_214, %c0_215] : memref<2x8x8x20xf32, #tpu.memory_space<vmem>>, vector<2x1x1x20xf32>
    %185 = vector.shape_cast %184 : vector<2x1x1x20xf32> to vector<2x20xf32>
    %c28 = arith.constant 28 : index
    %c0_216 = arith.constant 0 : index
    %c0_217 = arith.constant 0 : index
    %186 = vector.load %arg4[%c28, %c0_216, %c0_217] : memref<49x20x100xf32, #tpu.memory_space<vmem>>, vector<1x20x100xf32>
    %187 = vector.shape_cast %186 : vector<1x20x100xf32> to vector<20x100xf32>
    %cst_218 = arith.constant dense<0.000000e+00> : vector<2x100xf32>
    %188 = tpu.matmul %185, %187, %cst_218 {dimension_numbers = #tpu.dot_dimension_numbers<[1], [0], [0], [1], [0, 0, 1, 1], [], []>} : vector<2x20xf32>, vector<20x100xf32>, vector<2x100xf32> -> vector<2x100xf32>
    %189 = arith.addf %183, %188 : vector<2x100xf32>
    %c0_219 = arith.constant 0 : index
    %c4_220 = arith.constant 4 : index
    %c1_221 = arith.constant 1 : index
    %c0_222 = arith.constant 0 : index
    %190 = vector.load %arg9[%c0_219, %c4_220, %c1_221, %c0_222] : memref<2x8x8x20xf32, #tpu.memory_space<vmem>>, vector<2x1x1x20xf32>
    %191 = vector.shape_cast %190 : vector<2x1x1x20xf32> to vector<2x20xf32>
    %c29 = arith.constant 29 : index
    %c0_223 = arith.constant 0 : index
    %c0_224 = arith.constant 0 : index
    %192 = vector.load %arg4[%c29, %c0_223, %c0_224] : memref<49x20x100xf32, #tpu.memory_space<vmem>>, vector<1x20x100xf32>
    %193 = vector.shape_cast %192 : vector<1x20x100xf32> to vector<20x100xf32>
    %cst_225 = arith.constant dense<0.000000e+00> : vector<2x100xf32>
    %194 = tpu.matmul %191, %193, %cst_225 {dimension_numbers = #tpu.dot_dimension_numbers<[1], [0], [0], [1], [0, 0, 1, 1], [], []>} : vector<2x20xf32>, vector<20x100xf32>, vector<2x100xf32> -> vector<2x100xf32>
    %195 = arith.addf %189, %194 : vector<2x100xf32>
    %c0_226 = arith.constant 0 : index
    %c4_227 = arith.constant 4 : index
    %c2_228 = arith.constant 2 : index
    %c0_229 = arith.constant 0 : index
    %196 = vector.load %arg9[%c0_226, %c4_227, %c2_228, %c0_229] : memref<2x8x8x20xf32, #tpu.memory_space<vmem>>, vector<2x1x1x20xf32>
    %197 = vector.shape_cast %196 : vector<2x1x1x20xf32> to vector<2x20xf32>
    %c30 = arith.constant 30 : index
    %c0_230 = arith.constant 0 : index
    %c0_231 = arith.constant 0 : index
    %198 = vector.load %arg4[%c30, %c0_230, %c0_231] : memref<49x20x100xf32, #tpu.memory_space<vmem>>, vector<1x20x100xf32>
    %199 = vector.shape_cast %198 : vector<1x20x100xf32> to vector<20x100xf32>
    %cst_232 = arith.constant dense<0.000000e+00> : vector<2x100xf32>
    %200 = tpu.matmul %197, %199, %cst_232 {dimension_numbers = #tpu.dot_dimension_numbers<[1], [0], [0], [1], [0, 0, 1, 1], [], []>} : vector<2x20xf32>, vector<20x100xf32>, vector<2x100xf32> -> vector<2x100xf32>
    %201 = arith.addf %195, %200 : vector<2x100xf32>
    %c0_233 = arith.constant 0 : index
    %c4_234 = arith.constant 4 : index
    %c3_235 = arith.constant 3 : index
    %c0_236 = arith.constant 0 : index
    %202 = vector.load %arg9[%c0_233, %c4_234, %c3_235, %c0_236] : memref<2x8x8x20xf32, #tpu.memory_space<vmem>>, vector<2x1x1x20xf32>
    %203 = vector.shape_cast %202 : vector<2x1x1x20xf32> to vector<2x20xf32>
    %c31 = arith.constant 31 : index
    %c0_237 = arith.constant 0 : index
    %c0_238 = arith.constant 0 : index
    %204 = vector.load %arg4[%c31, %c0_237, %c0_238] : memref<49x20x100xf32, #tpu.memory_space<vmem>>, vector<1x20x100xf32>
    %205 = vector.shape_cast %204 : vector<1x20x100xf32> to vector<20x100xf32>
    %cst_239 = arith.constant dense<0.000000e+00> : vector<2x100xf32>
    %206 = tpu.matmul %203, %205, %cst_239 {dimension_numbers = #tpu.dot_dimension_numbers<[1], [0], [0], [1], [0, 0, 1, 1], [], []>} : vector<2x20xf32>, vector<20x100xf32>, vector<2x100xf32> -> vector<2x100xf32>
    %207 = arith.addf %201, %206 : vector<2x100xf32>
    %c0_240 = arith.constant 0 : index
    %c4_241 = arith.constant 4 : index
    %c4_242 = arith.constant 4 : index
    %c0_243 = arith.constant 0 : index
    %208 = vector.load %arg9[%c0_240, %c4_241, %c4_242, %c0_243] : memref<2x8x8x20xf32, #tpu.memory_space<vmem>>, vector<2x1x1x20xf32>
    %209 = vector.shape_cast %208 : vector<2x1x1x20xf32> to vector<2x20xf32>
    %c32 = arith.constant 32 : index
    %c0_244 = arith.constant 0 : index
    %c0_245 = arith.constant 0 : index
    %210 = vector.load %arg4[%c32, %c0_244, %c0_245] : memref<49x20x100xf32, #tpu.memory_space<vmem>>, vector<1x20x100xf32>
    %211 = vector.shape_cast %210 : vector<1x20x100xf32> to vector<20x100xf32>
    %cst_246 = arith.constant dense<0.000000e+00> : vector<2x100xf32>
    %212 = tpu.matmul %209, %211, %cst_246 {dimension_numbers = #tpu.dot_dimension_numbers<[1], [0], [0], [1], [0, 0, 1, 1], [], []>} : vector<2x20xf32>, vector<20x100xf32>, vector<2x100xf32> -> vector<2x100xf32>
    %213 = arith.addf %207, %212 : vector<2x100xf32>
    %c0_247 = arith.constant 0 : index
    %c4_248 = arith.constant 4 : index
    %c5_249 = arith.constant 5 : index
    %c0_250 = arith.constant 0 : index
    %214 = vector.load %arg9[%c0_247, %c4_248, %c5_249, %c0_250] : memref<2x8x8x20xf32, #tpu.memory_space<vmem>>, vector<2x1x1x20xf32>
    %215 = vector.shape_cast %214 : vector<2x1x1x20xf32> to vector<2x20xf32>
    %c33 = arith.constant 33 : index
    %c0_251 = arith.constant 0 : index
    %c0_252 = arith.constant 0 : index
    %216 = vector.load %arg4[%c33, %c0_251, %c0_252] : memref<49x20x100xf32, #tpu.memory_space<vmem>>, vector<1x20x100xf32>
    %217 = vector.shape_cast %216 : vector<1x20x100xf32> to vector<20x100xf32>
    %cst_253 = arith.constant dense<0.000000e+00> : vector<2x100xf32>
    %218 = tpu.matmul %215, %217, %cst_253 {dimension_numbers = #tpu.dot_dimension_numbers<[1], [0], [0], [1], [0, 0, 1, 1], [], []>} : vector<2x20xf32>, vector<20x100xf32>, vector<2x100xf32> -> vector<2x100xf32>
    %219 = arith.addf %213, %218 : vector<2x100xf32>
    %c0_254 = arith.constant 0 : index
    %c4_255 = arith.constant 4 : index
    %c6_256 = arith.constant 6 : index
    %c0_257 = arith.constant 0 : index
    %220 = vector.load %arg9[%c0_254, %c4_255, %c6_256, %c0_257] : memref<2x8x8x20xf32, #tpu.memory_space<vmem>>, vector<2x1x1x20xf32>
    %221 = vector.shape_cast %220 : vector<2x1x1x20xf32> to vector<2x20xf32>
    %c34 = arith.constant 34 : index
    %c0_258 = arith.constant 0 : index
    %c0_259 = arith.constant 0 : index
    %222 = vector.load %arg4[%c34, %c0_258, %c0_259] : memref<49x20x100xf32, #tpu.memory_space<vmem>>, vector<1x20x100xf32>
    %223 = vector.shape_cast %222 : vector<1x20x100xf32> to vector<20x100xf32>
    %cst_260 = arith.constant dense<0.000000e+00> : vector<2x100xf32>
    %224 = tpu.matmul %221, %223, %cst_260 {dimension_numbers = #tpu.dot_dimension_numbers<[1], [0], [0], [1], [0, 0, 1, 1], [], []>} : vector<2x20xf32>, vector<20x100xf32>, vector<2x100xf32> -> vector<2x100xf32>
    %225 = arith.addf %219, %224 : vector<2x100xf32>
    %c0_261 = arith.constant 0 : index
    %c5_262 = arith.constant 5 : index
    %c0_263 = arith.constant 0 : index
    %c0_264 = arith.constant 0 : index
    %226 = vector.load %arg9[%c0_261, %c5_262, %c0_263, %c0_264] : memref<2x8x8x20xf32, #tpu.memory_space<vmem>>, vector<2x1x1x20xf32>
    %227 = vector.shape_cast %226 : vector<2x1x1x20xf32> to vector<2x20xf32>
    %c35 = arith.constant 35 : index
    %c0_265 = arith.constant 0 : index
    %c0_266 = arith.constant 0 : index
    %228 = vector.load %arg4[%c35, %c0_265, %c0_266] : memref<49x20x100xf32, #tpu.memory_space<vmem>>, vector<1x20x100xf32>
    %229 = vector.shape_cast %228 : vector<1x20x100xf32> to vector<20x100xf32>
    %cst_267 = arith.constant dense<0.000000e+00> : vector<2x100xf32>
    %230 = tpu.matmul %227, %229, %cst_267 {dimension_numbers = #tpu.dot_dimension_numbers<[1], [0], [0], [1], [0, 0, 1, 1], [], []>} : vector<2x20xf32>, vector<20x100xf32>, vector<2x100xf32> -> vector<2x100xf32>
    %231 = arith.addf %225, %230 : vector<2x100xf32>
    %c0_268 = arith.constant 0 : index
    %c5_269 = arith.constant 5 : index
    %c1_270 = arith.constant 1 : index
    %c0_271 = arith.constant 0 : index
    %232 = vector.load %arg9[%c0_268, %c5_269, %c1_270, %c0_271] : memref<2x8x8x20xf32, #tpu.memory_space<vmem>>, vector<2x1x1x20xf32>
    %233 = vector.shape_cast %232 : vector<2x1x1x20xf32> to vector<2x20xf32>
    %c36 = arith.constant 36 : index
    %c0_272 = arith.constant 0 : index
    %c0_273 = arith.constant 0 : index
    %234 = vector.load %arg4[%c36, %c0_272, %c0_273] : memref<49x20x100xf32, #tpu.memory_space<vmem>>, vector<1x20x100xf32>
    %235 = vector.shape_cast %234 : vector<1x20x100xf32> to vector<20x100xf32>
    %cst_274 = arith.constant dense<0.000000e+00> : vector<2x100xf32>
    %236 = tpu.matmul %233, %235, %cst_274 {dimension_numbers = #tpu.dot_dimension_numbers<[1], [0], [0], [1], [0, 0, 1, 1], [], []>} : vector<2x20xf32>, vector<20x100xf32>, vector<2x100xf32> -> vector<2x100xf32>
    %237 = arith.addf %231, %236 : vector<2x100xf32>
    %c0_275 = arith.constant 0 : index
    %c5_276 = arith.constant 5 : index
    %c2_277 = arith.constant 2 : index
    %c0_278 = arith.constant 0 : index
    %238 = vector.load %arg9[%c0_275, %c5_276, %c2_277, %c0_278] : memref<2x8x8x20xf32, #tpu.memory_space<vmem>>, vector<2x1x1x20xf32>
    %239 = vector.shape_cast %238 : vector<2x1x1x20xf32> to vector<2x20xf32>
    %c37 = arith.constant 37 : index
    %c0_279 = arith.constant 0 : index
    %c0_280 = arith.constant 0 : index
    %240 = vector.load %arg4[%c37, %c0_279, %c0_280] : memref<49x20x100xf32, #tpu.memory_space<vmem>>, vector<1x20x100xf32>
    %241 = vector.shape_cast %240 : vector<1x20x100xf32> to vector<20x100xf32>
    %cst_281 = arith.constant dense<0.000000e+00> : vector<2x100xf32>
    %242 = tpu.matmul %239, %241, %cst_281 {dimension_numbers = #tpu.dot_dimension_numbers<[1], [0], [0], [1], [0, 0, 1, 1], [], []>} : vector<2x20xf32>, vector<20x100xf32>, vector<2x100xf32> -> vector<2x100xf32>
    %243 = arith.addf %237, %242 : vector<2x100xf32>
    %c0_282 = arith.constant 0 : index
    %c5_283 = arith.constant 5 : index
    %c3_284 = arith.constant 3 : index
    %c0_285 = arith.constant 0 : index
    %244 = vector.load %arg9[%c0_282, %c5_283, %c3_284, %c0_285] : memref<2x8x8x20xf32, #tpu.memory_space<vmem>>, vector<2x1x1x20xf32>
    %245 = vector.shape_cast %244 : vector<2x1x1x20xf32> to vector<2x20xf32>
    %c38 = arith.constant 38 : index
    %c0_286 = arith.constant 0 : index
    %c0_287 = arith.constant 0 : index
    %246 = vector.load %arg4[%c38, %c0_286, %c0_287] : memref<49x20x100xf32, #tpu.memory_space<vmem>>, vector<1x20x100xf32>
    %247 = vector.shape_cast %246 : vector<1x20x100xf32> to vector<20x100xf32>
    %cst_288 = arith.constant dense<0.000000e+00> : vector<2x100xf32>
    %248 = tpu.matmul %245, %247, %cst_288 {dimension_numbers = #tpu.dot_dimension_numbers<[1], [0], [0], [1], [0, 0, 1, 1], [], []>} : vector<2x20xf32>, vector<20x100xf32>, vector<2x100xf32> -> vector<2x100xf32>
    %249 = arith.addf %243, %248 : vector<2x100xf32>
    %c0_289 = arith.constant 0 : index
    %c5_290 = arith.constant 5 : index
    %c4_291 = arith.constant 4 : index
    %c0_292 = arith.constant 0 : index
    %250 = vector.load %arg9[%c0_289, %c5_290, %c4_291, %c0_292] : memref<2x8x8x20xf32, #tpu.memory_space<vmem>>, vector<2x1x1x20xf32>
    %251 = vector.shape_cast %250 : vector<2x1x1x20xf32> to vector<2x20xf32>
    %c39 = arith.constant 39 : index
    %c0_293 = arith.constant 0 : index
    %c0_294 = arith.constant 0 : index
    %252 = vector.load %arg4[%c39, %c0_293, %c0_294] : memref<49x20x100xf32, #tpu.memory_space<vmem>>, vector<1x20x100xf32>
    %253 = vector.shape_cast %252 : vector<1x20x100xf32> to vector<20x100xf32>
    %cst_295 = arith.constant dense<0.000000e+00> : vector<2x100xf32>
    %254 = tpu.matmul %251, %253, %cst_295 {dimension_numbers = #tpu.dot_dimension_numbers<[1], [0], [0], [1], [0, 0, 1, 1], [], []>} : vector<2x20xf32>, vector<20x100xf32>, vector<2x100xf32> -> vector<2x100xf32>
    %255 = arith.addf %249, %254 : vector<2x100xf32>
    %c0_296 = arith.constant 0 : index
    %c5_297 = arith.constant 5 : index
    %c5_298 = arith.constant 5 : index
    %c0_299 = arith.constant 0 : index
    %256 = vector.load %arg9[%c0_296, %c5_297, %c5_298, %c0_299] : memref<2x8x8x20xf32, #tpu.memory_space<vmem>>, vector<2x1x1x20xf32>
    %257 = vector.shape_cast %256 : vector<2x1x1x20xf32> to vector<2x20xf32>
    %c40 = arith.constant 40 : index
    %c0_300 = arith.constant 0 : index
    %c0_301 = arith.constant 0 : index
    %258 = vector.load %arg4[%c40, %c0_300, %c0_301] : memref<49x20x100xf32, #tpu.memory_space<vmem>>, vector<1x20x100xf32>
    %259 = vector.shape_cast %258 : vector<1x20x100xf32> to vector<20x100xf32>
    %cst_302 = arith.constant dense<0.000000e+00> : vector<2x100xf32>
    %260 = tpu.matmul %257, %259, %cst_302 {dimension_numbers = #tpu.dot_dimension_numbers<[1], [0], [0], [1], [0, 0, 1, 1], [], []>} : vector<2x20xf32>, vector<20x100xf32>, vector<2x100xf32> -> vector<2x100xf32>
    %261 = arith.addf %255, %260 : vector<2x100xf32>
    %c0_303 = arith.constant 0 : index
    %c5_304 = arith.constant 5 : index
    %c6_305 = arith.constant 6 : index
    %c0_306 = arith.constant 0 : index
    %262 = vector.load %arg9[%c0_303, %c5_304, %c6_305, %c0_306] : memref<2x8x8x20xf32, #tpu.memory_space<vmem>>, vector<2x1x1x20xf32>
    %263 = vector.shape_cast %262 : vector<2x1x1x20xf32> to vector<2x20xf32>
    %c41 = arith.constant 41 : index
    %c0_307 = arith.constant 0 : index
    %c0_308 = arith.constant 0 : index
    %264 = vector.load %arg4[%c41, %c0_307, %c0_308] : memref<49x20x100xf32, #tpu.memory_space<vmem>>, vector<1x20x100xf32>
    %265 = vector.shape_cast %264 : vector<1x20x100xf32> to vector<20x100xf32>
    %cst_309 = arith.constant dense<0.000000e+00> : vector<2x100xf32>
    %266 = tpu.matmul %263, %265, %cst_309 {dimension_numbers = #tpu.dot_dimension_numbers<[1], [0], [0], [1], [0, 0, 1, 1], [], []>} : vector<2x20xf32>, vector<20x100xf32>, vector<2x100xf32> -> vector<2x100xf32>
    %267 = arith.addf %261, %266 : vector<2x100xf32>
    %c0_310 = arith.constant 0 : index
    %c6_311 = arith.constant 6 : index
    %c0_312 = arith.constant 0 : index
    %c0_313 = arith.constant 0 : index
    %268 = vector.load %arg9[%c0_310, %c6_311, %c0_312, %c0_313] : memref<2x8x8x20xf32, #tpu.memory_space<vmem>>, vector<2x1x1x20xf32>
    %269 = vector.shape_cast %268 : vector<2x1x1x20xf32> to vector<2x20xf32>
    %c42 = arith.constant 42 : index
    %c0_314 = arith.constant 0 : index
    %c0_315 = arith.constant 0 : index
    %270 = vector.load %arg4[%c42, %c0_314, %c0_315] : memref<49x20x100xf32, #tpu.memory_space<vmem>>, vector<1x20x100xf32>
    %271 = vector.shape_cast %270 : vector<1x20x100xf32> to vector<20x100xf32>
    %cst_316 = arith.constant dense<0.000000e+00> : vector<2x100xf32>
    %272 = tpu.matmul %269, %271, %cst_316 {dimension_numbers = #tpu.dot_dimension_numbers<[1], [0], [0], [1], [0, 0, 1, 1], [], []>} : vector<2x20xf32>, vector<20x100xf32>, vector<2x100xf32> -> vector<2x100xf32>
    %273 = arith.addf %267, %272 : vector<2x100xf32>
    %c0_317 = arith.constant 0 : index
    %c6_318 = arith.constant 6 : index
    %c1_319 = arith.constant 1 : index
    %c0_320 = arith.constant 0 : index
    %274 = vector.load %arg9[%c0_317, %c6_318, %c1_319, %c0_320] : memref<2x8x8x20xf32, #tpu.memory_space<vmem>>, vector<2x1x1x20xf32>
    %275 = vector.shape_cast %274 : vector<2x1x1x20xf32> to vector<2x20xf32>
    %c43 = arith.constant 43 : index
    %c0_321 = arith.constant 0 : index
    %c0_322 = arith.constant 0 : index
    %276 = vector.load %arg4[%c43, %c0_321, %c0_322] : memref<49x20x100xf32, #tpu.memory_space<vmem>>, vector<1x20x100xf32>
    %277 = vector.shape_cast %276 : vector<1x20x100xf32> to vector<20x100xf32>
    %cst_323 = arith.constant dense<0.000000e+00> : vector<2x100xf32>
    %278 = tpu.matmul %275, %277, %cst_323 {dimension_numbers = #tpu.dot_dimension_numbers<[1], [0], [0], [1], [0, 0, 1, 1], [], []>} : vector<2x20xf32>, vector<20x100xf32>, vector<2x100xf32> -> vector<2x100xf32>
    %279 = arith.addf %273, %278 : vector<2x100xf32>
    %c0_324 = arith.constant 0 : index
    %c6_325 = arith.constant 6 : index
    %c2_326 = arith.constant 2 : index
    %c0_327 = arith.constant 0 : index
    %280 = vector.load %arg9[%c0_324, %c6_325, %c2_326, %c0_327] : memref<2x8x8x20xf32, #tpu.memory_space<vmem>>, vector<2x1x1x20xf32>
    %281 = vector.shape_cast %280 : vector<2x1x1x20xf32> to vector<2x20xf32>
    %c44 = arith.constant 44 : index
    %c0_328 = arith.constant 0 : index
    %c0_329 = arith.constant 0 : index
    %282 = vector.load %arg4[%c44, %c0_328, %c0_329] : memref<49x20x100xf32, #tpu.memory_space<vmem>>, vector<1x20x100xf32>
    %283 = vector.shape_cast %282 : vector<1x20x100xf32> to vector<20x100xf32>
    %cst_330 = arith.constant dense<0.000000e+00> : vector<2x100xf32>
    %284 = tpu.matmul %281, %283, %cst_330 {dimension_numbers = #tpu.dot_dimension_numbers<[1], [0], [0], [1], [0, 0, 1, 1], [], []>} : vector<2x20xf32>, vector<20x100xf32>, vector<2x100xf32> -> vector<2x100xf32>
    %285 = arith.addf %279, %284 : vector<2x100xf32>
    %c0_331 = arith.constant 0 : index
    %c6_332 = arith.constant 6 : index
    %c3_333 = arith.constant 3 : index
    %c0_334 = arith.constant 0 : index
    %286 = vector.load %arg9[%c0_331, %c6_332, %c3_333, %c0_334] : memref<2x8x8x20xf32, #tpu.memory_space<vmem>>, vector<2x1x1x20xf32>
    %287 = vector.shape_cast %286 : vector<2x1x1x20xf32> to vector<2x20xf32>
    %c45 = arith.constant 45 : index
    %c0_335 = arith.constant 0 : index
    %c0_336 = arith.constant 0 : index
    %288 = vector.load %arg4[%c45, %c0_335, %c0_336] : memref<49x20x100xf32, #tpu.memory_space<vmem>>, vector<1x20x100xf32>
    %289 = vector.shape_cast %288 : vector<1x20x100xf32> to vector<20x100xf32>
    %cst_337 = arith.constant dense<0.000000e+00> : vector<2x100xf32>
    %290 = tpu.matmul %287, %289, %cst_337 {dimension_numbers = #tpu.dot_dimension_numbers<[1], [0], [0], [1], [0, 0, 1, 1], [], []>} : vector<2x20xf32>, vector<20x100xf32>, vector<2x100xf32> -> vector<2x100xf32>
    %291 = arith.addf %285, %290 : vector<2x100xf32>
    %c0_338 = arith.constant 0 : index
    %c6_339 = arith.constant 6 : index
    %c4_340 = arith.constant 4 : index
    %c0_341 = arith.constant 0 : index
    %292 = vector.load %arg9[%c0_338, %c6_339, %c4_340, %c0_341] : memref<2x8x8x20xf32, #tpu.memory_space<vmem>>, vector<2x1x1x20xf32>
    %293 = vector.shape_cast %292 : vector<2x1x1x20xf32> to vector<2x20xf32>
    %c46 = arith.constant 46 : index
    %c0_342 = arith.constant 0 : index
    %c0_343 = arith.constant 0 : index
    %294 = vector.load %arg4[%c46, %c0_342, %c0_343] : memref<49x20x100xf32, #tpu.memory_space<vmem>>, vector<1x20x100xf32>
    %295 = vector.shape_cast %294 : vector<1x20x100xf32> to vector<20x100xf32>
    %cst_344 = arith.constant dense<0.000000e+00> : vector<2x100xf32>
    %296 = tpu.matmul %293, %295, %cst_344 {dimension_numbers = #tpu.dot_dimension_numbers<[1], [0], [0], [1], [0, 0, 1, 1], [], []>} : vector<2x20xf32>, vector<20x100xf32>, vector<2x100xf32> -> vector<2x100xf32>
    %297 = arith.addf %291, %296 : vector<2x100xf32>
    %c0_345 = arith.constant 0 : index
    %c6_346 = arith.constant 6 : index
    %c5_347 = arith.constant 5 : index
    %c0_348 = arith.constant 0 : index
    %298 = vector.load %arg9[%c0_345, %c6_346, %c5_347, %c0_348] : memref<2x8x8x20xf32, #tpu.memory_space<vmem>>, vector<2x1x1x20xf32>
    %299 = vector.shape_cast %298 : vector<2x1x1x20xf32> to vector<2x20xf32>
    %c47 = arith.constant 47 : index
    %c0_349 = arith.constant 0 : index
    %c0_350 = arith.constant 0 : index
    %300 = vector.load %arg4[%c47, %c0_349, %c0_350] : memref<49x20x100xf32, #tpu.memory_space<vmem>>, vector<1x20x100xf32>
    %301 = vector.shape_cast %300 : vector<1x20x100xf32> to vector<20x100xf32>
    %cst_351 = arith.constant dense<0.000000e+00> : vector<2x100xf32>
    %302 = tpu.matmul %299, %301, %cst_351 {dimension_numbers = #tpu.dot_dimension_numbers<[1], [0], [0], [1], [0, 0, 1, 1], [], []>} : vector<2x20xf32>, vector<20x100xf32>, vector<2x100xf32> -> vector<2x100xf32>
    %303 = arith.addf %297, %302 : vector<2x100xf32>
    %c0_352 = arith.constant 0 : index
    %c6_353 = arith.constant 6 : index
    %c6_354 = arith.constant 6 : index
    %c0_355 = arith.constant 0 : index
    %304 = vector.load %arg9[%c0_352, %c6_353, %c6_354, %c0_355] : memref<2x8x8x20xf32, #tpu.memory_space<vmem>>, vector<2x1x1x20xf32>
    %305 = vector.shape_cast %304 : vector<2x1x1x20xf32> to vector<2x20xf32>
    %c48 = arith.constant 48 : index
    %c0_356 = arith.constant 0 : index
    %c0_357 = arith.constant 0 : index
    %306 = vector.load %arg4[%c48, %c0_356, %c0_357] : memref<49x20x100xf32, #tpu.memory_space<vmem>>, vector<1x20x100xf32>
    %307 = vector.shape_cast %306 : vector<1x20x100xf32> to vector<20x100xf32>
    %cst_358 = arith.constant dense<0.000000e+00> : vector<2x100xf32>
    %308 = tpu.matmul %305, %307, %cst_358 {dimension_numbers = #tpu.dot_dimension_numbers<[1], [0], [0], [1], [0, 0, 1, 1], [], []>} : vector<2x20xf32>, vector<20x100xf32>, vector<2x100xf32> -> vector<2x100xf32>
    %309 = arith.addf %303, %308 : vector<2x100xf32>
    %c0_359 = arith.constant 0 : index
    %c0_360 = arith.constant 0 : index
    %310 = vector.load %arg5[%c0_359, %c0_360] : memref<1x100xf32, #tpu.memory_space<vmem>>, vector<1x100xf32>
    %311 = vector.broadcast %310 : vector<1x100xf32> to vector<2x100xf32>
    %312 = arith.addf %309, %311 : vector<2x100xf32>
    %cst_361 = arith.constant 0.000000e+00 : f32
    %313 = vector.broadcast %cst_361 : f32 to vector<2x100xf32>
    %314 = arith.maximumf %312, %313 : vector<2x100xf32>
    %c0_362 = arith.constant 0 : index
    %c0_363 = arith.constant 0 : index
    %315 = vector.load %arg6[%c0_362, %c0_363] : memref<100x10xf32, #tpu.memory_space<vmem>>, vector<100x10xf32>
    %cst_364 = arith.constant dense<0.000000e+00> : vector<2x10xf32>
    %316 = tpu.matmul %314, %315, %cst_364 {dimension_numbers = #tpu.dot_dimension_numbers<[1], [0], [0], [1], [0, 0, 1, 1], [], []>} : vector<2x100xf32>, vector<100x10xf32>, vector<2x10xf32> -> vector<2x10xf32>
    %c0_365 = arith.constant 0 : index
    %c0_366 = arith.constant 0 : index
    %317 = vector.load %arg7[%c0_365, %c0_366] : memref<1x10xf32, #tpu.memory_space<vmem>>, vector<1x10xf32>
    %318 = vector.broadcast %317 : vector<1x10xf32> to vector<2x10xf32>
    %319 = arith.addf %316, %318 : vector<2x10xf32>
    %cst_367 = arith.constant dense<0xFF800000> : vector<2xf32>
    %320 = vector.multi_reduction <maximumf>, %319, %cst_367 [1] : vector<2x10xf32> to vector<2xf32>
    %321 = vector.shape_cast %320 : vector<2xf32> to vector<2x1xf32>
    %322 = vector.broadcast %321 : vector<2x1xf32> to vector<2x10xf32>
    %323 = arith.subf %319, %322 : vector<2x10xf32>
    %324 = math.exp %323 : vector<2x10xf32>
    %cst_368 = arith.constant dense<0.000000e+00> : vector<2xf32>
    %325 = vector.multi_reduction <add>, %324, %cst_368 [1] : vector<2x10xf32> to vector<2xf32>
    %326 = vector.shape_cast %325 : vector<2xf32> to vector<2x1xf32>
    %327 = math.log %326 : vector<2x1xf32>
    %328 = vector.broadcast %327 : vector<2x1xf32> to vector<2x10xf32>
    %329 = arith.subf %323, %328 : vector<2x10xf32>
    %c0_369 = arith.constant 0 : index
    %c0_370 = arith.constant 0 : index
    %330 = vector.load %arg8[%c0_369, %c0_370] : memref<2x10xf32, #tpu.memory_space<vmem>>, vector<2x10xf32>
    tpu.vector_store %arg8[%c0_369, %c0_370], %329 {strides = array<i32>} : memref<2x10xf32, #tpu.memory_space<vmem>>, vector<2x10xf32>,
    return
  }
  func.func @transform_0(%arg0: i32) -> (i32, i32, i32, i32) {
    %c0_i32 = arith.constant 0 : i32
    %c0_i32_0 = arith.constant 0 : i32
    %c0_i32_1 = arith.constant 0 : i32
    %c0_i32_2 = arith.constant 0 : i32
    return %arg0, %c0_i32, %c0_i32_0, %c0_i32_1 : i32, i32, i32, i32
  }
  func.func @transform_1(%arg0: i32) -> (i32, i32) {
    %c0_i32 = arith.constant 0 : i32
    %c0_i32_0 = arith.constant 0 : i32
    %c0_i32_1 = arith.constant 0 : i32
    return %c0_i32, %c0_i32_0 : i32, i32
  }
  func.func @transform_2(%arg0: i32) -> (i32, i32) {
    %c0_i32 = arith.constant 0 : i32
    %c0_i32_0 = arith.constant 0 : i32
    %c0_i32_1 = arith.constant 0 : i32
    return %c0_i32, %c0_i32_0 : i32, i32
  }
  func.func @transform_3(%arg0: i32) -> (i32, i32, i32) {
    %c0_i32 = arith.constant 0 : i32
    %c0_i32_0 = arith.constant 0 : i32
    %c0_i32_1 = arith.constant 0 : i32
    %c0_i32_2 = arith.constant 0 : i32
    return %c0_i32, %c0_i32_0, %c0_i32_1 : i32, i32, i32
  }
  func.func @transform_4(%arg0: i32) -> (i32, i32) {
    %c0_i32 = arith.constant 0 : i32
    %c0_i32_0 = arith.constant 0 : i32
    %c0_i32_1 = arith.constant 0 : i32
    return %c0_i32, %c0_i32_0 : i32, i32
  }
  func.func @transform_5(%arg0: i32) -> (i32, i32) {
    %c0_i32 = arith.constant 0 : i32
    %c0_i32_0 = arith.constant 0 : i32
    %c0_i32_1 = arith.constant 0 : i32
    return %c0_i32, %c0_i32_0 : i32, i32
  }
  func.func @transform_6(%arg0: i32) -> (i32, i32) {
    %c0_i32 = arith.constant 0 : i32
    %c0_i32_0 = arith.constant 0 : i32
    %c0_i32_1 = arith.constant 0 : i32
    return %c0_i32, %c0_i32_0 : i32, i32
  }
  func.func @transform_7(%arg0: i32) -> (i32, i32) {
    %c0_i32 = arith.constant 0 : i32
    %c0_i32_0 = arith.constant 0 : i32
    return %arg0, %c0_i32 : i32, i32
  }
}

</mosaic_0001>

<llo_original>
// kernel: model_one_forward.1
$region0: #{model_one_forward.1}
  #allocation0 [shape = 'u32[]', space=smem, size = 0x4, offset = 0x4, fixed_abs, tag = 'smem constant byte address 0x4 - core index']
  #allocation1 [shape = 'u32[72,128]{1,0:T(1,128)}', space=vmem, size = 0x9000, scoped, tag = 'internal scratch']
  #allocation2 [shape = 'f32[2,8,8,20]{3,2,1,0:T(8,128)}', space=vmem, size = 0x10000, scoped, tag = 'scratch operand']
  %s0 = inlined_call_operand.vmem [shape: f32[2,16,16,100], index: 0, kind: input, shape index: {}]
  %s1 = inlined_call_operand.vmem [shape: f32[100,20], index: 1, kind: input, shape index: {}]
  %s2 = inlined_call_operand.vmem [shape: f32[1,20], index: 2, kind: input, shape index: {}]
  %s3 = inlined_call_operand.vmem [shape: f32[49,20,100], index: 3, kind: input, shape index: {}]
  %s4 = inlined_call_operand.vmem [shape: f32[1,100], index: 4, kind: input, shape index: {}]
  %s5 = inlined_call_operand.vmem [shape: f32[100,10], index: 5, kind: input, shape index: {}]
  %s6 = inlined_call_operand.vmem [shape: f32[1,10], index: 6, kind: input, shape index: {}]
  %s7 = inlined_call_operand.hbm [shape: f32[2,10], index: 7, kind: output, shape index: {}]
  %s8 = sld [smem:[#allocation0]]
  $region38: #{model_one_forward.1} parent=0
    _
  %s10 = ssub.s32 1, %s8
  %s11 = scalar_select 0, %s10, %s8
  $region1: #{model_one_forward.1} parent=0
    #allocation3 [shape = 'u8[1024]{0}', space=vmem, size = 0x400, scoped, tag = 'output window, operand 0, single buffered']
    #allocation4 [shape = 's32[1]{0}', space=sflag, size = 0x4, scoped, tag = 'scoped memory for model_one_forward.1']
    %12 = vsyncpa [#allocation4], 0
    // Predicated region
    $region2: #{model_one_forward.1} parent=1 // pred_check
      _
    $region3: #{model_one_forward.1} parent=1 // pred_check_branch
      %14 = sbr.rel (0) target = $region5
    $region4: #{model_one_forward.1} parent=1 // pred_region
      _
    $region5: #{model_one_forward.1} parent=1 // pred_fallthru
      _
    // Predicated region
    $region6: #{model_one_forward.1} parent=1 // pred_check
      _
    $region7: #{model_one_forward.1} parent=1 // pred_check_branch
      %16 = sbr.rel (0) target = $region9
    $region8: #{model_one_forward.1} parent=1 // pred_region
      _
    $region9: #{model_one_forward.1} parent=1 // pred_fallthru
      _
    // Predicated region
    $region10: #{model_one_forward.1} parent=1 // pred_check
      _
    $region11: #{model_one_forward.1} parent=1 // pred_check_branch
      %18 = sbr.rel (0) target = $region13
    $region12: #{model_one_forward.1} parent=1 // pred_region
      _
    $region13: #{model_one_forward.1} parent=1 // pred_fallthru
      _
    // Predicated region
    $region14: #{model_one_forward.1} parent=1 // pred_check
      _
    $region15: #{model_one_forward.1} parent=1 // pred_check_branch
      %20 = sbr.rel (0) target = $region17
    $region16: #{model_one_forward.1} parent=1 // pred_region
      _
    $region17: #{model_one_forward.1} parent=1 // pred_fallthru
      _
    // Predicated region
    $region18: #{model_one_forward.1} parent=1 // pred_check
      _
    $region19: #{model_one_forward.1} parent=1 // pred_check_branch
      %22 = sbr.rel (0) target = $region21
    $region20: #{model_one_forward.1} parent=1 // pred_region
      _
    $region21: #{model_one_forward.1} parent=1 // pred_fallthru
      _
    // Predicated region
    $region22: #{model_one_forward.1} parent=1 // pred_check
      _
    $region23: #{model_one_forward.1} parent=1 // pred_check_branch
      %24 = sbr.rel (0) target = $region25
    $region24: #{model_one_forward.1} parent=1 // pred_region
      _
    $region25: #{model_one_forward.1} parent=1 // pred_fallthru
      _
    // Predicated region
    $region26: #{model_one_forward.1} parent=1 // pred_check
      _
    $region27: #{model_one_forward.1} parent=1 // pred_check_branch
      %26 = sbr.rel (0) target = $region29
    $region28: #{model_one_forward.1} parent=1 // pred_region
      _
    $region29: #{model_one_forward.1} parent=1 // pred_fallthru
      _
    %v27 = vld [vmem:[%s0] sm:$0xff]
    %v28 = vld [vmem:[%s0 + $0x8] sm:$0xff]
    %v29 = vld [vmem:[%s0 + $0x10] sm:$0xff]
    %v30 = vld [vmem:[%s0 + $0x18] sm:$0xff]
    %v31 = vld [vmem:[%s0 + $0x20] sm:$0xff]
    %v32 = vld [vmem:[%s0 + $0x28] sm:$0xff]
    %v33 = vld [vmem:[%s0 + $0x30] sm:$0xff]
    %v34 = vld [vmem:[%s0 + $0x38] sm:$0xff]
    %v35 = vld [vmem:[%s0 + $0x40] sm:$0xff]
    %v36 = vld [vmem:[%s0 + $0x48] sm:$0xff]
    %v37 = vld [vmem:[%s0 + $0x50] sm:$0xff]
    %v38 = vld [vmem:[%s0 + $0x58] sm:$0xff]
    %v39 = vld [vmem:[%s0 + $0x60] sm:$0xff]
    %v40 = vld [vmem:[%s0 + $0x68] sm:$0xff]
    %v41 = vld [vmem:[%s0 + $0x70] sm:$0xff]
    %v42 = vld [vmem:[%s0 + $0x78] sm:$0xff]
    %v43 = vld [vmem:[%s0 + $0x80] sm:$0xff]
    %v44 = vld [vmem:[%s0 + $0x88] sm:$0xff]
    %v45 = vld [vmem:[%s0 + $0x90] sm:$0xff]
    %v46 = vld [vmem:[%s0 + $0x98] sm:$0xff]
    %v47 = vld [vmem:[%s0 + $0xa0] sm:$0xff]
    %v48 = vld [vmem:[%s0 + $0xa8] sm:$0xff]
    %v49 = vld [vmem:[%s0 + $0xb0] sm:$0xff]
    %v50 = vld [vmem:[%s0 + $0xb8] sm:$0xff]
    %v51 = vld [vmem:[%s0 + $0xc0] sm:$0xff]
    %v52 = vld [vmem:[%s0 + $0xc8] sm:$0xff]
    %v53 = vld [vmem:[%s0 + $0xd0] sm:$0xff]
    %v54 = vld [vmem:[%s0 + $0xd8] sm:$0xff]
    %v55 = vld [vmem:[%s0 + $0xe0] sm:$0xff]
    %v56 = vld [vmem:[%s0 + $0xe8] sm:$0xff]
    %v57 = vld [vmem:[%s0 + $0xf0] sm:$0xff]
    %v58 = vld [vmem:[%s0 + $0xf8] sm:$0xff]
    %v59 = vld [vmem:[%s0 + $0x100] sm:$0xff]
    %v60 = vld [vmem:[%s0 + $0x108] sm:$0xff]
    %v61 = vld [vmem:[%s0 + $0x110] sm:$0xff]
    %v62 = vld [vmem:[%s0 + $0x118] sm:$0xff]
    %v63 = vld [vmem:[%s0 + $0x120] sm:$0xff]
    %v64 = vld [vmem:[%s0 + $0x128] sm:$0xff]
    %v65 = vld [vmem:[%s0 + $0x130] sm:$0xff]
    %v66 = vld [vmem:[%s0 + $0x138] sm:$0xff]
    %v67 = vld [vmem:[%s0 + $0x140] sm:$0xff]
    %v68 = vld [vmem:[%s0 + $0x148] sm:$0xff]
    %v69 = vld [vmem:[%s0 + $0x150] sm:$0xff]
    %v70 = vld [vmem:[%s0 + $0x158] sm:$0xff]
    %v71 = vld [vmem:[%s0 + $0x160] sm:$0xff]
    %v72 = vld [vmem:[%s0 + $0x168] sm:$0xff]
    %v73 = vld [vmem:[%s0 + $0x170] sm:$0xff]
    %v74 = vld [vmem:[%s0 + $0x178] sm:$0xff]
    %v75 = vld [vmem:[%s0 + $0x180] sm:$0xff]
    %v76 = vld [vmem:[%s0 + $0x188] sm:$0xff]
    %v77 = vld [vmem:[%s0 + $0x190] sm:$0xff]
    %v78 = vld [vmem:[%s0 + $0x198] sm:$0xff]
    %v79 = vld [vmem:[%s0 + $0x1a0] sm:$0xff]
    %v80 = vld [vmem:[%s0 + $0x1a8] sm:$0xff]
    %v81 = vld [vmem:[%s0 + $0x1b0] sm:$0xff]
    %v82 = vld [vmem:[%s0 + $0x1b8] sm:$0xff]
    %v83 = vld [vmem:[%s0 + $0x1c0] sm:$0xff]
    %v84 = vld [vmem:[%s0 + $0x1c8] sm:$0xff]
    %v85 = vld [vmem:[%s0 + $0x1d0] sm:$0xff]
    %v86 = vld [vmem:[%s0 + $0x1d8] sm:$0xff]
    %v87 = vld [vmem:[%s0 + $0x1e0] sm:$0xff]
    %v88 = vld [vmem:[%s0 + $0x1e8] sm:$0xff]
    %v89 = vld [vmem:[%s0 + $0x1f0] sm:$0xff]
    %v90 = vld [vmem:[%s0 + $0x1f8] sm:$0xff]
    %v91 = vld [vmem:[%s1] sm:$0xff]
    %v92 = vld [vmem:[%s1 + $0x8] sm:$0xff]
    %v93 = vld [vmem:[%s1 + $0x10] sm:$0xff]
    %v94 = vld [vmem:[%s1 + $0x18] sm:$0xff]
    %v95 = vld [vmem:[%s1 + $0x20] sm:$0xff]
    %v96 = vld [vmem:[%s1 + $0x28] sm:$0xff]
    %v97 = vld [vmem:[%s1 + $0x30] sm:$0xff]
    %v98 = vld [vmem:[%s1 + $0x38] sm:$0xff]
    %v99 = vld [vmem:[%s1 + $0x40] sm:$0xff]
    %v100 = vld [vmem:[%s1 + $0x48] sm:$0xff]
    %v101 = vld [vmem:[%s1 + $0x50] sm:$0xff]
    %v102 = vld [vmem:[%s1 + $0x58] sm:$0xff]
    %v103 = vld [vmem:[%s1 + $0x60] sm:$0xf]
    %v104 = vld [vmem:[%s2] sm:$0x1]
    %v106 = vperm.slane %v104, 0
    %vm108 = vcmask 818176
    %v110 = vsel %vm108, %v27, 0
    %v113 = vsel %vm108, %v28, 0
    %v116 = vsel %vm108, %v29, 0
    %v119 = vsel %vm108, %v30, 0
    %v122 = vsel %vm108, %v31, 0
    %v125 = vsel %vm108, %v32, 0
    %v128 = vsel %vm108, %v33, 0
    %v131 = vsel %vm108, %v34, 0
    %v134 = vsel %vm108, %v35, 0
    %v137 = vsel %vm108, %v36, 0
    %v140 = vsel %vm108, %v37, 0
    %v143 = vsel %vm108, %v38, 0
    %v146 = vsel %vm108, %v39, 0
    %v149 = vsel %vm108, %v40, 0
    %v152 = vsel %vm108, %v41, 0
    %v155 = vsel %vm108, %v42, 0
    %v158 = vsel %vm108, %v43, 0
    %v161 = vsel %vm108, %v44, 0
    %v164 = vsel %vm108, %v45, 0
    %v167 = vsel %vm108, %v46, 0
    %v170 = vsel %vm108, %v47, 0
    %v173 = vsel %vm108, %v48, 0
    %v176 = vsel %vm108, %v49, 0
    %v179 = vsel %vm108, %v50, 0
    %v182 = vsel %vm108, %v51, 0
    %v185 = vsel %vm108, %v52, 0
    %v188 = vsel %vm108, %v53, 0
    %v191 = vsel %vm108, %v54, 0
    %v194 = vsel %vm108, %v55, 0
    %v197 = vsel %vm108, %v56, 0
    %v200 = vsel %vm108, %v57, 0
    %v203 = vsel %vm108, %v58, 0
    %v206 = vsel %vm108, %v59, 0
    %v209 = vsel %vm108, %v60, 0
    %v212 = vsel %vm108, %v61, 0
    %v215 = vsel %vm108, %v62, 0
    %v218 = vsel %vm108, %v63, 0
    %v221 = vsel %vm108, %v64, 0
    %v224 = vsel %vm108, %v65, 0
    %v227 = vsel %vm108, %v66, 0
    %v230 = vsel %vm108, %v67, 0
    %v233 = vsel %vm108, %v68, 0
    %v236 = vsel %vm108, %v69, 0
    %v239 = vsel %vm108, %v70, 0
    %v242 = vsel %vm108, %v71, 0
    %v245 = vsel %vm108, %v72, 0
    %v248 = vsel %vm108, %v73, 0
    %v251 = vsel %vm108, %v74, 0
    %v254 = vsel %vm108, %v75, 0
    %v257 = vsel %vm108, %v76, 0
    %v260 = vsel %vm108, %v77, 0
    %v263 = vsel %vm108, %v78, 0
    %v266 = vsel %vm108, %v79, 0
    %v269 = vsel %vm108, %v80, 0
    %v272 = vsel %vm108, %v81, 0
    %v275 = vsel %vm108, %v82, 0
    %v278 = vsel %vm108, %v83, 0
    %v281 = vsel %vm108, %v84, 0
    %v284 = vsel %vm108, %v85, 0
    %v287 = vsel %vm108, %v86, 0
    %v290 = vsel %vm108, %v87, 0
    %v293 = vsel %vm108, %v88, 0
    %v296 = vsel %vm108, %v89, 0
    %v299 = vsel %vm108, %v90, 0
    %vm301 = vcmask 1043456
    %v303 = vsel %vm301, %v103, 0
    %305 = vmatpush.msra.mxu0 0.0
    %306 = vmatpush.msra.mxu0 0.0
    %307 = vmatpush.msra.mxu0 0.0
    %308 = vmatpush.msra.mxu0 %v303
    %309 = vmatpush.msra.mxu0 %v102
    %310 = vmatpush.msra.mxu0 %v101
    %311 = vmatpush.msra.mxu0 %v100
    %312 = vmatpush.msra.mxu0 %v99
    %313 = vmatpush.msra.mxu0 %v98
    %314 = vmatpush.msra.mxu0 %v97
    %315 = vmatpush.msra.mxu0 %v96
    %316 = vmatpush.msra.mxu0 %v95
    %317 = vmatpush.msra.mxu0 %v94
    %318 = vmatpush.msra.mxu0 %v93
    %319 = vmatpush.msra.mxu0 %v92
    %320 = vmatpush.msra.mxu0 %v91
    %321 = vmatmul.f32.gmra.mxu0 %v110
    %v322 = vpop.f32.mrf.mxu0
    %v323 = vadd.f32 %v106, %v322
    %324 = vmatmul.f32.gmra.mxu0 %v113
    %v325 = vpop.f32.mrf.mxu0
    %v326 = vadd.f32 %v106, %v325
    %327 = vmatmul.f32.gmra.mxu0 %v116
    %v328 = vpop.f32.mrf.mxu0
    %v329 = vadd.f32 %v106, %v328
    %330 = vmatmul.f32.gmra.mxu0 %v119
    %v331 = vpop.f32.mrf.mxu0
    %v332 = vadd.f32 %v106, %v331
    %333 = vmatmul.f32.gmra.mxu0 %v122
    %v334 = vpop.f32.mrf.mxu0
    %v335 = vadd.f32 %v106, %v334
    %336 = vmatmul.f32.gmra.mxu0 %v125
    %v337 = vpop.f32.mrf.mxu0
    %v338 = vadd.f32 %v106, %v337
    %339 = vmatmul.f32.gmra.mxu0 %v128
    %v340 = vpop.f32.mrf.mxu0
    %v341 = vadd.f32 %v106, %v340
    %342 = vmatmul.f32.gmra.mxu0 %v131
    %v343 = vpop.f32.mrf.mxu0
    %v344 = vadd.f32 %v106, %v343
    %345 = vmatmul.f32.gmra.mxu0 %v134
    %v346 = vpop.f32.mrf.mxu0
    %v347 = vadd.f32 %v106, %v346
    %348 = vmatmul.f32.gmra.mxu0 %v137
    %v349 = vpop.f32.mrf.mxu0
    %v350 = vadd.f32 %v106, %v349
    %351 = vmatmul.f32.gmra.mxu0 %v140
    %v352 = vpop.f32.mrf.mxu0
    %v353 = vadd.f32 %v106, %v352
    %354 = vmatmul.f32.gmra.mxu0 %v143
    %v355 = vpop.f32.mrf.mxu0
    %v356 = vadd.f32 %v106, %v355
    %357 = vmatmul.f32.gmra.mxu0 %v146
    %v358 = vpop.f32.mrf.mxu0
    %v359 = vadd.f32 %v106, %v358
    %360 = vmatmul.f32.gmra.mxu0 %v149
    %v361 = vpop.f32.mrf.mxu0
    %v362 = vadd.f32 %v106, %v361
    %363 = vmatmul.f32.gmra.mxu0 %v152
    %v364 = vpop.f32.mrf.mxu0
    %v365 = vadd.f32 %v106, %v364
    %366 = vmatmul.f32.gmra.mxu0 %v155
    %v367 = vpop.f32.mrf.mxu0
    %v368 = vadd.f32 %v106, %v367
    %369 = vmatmul.f32.gmra.mxu0 %v158
    %v370 = vpop.f32.mrf.mxu0
    %v371 = vadd.f32 %v106, %v370
    %372 = vmatmul.f32.gmra.mxu0 %v161
    %v373 = vpop.f32.mrf.mxu0
    %v374 = vadd.f32 %v106, %v373
    %375 = vmatmul.f32.gmra.mxu0 %v164
    %v376 = vpop.f32.mrf.mxu0
    %v377 = vadd.f32 %v106, %v376
    %378 = vmatmul.f32.gmra.mxu0 %v167
    %v379 = vpop.f32.mrf.mxu0
    %v380 = vadd.f32 %v106, %v379
    %381 = vmatmul.f32.gmra.mxu0 %v170
    %v382 = vpop.f32.mrf.mxu0
    %v383 = vadd.f32 %v106, %v382
    %384 = vmatmul.f32.gmra.mxu0 %v173
    %v385 = vpop.f32.mrf.mxu0
    %v386 = vadd.f32 %v106, %v385
    %387 = vmatmul.f32.gmra.mxu0 %v176
    %v388 = vpop.f32.mrf.mxu0
    %v389 = vadd.f32 %v106, %v388
    %390 = vmatmul.f32.gmra.mxu0 %v179
    %v391 = vpop.f32.mrf.mxu0
    %v392 = vadd.f32 %v106, %v391
    %393 = vmatmul.f32.gmra.mxu0 %v182
    %v394 = vpop.f32.mrf.mxu0
    %v395 = vadd.f32 %v106, %v394
    %396 = vmatmul.f32.gmra.mxu0 %v185
    %v397 = vpop.f32.mrf.mxu0
    %v398 = vadd.f32 %v106, %v397
    %399 = vmatmul.f32.gmra.mxu0 %v188
    %v400 = vpop.f32.mrf.mxu0
    %v401 = vadd.f32 %v106, %v400
    %402 = vmatmul.f32.gmra.mxu0 %v191
    %v403 = vpop.f32.mrf.mxu0
    %v404 = vadd.f32 %v106, %v403
    %405 = vmatmul.f32.gmra.mxu0 %v194
    %v406 = vpop.f32.mrf.mxu0
    %v407 = vadd.f32 %v106, %v406
    %408 = vmatmul.f32.gmra.mxu0 %v197
    %v409 = vpop.f32.mrf.mxu0
    %v410 = vadd.f32 %v106, %v409
    %411 = vmatmul.f32.gmra.mxu0 %v200
    %v412 = vpop.f32.mrf.mxu0
    %v413 = vadd.f32 %v106, %v412
    %414 = vmatmul.f32.gmra.mxu0 %v203
    %v415 = vpop.f32.mrf.mxu0
    %v416 = vadd.f32 %v106, %v415
    %417 = vmatmul.f32.gmra.mxu0 %v206
    %v418 = vpop.f32.mrf.mxu0
    %v419 = vadd.f32 %v106, %v418
    %420 = vmatmul.f32.gmra.mxu0 %v209
    %v421 = vpop.f32.mrf.mxu0
    %v422 = vadd.f32 %v106, %v421
    %423 = vmatmul.f32.gmra.mxu0 %v212
    %v424 = vpop.f32.mrf.mxu0
    %v425 = vadd.f32 %v106, %v424
    %426 = vmatmul.f32.gmra.mxu0 %v215
    %v427 = vpop.f32.mrf.mxu0
    %v428 = vadd.f32 %v106, %v427
    %429 = vmatmul.f32.gmra.mxu0 %v218
    %v430 = vpop.f32.mrf.mxu0
    %v431 = vadd.f32 %v106, %v430
    %432 = vmatmul.f32.gmra.mxu0 %v221
    %v433 = vpop.f32.mrf.mxu0
    %v434 = vadd.f32 %v106, %v433
    %435 = vmatmul.f32.gmra.mxu0 %v224
    %v436 = vpop.f32.mrf.mxu0
    %v437 = vadd.f32 %v106, %v436
    %438 = vmatmul.f32.gmra.mxu0 %v227
    %v439 = vpop.f32.mrf.mxu0
    %v440 = vadd.f32 %v106, %v439
    %441 = vmatmul.f32.gmra.mxu0 %v230
    %v442 = vpop.f32.mrf.mxu0
    %v443 = vadd.f32 %v106, %v442
    %444 = vmatmul.f32.gmra.mxu0 %v233
    %v445 = vpop.f32.mrf.mxu0
    %v446 = vadd.f32 %v106, %v445
    %447 = vmatmul.f32.gmra.mxu0 %v236
    %v448 = vpop.f32.mrf.mxu0
    %v449 = vadd.f32 %v106, %v448
    %450 = vmatmul.f32.gmra.mxu0 %v239
    %v451 = vpop.f32.mrf.mxu0
    %v452 = vadd.f32 %v106, %v451
    %453 = vmatmul.f32.gmra.mxu0 %v242
    %v454 = vpop.f32.mrf.mxu0
    %v455 = vadd.f32 %v106, %v454
    %456 = vmatmul.f32.gmra.mxu0 %v245
    %v457 = vpop.f32.mrf.mxu0
    %v458 = vadd.f32 %v106, %v457
    %459 = vmatmul.f32.gmra.mxu0 %v248
    %v460 = vpop.f32.mrf.mxu0
    %v461 = vadd.f32 %v106, %v460
    %462 = vmatmul.f32.gmra.mxu0 %v251
    %v463 = vpop.f32.mrf.mxu0
    %v464 = vadd.f32 %v106, %v463
    %465 = vmatmul.f32.gmra.mxu0 %v254
    %v466 = vpop.f32.mrf.mxu0
    %v467 = vadd.f32 %v106, %v466
    %468 = vmatmul.f32.gmra.mxu0 %v257
    %v469 = vpop.f32.mrf.mxu0
    %v470 = vadd.f32 %v106, %v469
    %471 = vmatmul.f32.gmra.mxu0 %v260
    %v472 = vpop.f32.mrf.mxu0
    %v473 = vadd.f32 %v106, %v472
    %474 = vmatmul.f32.gmra.mxu0 %v263
    %v475 = vpop.f32.mrf.mxu0
    %v476 = vadd.f32 %v106, %v475
    %477 = vmatmul.f32.gmra.mxu0 %v266
    %v478 = vpop.f32.mrf.mxu0
    %v479 = vadd.f32 %v106, %v478
    %480 = vmatmul.f32.gmra.mxu0 %v269
    %v481 = vpop.f32.mrf.mxu0
    %v482 = vadd.f32 %v106, %v481
    %483 = vmatmul.f32.gmra.mxu0 %v272
    %v484 = vpop.f32.mrf.mxu0
    %v485 = vadd.f32 %v106, %v484
    %486 = vmatmul.f32.gmra.mxu0 %v275
    %v487 = vpop.f32.mrf.mxu0
    %v488 = vadd.f32 %v106, %v487
    %489 = vmatmul.f32.gmra.mxu0 %v278
    %v490 = vpop.f32.mrf.mxu0
    %v491 = vadd.f32 %v106, %v490
    %492 = vmatmul.f32.gmra.mxu0 %v281
    %v493 = vpop.f32.mrf.mxu0
    %v494 = vadd.f32 %v106, %v493
    %495 = vmatmul.f32.gmra.mxu0 %v284
    %v496 = vpop.f32.mrf.mxu0
    %v497 = vadd.f32 %v106, %v496
    %498 = vmatmul.f32.gmra.mxu0 %v287
    %v499 = vpop.f32.mrf.mxu0
    %v500 = vadd.f32 %v106, %v499
    %501 = vmatmul.f32.gmra.mxu0 %v290
    %v502 = vpop.f32.mrf.mxu0
    %v503 = vadd.f32 %v106, %v502
    %504 = vmatmul.f32.gmra.mxu0 %v293
    %v505 = vpop.f32.mrf.mxu0
    %v506 = vadd.f32 %v106, %v505
    %507 = vmatmul.f32.gmra.mxu0 %v296
    %v508 = vpop.f32.mrf.mxu0
    %v509 = vadd.f32 %v106, %v508
    %510 = vmatmul.f32.gmra.mxu0 %v299
    %v511 = vpop.f32.mrf.mxu0
    %v512 = vadd.f32 %v106, %v511
    %513 = vdwg.mxu0
    %v514 = vmax.f32 %v323, 0.0
    %v515 = vmax.f32 %v326, 0.0
    %v516 = vmax.f32 %v329, 0.0
    %v517 = vmax.f32 %v332, 0.0
    %v518 = vmax.f32 %v335, 0.0
    %v519 = vmax.f32 %v338, 0.0
    %v520 = vmax.f32 %v341, 0.0
    %v521 = vmax.f32 %v344, 0.0
    %v522 = vmax.f32 %v347, 0.0
    %v523 = vmax.f32 %v350, 0.0
    %v524 = vmax.f32 %v353, 0.0
    %v525 = vmax.f32 %v356, 0.0
    %v526 = vmax.f32 %v359, 0.0
    %v527 = vmax.f32 %v362, 0.0
    %v528 = vmax.f32 %v365, 0.0
    %v529 = vmax.f32 %v368, 0.0
    %v530 = vmax.f32 %v371, 0.0
    %v531 = vmax.f32 %v374, 0.0
    %v532 = vmax.f32 %v377, 0.0
    %v533 = vmax.f32 %v380, 0.0
    %v534 = vmax.f32 %v383, 0.0
    %v535 = vmax.f32 %v386, 0.0
    %v536 = vmax.f32 %v389, 0.0
    %v537 = vmax.f32 %v392, 0.0
    %v538 = vmax.f32 %v395, 0.0
    %v539 = vmax.f32 %v398, 0.0
    %v540 = vmax.f32 %v401, 0.0
    %v541 = vmax.f32 %v404, 0.0
    %v542 = vmax.f32 %v407, 0.0
    %v543 = vmax.f32 %v410, 0.0
    %v544 = vmax.f32 %v413, 0.0
    %v545 = vmax.f32 %v416, 0.0
    %v546 = vmax.f32 %v419, 0.0
    %v547 = vmax.f32 %v422, 0.0
    %v548 = vmax.f32 %v425, 0.0
    %v549 = vmax.f32 %v428, 0.0
    %v550 = vmax.f32 %v431, 0.0
    %v551 = vmax.f32 %v434, 0.0
    %v552 = vmax.f32 %v437, 0.0
    %v553 = vmax.f32 %v440, 0.0
    %v554 = vmax.f32 %v443, 0.0
    %v555 = vmax.f32 %v446, 0.0
    %v556 = vmax.f32 %v449, 0.0
    %v557 = vmax.f32 %v452, 0.0
    %v558 = vmax.f32 %v455, 0.0
    %v559 = vmax.f32 %v458, 0.0
    %v560 = vmax.f32 %v461, 0.0
    %v561 = vmax.f32 %v464, 0.0
    %v562 = vmax.f32 %v467, 0.0
    %v563 = vmax.f32 %v470, 0.0
    %v564 = vmax.f32 %v473, 0.0
    %v565 = vmax.f32 %v476, 0.0
    %v566 = vmax.f32 %v479, 0.0
    %v567 = vmax.f32 %v482, 0.0
    %v568 = vmax.f32 %v485, 0.0
    %v569 = vmax.f32 %v488, 0.0
    %v570 = vmax.f32 %v491, 0.0
    %v571 = vmax.f32 %v494, 0.0
    %v572 = vmax.f32 %v497, 0.0
    %v573 = vmax.f32 %v500, 0.0
    %v574 = vmax.f32 %v503, 0.0
    %v575 = vmax.f32 %v506, 0.0
    %v576 = vmax.f32 %v509, 0.0
    %v577 = vmax.f32 %v512, 0.0
    %v642 = vrot.slane %v514, 2
    %v643 = vrot.slane %v514, 4
    %v644 = vrot.slane %v514, 6
    %v645 = vrot.slane %v515, 2
    %v646 = vrot.slane %v515, 4
    %v647 = vrot.slane %v515, 6
    %v648 = vrot.slane %v516, 2
    %v649 = vrot.slane %v516, 4
    %v650 = vrot.slane %v516, 6
    %v651 = vrot.slane %v517, 2
    %v652 = vrot.slane %v517, 4
    %v653 = vrot.slane %v517, 6
    %v654 = vrot.slane %v518, 2
    %v655 = vrot.slane %v518, 4
    %v656 = vrot.slane %v518, 6
    %v657 = vrot.slane %v519, 2
    %v658 = vrot.slane %v519, 4
    %v659 = vrot.slane %v519, 6
    %v660 = vrot.slane %v520, 2
    %v661 = vrot.slane %v520, 4
    %v662 = vrot.slane %v520, 6
    %v663 = vrot.slane %v521, 2
    %v664 = vrot.slane %v521, 4
    %v665 = vrot.slane %v521, 6
    %v666 = vrot.slane %v522, 2
    %v667 = vrot.slane %v522, 4
    %v668 = vrot.slane %v522, 6
    %v669 = vrot.slane %v523, 2
    %v670 = vrot.slane %v523, 4
    %v671 = vrot.slane %v523, 6
    %v672 = vrot.slane %v524, 2
    %v673 = vrot.slane %v524, 4
    %v674 = vrot.slane %v524, 6
    %v675 = vrot.slane %v525, 2
    %v676 = vrot.slane %v525, 4
    %v677 = vrot.slane %v525, 6
    %v678 = vrot.slane %v526, 2
    %v679 = vrot.slane %v526, 4
    %v680 = vrot.slane %v526, 6
    %v681 = vrot.slane %v527, 2
    %v682 = vrot.slane %v527, 4
    %v683 = vrot.slane %v527, 6
    %v684 = vrot.slane %v528, 2
    %v685 = vrot.slane %v528, 4
    %v686 = vrot.slane %v528, 6
    %v687 = vrot.slane %v529, 2
    %v688 = vrot.slane %v529, 4
    %v689 = vrot.slane %v529, 6
    %v690 = vrot.slane %v530, 2
    %v691 = vrot.slane %v530, 4
    %v692 = vrot.slane %v530, 6
    %v693 = vrot.slane %v531, 2
    %v694 = vrot.slane %v531, 4
    %v695 = vrot.slane %v531, 6
    %v696 = vrot.slane %v532, 2
    %v697 = vrot.slane %v532, 4
    %v698 = vrot.slane %v532, 6
    %v699 = vrot.slane %v533, 2
    %v700 = vrot.slane %v533, 4
    %v701 = vrot.slane %v533, 6
    %v702 = vrot.slane %v534, 2
    %v703 = vrot.slane %v534, 4
    %v704 = vrot.slane %v534, 6
    %v705 = vrot.slane %v535, 2
    %v706 = vrot.slane %v535, 4
    %v707 = vrot.slane %v535, 6
    %v708 = vrot.slane %v536, 2
    %v709 = vrot.slane %v536, 4
    %v710 = vrot.slane %v536, 6
    %v711 = vrot.slane %v537, 2
    %v712 = vrot.slane %v537, 4
    %v713 = vrot.slane %v537, 6
    %v714 = vrot.slane %v538, 2
    %v715 = vrot.slane %v538, 4
    %v716 = vrot.slane %v538, 6
    %v717 = vrot.slane %v539, 2
    %v718 = vrot.slane %v539, 4
    %v719 = vrot.slane %v539, 6
    %v720 = vrot.slane %v540, 2
    %v721 = vrot.slane %v540, 4
    %v722 = vrot.slane %v540, 6
    %v723 = vrot.slane %v541, 2
    %v724 = vrot.slane %v541, 4
    %v725 = vrot.slane %v541, 6
    %v726 = vrot.slane %v542, 2
    %v727 = vrot.slane %v542, 4
    %v728 = vrot.slane %v542, 6
    %v729 = vrot.slane %v543, 2
    %v730 = vrot.slane %v543, 4
    %v731 = vrot.slane %v543, 6
    %v732 = vrot.slane %v544, 2
    %v733 = vrot.slane %v544, 4
    %v734 = vrot.slane %v544, 6
    %v735 = vrot.slane %v545, 2
    %v736 = vrot.slane %v545, 4
    %v737 = vrot.slane %v545, 6
    %v738 = vrot.slane %v546, 2
    %v739 = vrot.slane %v546, 4
    %v740 = vrot.slane %v546, 6
    %v741 = vrot.slane %v547, 2
    %v742 = vrot.slane %v547, 4
    %v743 = vrot.slane %v547, 6
    %v744 = vrot.slane %v548, 2
    %v745 = vrot.slane %v548, 4
    %v746 = vrot.slane %v548, 6
    %v747 = vrot.slane %v549, 2
    %v748 = vrot.slane %v549, 4
    %v749 = vrot.slane %v549, 6
    %v750 = vrot.slane %v550, 2
    %v751 = vrot.slane %v550, 4
    %v752 = vrot.slane %v550, 6
    %v753 = vrot.slane %v551, 2
    %v754 = vrot.slane %v551, 4
    %v755 = vrot.slane %v551, 6
    %v756 = vrot.slane %v552, 2
    %v757 = vrot.slane %v552, 4
    %v758 = vrot.slane %v552, 6
    %v759 = vrot.slane %v553, 2
    %v760 = vrot.slane %v553, 4
    %v761 = vrot.slane %v553, 6
    %v762 = vrot.slane %v554, 2
    %v763 = vrot.slane %v554, 4
    %v764 = vrot.slane %v554, 6
    %v765 = vrot.slane %v555, 2
    %v766 = vrot.slane %v555, 4
    %v767 = vrot.slane %v555, 6
    %v768 = vrot.slane %v556, 2
    %v769 = vrot.slane %v556, 4
    %v770 = vrot.slane %v556, 6
    %v771 = vrot.slane %v557, 2
    %v772 = vrot.slane %v557, 4
    %v773 = vrot.slane %v557, 6
    %v774 = vrot.slane %v558, 2
    %v775 = vrot.slane %v558, 4
    %v776 = vrot.slane %v558, 6
    %v777 = vrot.slane %v559, 2
    %v778 = vrot.slane %v559, 4
    %v779 = vrot.slane %v559, 6
    %v780 = vrot.slane %v560, 2
    %v781 = vrot.slane %v560, 4
    %v782 = vrot.slane %v560, 6
    %v783 = vrot.slane %v561, 2
    %v784 = vrot.slane %v561, 4
    %v785 = vrot.slane %v561, 6
    %v786 = vrot.slane %v562, 2
    %v787 = vrot.slane %v562, 4
    %v788 = vrot.slane %v562, 6
    %v789 = vrot.slane %v563, 2
    %v790 = vrot.slane %v563, 4
    %v791 = vrot.slane %v563, 6
    %v792 = vrot.slane %v564, 2
    %v793 = vrot.slane %v564, 4
    %v794 = vrot.slane %v564, 6
    %v795 = vrot.slane %v565, 2
    %v796 = vrot.slane %v565, 4
    %v797 = vrot.slane %v565, 6
    %v798 = vrot.slane %v566, 2
    %v799 = vrot.slane %v566, 4
    %v800 = vrot.slane %v566, 6
    %v801 = vrot.slane %v567, 2
    %v802 = vrot.slane %v567, 4
    %v803 = vrot.slane %v567, 6
    %v804 = vrot.slane %v568, 2
    %v805 = vrot.slane %v568, 4
    %v806 = vrot.slane %v568, 6
    %v807 = vrot.slane %v569, 2
    %v808 = vrot.slane %v569, 4
    %v809 = vrot.slane %v569, 6
    %v810 = vrot.slane %v570, 2
    %v811 = vrot.slane %v570, 4
    %v812 = vrot.slane %v570, 6
    %v813 = vrot.slane %v571, 2
    %v814 = vrot.slane %v571, 4
    %v815 = vrot.slane %v571, 6
    %v816 = vrot.slane %v572, 2
    %v817 = vrot.slane %v572, 4
    %v818 = vrot.slane %v572, 6
    %v819 = vrot.slane %v573, 2
    %v820 = vrot.slane %v573, 4
    %v821 = vrot.slane %v573, 6
    %v822 = vrot.slane %v574, 2
    %v823 = vrot.slane %v574, 4
    %v824 = vrot.slane %v574, 6
    %v825 = vrot.slane %v575, 2
    %v826 = vrot.slane %v575, 4
    %v827 = vrot.slane %v575, 6
    %v828 = vrot.slane %v576, 2
    %v829 = vrot.slane %v576, 4
    %v830 = vrot.slane %v576, 6
    %v831 = vrot.slane %v577, 2
    %v832 = vrot.slane %v577, 4
    %v833 = vrot.slane %v577, 6
    %vm1026 = vcmask 156672
    %v1027 = vsel %vm1026, %v514, -inf
    %v1028 = vrot.slane %v1027, 4
    %v1029 = vmax.f32 %v1027, %v1028
    %v1030 = vrot.slane %v1029, 2
    %v1031 = vmax.f32 %v1029, %v1030
    %v1032 = vrot.slane %v1031, 1
    %v1033 = vmax.f32 %v1031, %v1032
    %v1034 = vsel %vm1026, %v642, -inf
    %v1035 = vrot.slane %v1034, 4
    %v1036 = vmax.f32 %v1034, %v1035
    %v1037 = vrot.slane %v1036, 2
    %v1038 = vmax.f32 %v1036, %v1037
    %v1039 = vrot.slane %v1038, 1
    %v1040 = vmax.f32 %v1038, %v1039
    %v1041 = vsel %vm1026, %v643, -inf
    %v1042 = vrot.slane %v1041, 4
    %v1043 = vmax.f32 %v1041, %v1042
    %v1044 = vrot.slane %v1043, 2
    %v1045 = vmax.f32 %v1043, %v1044
    %v1046 = vrot.slane %v1045, 1
    %v1047 = vmax.f32 %v1045, %v1046
    %v1048 = vsel %vm1026, %v644, -inf
    %v1049 = vrot.slane %v1048, 4
    %v1050 = vmax.f32 %v1048, %v1049
    %v1051 = vrot.slane %v1050, 2
    %v1052 = vmax.f32 %v1050, %v1051
    %v1053 = vrot.slane %v1052, 1
    %v1054 = vmax.f32 %v1052, %v1053
    %v1055 = vsel %vm1026, %v515, -inf
    %v1056 = vrot.slane %v1055, 4
    %v1057 = vmax.f32 %v1055, %v1056
    %v1058 = vrot.slane %v1057, 2
    %v1059 = vmax.f32 %v1057, %v1058
    %v1060 = vrot.slane %v1059, 1
    %v1061 = vmax.f32 %v1059, %v1060
    %v1062 = vsel %vm1026, %v645, -inf
    %v1063 = vrot.slane %v1062, 4
    %v1064 = vmax.f32 %v1062, %v1063
    %v1065 = vrot.slane %v1064, 2
    %v1066 = vmax.f32 %v1064, %v1065
    %v1067 = vrot.slane %v1066, 1
    %v1068 = vmax.f32 %v1066, %v1067
    %v1069 = vsel %vm1026, %v646, -inf
    %v1070 = vrot.slane %v1069, 4
    %v1071 = vmax.f32 %v1069, %v1070
    %v1072 = vrot.slane %v1071, 2
    %v1073 = vmax.f32 %v1071, %v1072
    %v1074 = vrot.slane %v1073, 1
    %v1075 = vmax.f32 %v1073, %v1074
    %v1076 = vsel %vm1026, %v647, -inf
    %v1077 = vrot.slane %v1076, 4
    %v1078 = vmax.f32 %v1076, %v1077
    %v1079 = vrot.slane %v1078, 2
    %v1080 = vmax.f32 %v1078, %v1079
    %v1081 = vrot.slane %v1080, 1
    %v1082 = vmax.f32 %v1080, %v1081
    %v1083 = vsel %vm1026, %v516, -inf
    %v1084 = vrot.slane %v1083, 4
    %v1085 = vmax.f32 %v1083, %v1084
    %v1086 = vrot.slane %v1085, 2
    %v1087 = vmax.f32 %v1085, %v1086
    %v1088 = vrot.slane %v1087, 1
    %v1089 = vmax.f32 %v1087, %v1088
    %v1090 = vsel %vm1026, %v648, -inf
    %v1091 = vrot.slane %v1090, 4
    %v1092 = vmax.f32 %v1090, %v1091
    %v1093 = vrot.slane %v1092, 2
    %v1094 = vmax.f32 %v1092, %v1093
    %v1095 = vrot.slane %v1094, 1
    %v1096 = vmax.f32 %v1094, %v1095
    %v1097 = vsel %vm1026, %v649, -inf
    %v1098 = vrot.slane %v1097, 4
    %v1099 = vmax.f32 %v1097, %v1098
    %v1100 = vrot.slane %v1099, 2
    %v1101 = vmax.f32 %v1099, %v1100
    %v1102 = vrot.slane %v1101, 1
    %v1103 = vmax.f32 %v1101, %v1102
    %v1104 = vsel %vm1026, %v650, -inf
    %v1105 = vrot.slane %v1104, 4
    %v1106 = vmax.f32 %v1104, %v1105
    %v1107 = vrot.slane %v1106, 2
    %v1108 = vmax.f32 %v1106, %v1107
    %v1109 = vrot.slane %v1108, 1
    %v1110 = vmax.f32 %v1108, %v1109
    %v1111 = vsel %vm1026, %v517, -inf
    %v1112 = vrot.slane %v1111, 4
    %v1113 = vmax.f32 %v1111, %v1112
    %v1114 = vrot.slane %v1113, 2
    %v1115 = vmax.f32 %v1113, %v1114
    %v1116 = vrot.slane %v1115, 1
    %v1117 = vmax.f32 %v1115, %v1116
    %v1118 = vsel %vm1026, %v651, -inf
    %v1119 = vrot.slane %v1118, 4
    %v1120 = vmax.f32 %v1118, %v1119
    %v1121 = vrot.slane %v1120, 2
    %v1122 = vmax.f32 %v1120, %v1121
    %v1123 = vrot.slane %v1122, 1
    %v1124 = vmax.f32 %v1122, %v1123
    %v1125 = vsel %vm1026, %v652, -inf
    %v1126 = vrot.slane %v1125, 4
    %v1127 = vmax.f32 %v1125, %v1126
    %v1128 = vrot.slane %v1127, 2
    %v1129 = vmax.f32 %v1127, %v1128
    %v1130 = vrot.slane %v1129, 1
    %v1131 = vmax.f32 %v1129, %v1130
    %v1132 = vsel %vm1026, %v653, -inf
    %v1133 = vrot.slane %v1132, 4
    %v1134 = vmax.f32 %v1132, %v1133
    %v1135 = vrot.slane %v1134, 2
    %v1136 = vmax.f32 %v1134, %v1135
    %v1137 = vrot.slane %v1136, 1
    %v1138 = vmax.f32 %v1136, %v1137
    %v1139 = vsel %vm1026, %v518, -inf
    %v1140 = vrot.slane %v1139, 4
    %v1141 = vmax.f32 %v1139, %v1140
    %v1142 = vrot.slane %v1141, 2
    %v1143 = vmax.f32 %v1141, %v1142
    %v1144 = vrot.slane %v1143, 1
    %v1145 = vmax.f32 %v1143, %v1144
    %v1146 = vsel %vm1026, %v654, -inf
    %v1147 = vrot.slane %v1146, 4
    %v1148 = vmax.f32 %v1146, %v1147
    %v1149 = vrot.slane %v1148, 2
    %v1150 = vmax.f32 %v1148, %v1149
    %v1151 = vrot.slane %v1150, 1
    %v1152 = vmax.f32 %v1150, %v1151
    %v1153 = vsel %vm1026, %v655, -inf
    %v1154 = vrot.slane %v1153, 4
    %v1155 = vmax.f32 %v1153, %v1154
    %v1156 = vrot.slane %v1155, 2
    %v1157 = vmax.f32 %v1155, %v1156
    %v1158 = vrot.slane %v1157, 1
    %v1159 = vmax.f32 %v1157, %v1158
    %v1160 = vsel %vm1026, %v656, -inf
    %v1161 = vrot.slane %v1160, 4
    %v1162 = vmax.f32 %v1160, %v1161
    %v1163 = vrot.slane %v1162, 2
    %v1164 = vmax.f32 %v1162, %v1163
    %v1165 = vrot.slane %v1164, 1
    %v1166 = vmax.f32 %v1164, %v1165
    %v1167 = vsel %vm1026, %v519, -inf
    %v1168 = vrot.slane %v1167, 4
    %v1169 = vmax.f32 %v1167, %v1168
    %v1170 = vrot.slane %v1169, 2
    %v1171 = vmax.f32 %v1169, %v1170
    %v1172 = vrot.slane %v1171, 1
    %v1173 = vmax.f32 %v1171, %v1172
    %v1174 = vsel %vm1026, %v657, -inf
    %v1175 = vrot.slane %v1174, 4
    %v1176 = vmax.f32 %v1174, %v1175
    %v1177 = vrot.slane %v1176, 2
    %v1178 = vmax.f32 %v1176, %v1177
    %v1179 = vrot.slane %v1178, 1
    %v1180 = vmax.f32 %v1178, %v1179
    %v1181 = vsel %vm1026, %v658, -inf
    %v1182 = vrot.slane %v1181, 4
    %v1183 = vmax.f32 %v1181, %v1182
    %v1184 = vrot.slane %v1183, 2
    %v1185 = vmax.f32 %v1183, %v1184
    %v1186 = vrot.slane %v1185, 1
    %v1187 = vmax.f32 %v1185, %v1186
    %v1188 = vsel %vm1026, %v659, -inf
    %v1189 = vrot.slane %v1188, 4
    %v1190 = vmax.f32 %v1188, %v1189
    %v1191 = vrot.slane %v1190, 2
    %v1192 = vmax.f32 %v1190, %v1191
    %v1193 = vrot.slane %v1192, 1
    %v1194 = vmax.f32 %v1192, %v1193
    %v1195 = vsel %vm1026, %v520, -inf
    %v1196 = vrot.slane %v1195, 4
    %v1197 = vmax.f32 %v1195, %v1196
    %v1198 = vrot.slane %v1197, 2
    %v1199 = vmax.f32 %v1197, %v1198
    %v1200 = vrot.slane %v1199, 1
    %v1201 = vmax.f32 %v1199, %v1200
    %v1202 = vsel %vm1026, %v660, -inf
    %v1203 = vrot.slane %v1202, 4
    %v1204 = vmax.f32 %v1202, %v1203
    %v1205 = vrot.slane %v1204, 2
    %v1206 = vmax.f32 %v1204, %v1205
    %v1207 = vrot.slane %v1206, 1
    %v1208 = vmax.f32 %v1206, %v1207
    %v1209 = vsel %vm1026, %v661, -inf
    %v1210 = vrot.slane %v1209, 4
    %v1211 = vmax.f32 %v1209, %v1210
    %v1212 = vrot.slane %v1211, 2
    %v1213 = vmax.f32 %v1211, %v1212
    %v1214 = vrot.slane %v1213, 1
    %v1215 = vmax.f32 %v1213, %v1214
    %v1216 = vsel %vm1026, %v662, -inf
    %v1217 = vrot.slane %v1216, 4
    %v1218 = vmax.f32 %v1216, %v1217
    %v1219 = vrot.slane %v1218, 2
    %v1220 = vmax.f32 %v1218, %v1219
    %v1221 = vrot.slane %v1220, 1
    %v1222 = vmax.f32 %v1220, %v1221
    %v1223 = vsel %vm1026, %v521, -inf
    %v1224 = vrot.slane %v1223, 4
    %v1225 = vmax.f32 %v1223, %v1224
    %v1226 = vrot.slane %v1225, 2
    %v1227 = vmax.f32 %v1225, %v1226
    %v1228 = vrot.slane %v1227, 1
    %v1229 = vmax.f32 %v1227, %v1228
    %v1230 = vsel %vm1026, %v663, -inf
    %v1231 = vrot.slane %v1230, 4
    %v1232 = vmax.f32 %v1230, %v1231
    %v1233 = vrot.slane %v1232, 2
    %v1234 = vmax.f32 %v1232, %v1233
    %v1235 = vrot.slane %v1234, 1
    %v1236 = vmax.f32 %v1234, %v1235
    %v1237 = vsel %vm1026, %v664, -inf
    %v1238 = vrot.slane %v1237, 4
    %v1239 = vmax.f32 %v1237, %v1238
    %v1240 = vrot.slane %v1239, 2
    %v1241 = vmax.f32 %v1239, %v1240
    %v1242 = vrot.slane %v1241, 1
    %v1243 = vmax.f32 %v1241, %v1242
    %v1244 = vsel %vm1026, %v665, -inf
    %v1245 = vrot.slane %v1244, 4
    %v1246 = vmax.f32 %v1244, %v1245
    %v1247 = vrot.slane %v1246, 2
    %v1248 = vmax.f32 %v1246, %v1247
    %v1249 = vrot.slane %v1248, 1
    %v1250 = vmax.f32 %v1248, %v1249
    %v1251 = vsel %vm1026, %v522, -inf
    %v1252 = vrot.slane %v1251, 4
    %v1253 = vmax.f32 %v1251, %v1252
    %v1254 = vrot.slane %v1253, 2
    %v1255 = vmax.f32 %v1253, %v1254
    %v1256 = vrot.slane %v1255, 1
    %v1257 = vmax.f32 %v1255, %v1256
    %v1258 = vsel %vm1026, %v666, -inf
    %v1259 = vrot.slane %v1258, 4
    %v1260 = vmax.f32 %v1258, %v1259
    %v1261 = vrot.slane %v1260, 2
    %v1262 = vmax.f32 %v1260, %v1261
    %v1263 = vrot.slane %v1262, 1
    %v1264 = vmax.f32 %v1262, %v1263
    %v1265 = vsel %vm1026, %v667, -inf
    %v1266 = vrot.slane %v1265, 4
    %v1267 = vmax.f32 %v1265, %v1266
    %v1268 = vrot.slane %v1267, 2
    %v1269 = vmax.f32 %v1267, %v1268
    %v1270 = vrot.slane %v1269, 1
    %v1271 = vmax.f32 %v1269, %v1270
    %v1272 = vsel %vm1026, %v668, -inf
    %v1273 = vrot.slane %v1272, 4
    %v1274 = vmax.f32 %v1272, %v1273
    %v1275 = vrot.slane %v1274, 2
    %v1276 = vmax.f32 %v1274, %v1275
    %v1277 = vrot.slane %v1276, 1
    %v1278 = vmax.f32 %v1276, %v1277
    %v1279 = vsel %vm1026, %v523, -inf
    %v1280 = vrot.slane %v1279, 4
    %v1281 = vmax.f32 %v1279, %v1280
    %v1282 = vrot.slane %v1281, 2
    %v1283 = vmax.f32 %v1281, %v1282
    %v1284 = vrot.slane %v1283, 1
    %v1285 = vmax.f32 %v1283, %v1284
    %v1286 = vsel %vm1026, %v669, -inf
    %v1287 = vrot.slane %v1286, 4
    %v1288 = vmax.f32 %v1286, %v1287
    %v1289 = vrot.slane %v1288, 2
    %v1290 = vmax.f32 %v1288, %v1289
    %v1291 = vrot.slane %v1290, 1
    %v1292 = vmax.f32 %v1290, %v1291
    %v1293 = vsel %vm1026, %v670, -inf
    %v1294 = vrot.slane %v1293, 4
    %v1295 = vmax.f32 %v1293, %v1294
    %v1296 = vrot.slane %v1295, 2
    %v1297 = vmax.f32 %v1295, %v1296
    %v1298 = vrot.slane %v1297, 1
    %v1299 = vmax.f32 %v1297, %v1298
    %v1300 = vsel %vm1026, %v671, -inf
    %v1301 = vrot.slane %v1300, 4
    %v1302 = vmax.f32 %v1300, %v1301
    %v1303 = vrot.slane %v1302, 2
    %v1304 = vmax.f32 %v1302, %v1303
    %v1305 = vrot.slane %v1304, 1
    %v1306 = vmax.f32 %v1304, %v1305
    %v1307 = vsel %vm1026, %v524, -inf
    %v1308 = vrot.slane %v1307, 4
    %v1309 = vmax.f32 %v1307, %v1308
    %v1310 = vrot.slane %v1309, 2
    %v1311 = vmax.f32 %v1309, %v1310
    %v1312 = vrot.slane %v1311, 1
    %v1313 = vmax.f32 %v1311, %v1312
    %v1314 = vsel %vm1026, %v672, -inf
    %v1315 = vrot.slane %v1314, 4
    %v1316 = vmax.f32 %v1314, %v1315
    %v1317 = vrot.slane %v1316, 2
    %v1318 = vmax.f32 %v1316, %v1317
    %v1319 = vrot.slane %v1318, 1
    %v1320 = vmax.f32 %v1318, %v1319
    %v1321 = vsel %vm1026, %v673, -inf
    %v1322 = vrot.slane %v1321, 4
    %v1323 = vmax.f32 %v1321, %v1322
    %v1324 = vrot.slane %v1323, 2
    %v1325 = vmax.f32 %v1323, %v1324
    %v1326 = vrot.slane %v1325, 1
    %v1327 = vmax.f32 %v1325, %v1326
    %v1328 = vsel %vm1026, %v674, -inf
    %v1329 = vrot.slane %v1328, 4
    %v1330 = vmax.f32 %v1328, %v1329
    %v1331 = vrot.slane %v1330, 2
    %v1332 = vmax.f32 %v1330, %v1331
    %v1333 = vrot.slane %v1332, 1
    %v1334 = vmax.f32 %v1332, %v1333
    %v1335 = vsel %vm1026, %v525, -inf
    %v1336 = vrot.slane %v1335, 4
    %v1337 = vmax.f32 %v1335, %v1336
    %v1338 = vrot.slane %v1337, 2
    %v1339 = vmax.f32 %v1337, %v1338
    %v1340 = vrot.slane %v1339, 1
    %v1341 = vmax.f32 %v1339, %v1340
    %v1342 = vsel %vm1026, %v675, -inf
    %v1343 = vrot.slane %v1342, 4
    %v1344 = vmax.f32 %v1342, %v1343
    %v1345 = vrot.slane %v1344, 2
    %v1346 = vmax.f32 %v1344, %v1345
    %v1347 = vrot.slane %v1346, 1
    %v1348 = vmax.f32 %v1346, %v1347
    %v1349 = vsel %vm1026, %v676, -inf
    %v1350 = vrot.slane %v1349, 4
    %v1351 = vmax.f32 %v1349, %v1350
    %v1352 = vrot.slane %v1351, 2
    %v1353 = vmax.f32 %v1351, %v1352
    %v1354 = vrot.slane %v1353, 1
    %v1355 = vmax.f32 %v1353, %v1354
    %v1356 = vsel %vm1026, %v677, -inf
    %v1357 = vrot.slane %v1356, 4
    %v1358 = vmax.f32 %v1356, %v1357
    %v1359 = vrot.slane %v1358, 2
    %v1360 = vmax.f32 %v1358, %v1359
    %v1361 = vrot.slane %v1360, 1
    %v1362 = vmax.f32 %v1360, %v1361
    %v1363 = vsel %vm1026, %v526, -inf
    %v1364 = vrot.slane %v1363, 4
    %v1365 = vmax.f32 %v1363, %v1364
    %v1366 = vrot.slane %v1365, 2
    %v1367 = vmax.f32 %v1365, %v1366
    %v1368 = vrot.slane %v1367, 1
    %v1369 = vmax.f32 %v1367, %v1368
    %v1370 = vsel %vm1026, %v678, -inf
    %v1371 = vrot.slane %v1370, 4
    %v1372 = vmax.f32 %v1370, %v1371
    %v1373 = vrot.slane %v1372, 2
    %v1374 = vmax.f32 %v1372, %v1373
    %v1375 = vrot.slane %v1374, 1
    %v1376 = vmax.f32 %v1374, %v1375
    %v1377 = vsel %vm1026, %v679, -inf
    %v1378 = vrot.slane %v1377, 4
    %v1379 = vmax.f32 %v1377, %v1378
    %v1380 = vrot.slane %v1379, 2
    %v1381 = vmax.f32 %v1379, %v1380
    %v1382 = vrot.slane %v1381, 1
    %v1383 = vmax.f32 %v1381, %v1382
    %v1384 = vsel %vm1026, %v680, -inf
    %v1385 = vrot.slane %v1384, 4
    %v1386 = vmax.f32 %v1384, %v1385
    %v1387 = vrot.slane %v1386, 2
    %v1388 = vmax.f32 %v1386, %v1387
    %v1389 = vrot.slane %v1388, 1
    %v1390 = vmax.f32 %v1388, %v1389
    %v1391 = vsel %vm1026, %v527, -inf
    %v1392 = vrot.slane %v1391, 4
    %v1393 = vmax.f32 %v1391, %v1392
    %v1394 = vrot.slane %v1393, 2
    %v1395 = vmax.f32 %v1393, %v1394
    %v1396 = vrot.slane %v1395, 1
    %v1397 = vmax.f32 %v1395, %v1396
    %v1398 = vsel %vm1026, %v681, -inf
    %v1399 = vrot.slane %v1398, 4
    %v1400 = vmax.f32 %v1398, %v1399
    %v1401 = vrot.slane %v1400, 2
    %v1402 = vmax.f32 %v1400, %v1401
    %v1403 = vrot.slane %v1402, 1
    %v1404 = vmax.f32 %v1402, %v1403
    %v1405 = vsel %vm1026, %v682, -inf
    %v1406 = vrot.slane %v1405, 4
    %v1407 = vmax.f32 %v1405, %v1406
    %v1408 = vrot.slane %v1407, 2
    %v1409 = vmax.f32 %v1407, %v1408
    %v1410 = vrot.slane %v1409, 1
    %v1411 = vmax.f32 %v1409, %v1410
    %v1412 = vsel %vm1026, %v683, -inf
    %v1413 = vrot.slane %v1412, 4
    %v1414 = vmax.f32 %v1412, %v1413
    %v1415 = vrot.slane %v1414, 2
    %v1416 = vmax.f32 %v1414, %v1415
    %v1417 = vrot.slane %v1416, 1
    %v1418 = vmax.f32 %v1416, %v1417
    %v1419 = vsel %vm1026, %v528, -inf
    %v1420 = vrot.slane %v1419, 4
    %v1421 = vmax.f32 %v1419, %v1420
    %v1422 = vrot.slane %v1421, 2
    %v1423 = vmax.f32 %v1421, %v1422
    %v1424 = vrot.slane %v1423, 1
    %v1425 = vmax.f32 %v1423, %v1424
    %v1426 = vsel %vm1026, %v684, -inf
    %v1427 = vrot.slane %v1426, 4
    %v1428 = vmax.f32 %v1426, %v1427
    %v1429 = vrot.slane %v1428, 2
    %v1430 = vmax.f32 %v1428, %v1429
    %v1431 = vrot.slane %v1430, 1
    %v1432 = vmax.f32 %v1430, %v1431
    %v1433 = vsel %vm1026, %v685, -inf
    %v1434 = vrot.slane %v1433, 4
    %v1435 = vmax.f32 %v1433, %v1434
    %v1436 = vrot.slane %v1435, 2
    %v1437 = vmax.f32 %v1435, %v1436
    %v1438 = vrot.slane %v1437, 1
    %v1439 = vmax.f32 %v1437, %v1438
    %v1440 = vsel %vm1026, %v686, -inf
    %v1441 = vrot.slane %v1440, 4
    %v1442 = vmax.f32 %v1440, %v1441
    %v1443 = vrot.slane %v1442, 2
    %v1444 = vmax.f32 %v1442, %v1443
    %v1445 = vrot.slane %v1444, 1
    %v1446 = vmax.f32 %v1444, %v1445
    %v1447 = vsel %vm1026, %v529, -inf
    %v1448 = vrot.slane %v1447, 4
    %v1449 = vmax.f32 %v1447, %v1448
    %v1450 = vrot.slane %v1449, 2
    %v1451 = vmax.f32 %v1449, %v1450
    %v1452 = vrot.slane %v1451, 1
    %v1453 = vmax.f32 %v1451, %v1452
    %v1454 = vsel %vm1026, %v687, -inf
    %v1455 = vrot.slane %v1454, 4
    %v1456 = vmax.f32 %v1454, %v1455
    %v1457 = vrot.slane %v1456, 2
    %v1458 = vmax.f32 %v1456, %v1457
    %v1459 = vrot.slane %v1458, 1
    %v1460 = vmax.f32 %v1458, %v1459
    %v1461 = vsel %vm1026, %v688, -inf
    %v1462 = vrot.slane %v1461, 4
    %v1463 = vmax.f32 %v1461, %v1462
    %v1464 = vrot.slane %v1463, 2
    %v1465 = vmax.f32 %v1463, %v1464
    %v1466 = vrot.slane %v1465, 1
    %v1467 = vmax.f32 %v1465, %v1466
    %v1468 = vsel %vm1026, %v689, -inf
    %v1469 = vrot.slane %v1468, 4
    %v1470 = vmax.f32 %v1468, %v1469
    %v1471 = vrot.slane %v1470, 2
    %v1472 = vmax.f32 %v1470, %v1471
    %v1473 = vrot.slane %v1472, 1
    %v1474 = vmax.f32 %v1472, %v1473
    %v1475 = vsel %vm1026, %v530, -inf
    %v1476 = vrot.slane %v1475, 4
    %v1477 = vmax.f32 %v1475, %v1476
    %v1478 = vrot.slane %v1477, 2
    %v1479 = vmax.f32 %v1477, %v1478
    %v1480 = vrot.slane %v1479, 1
    %v1481 = vmax.f32 %v1479, %v1480
    %v1482 = vsel %vm1026, %v690, -inf
    %v1483 = vrot.slane %v1482, 4
    %v1484 = vmax.f32 %v1482, %v1483
    %v1485 = vrot.slane %v1484, 2
    %v1486 = vmax.f32 %v1484, %v1485
    %v1487 = vrot.slane %v1486, 1
    %v1488 = vmax.f32 %v1486, %v1487
    %v1489 = vsel %vm1026, %v691, -inf
    %v1490 = vrot.slane %v1489, 4
    %v1491 = vmax.f32 %v1489, %v1490
    %v1492 = vrot.slane %v1491, 2
    %v1493 = vmax.f32 %v1491, %v1492
    %v1494 = vrot.slane %v1493, 1
    %v1495 = vmax.f32 %v1493, %v1494
    %v1496 = vsel %vm1026, %v692, -inf
    %v1497 = vrot.slane %v1496, 4
    %v1498 = vmax.f32 %v1496, %v1497
    %v1499 = vrot.slane %v1498, 2
    %v1500 = vmax.f32 %v1498, %v1499
    %v1501 = vrot.slane %v1500, 1
    %v1502 = vmax.f32 %v1500, %v1501
    %v1503 = vsel %vm1026, %v531, -inf
    %v1504 = vrot.slane %v1503, 4
    %v1505 = vmax.f32 %v1503, %v1504
    %v1506 = vrot.slane %v1505, 2
    %v1507 = vmax.f32 %v1505, %v1506
    %v1508 = vrot.slane %v1507, 1
    %v1509 = vmax.f32 %v1507, %v1508
    %v1510 = vsel %vm1026, %v693, -inf
    %v1511 = vrot.slane %v1510, 4
    %v1512 = vmax.f32 %v1510, %v1511
    %v1513 = vrot.slane %v1512, 2
    %v1514 = vmax.f32 %v1512, %v1513
    %v1515 = vrot.slane %v1514, 1
    %v1516 = vmax.f32 %v1514, %v1515
    %v1517 = vsel %vm1026, %v694, -inf
    %v1518 = vrot.slane %v1517, 4
    %v1519 = vmax.f32 %v1517, %v1518
    %v1520 = vrot.slane %v1519, 2
    %v1521 = vmax.f32 %v1519, %v1520
    %v1522 = vrot.slane %v1521, 1
    %v1523 = vmax.f32 %v1521, %v1522
    %v1524 = vsel %vm1026, %v695, -inf
    %v1525 = vrot.slane %v1524, 4
    %v1526 = vmax.f32 %v1524, %v1525
    %v1527 = vrot.slane %v1526, 2
    %v1528 = vmax.f32 %v1526, %v1527
    %v1529 = vrot.slane %v1528, 1
    %v1530 = vmax.f32 %v1528, %v1529
    %v1531 = vsel %vm1026, %v532, -inf
    %v1532 = vrot.slane %v1531, 4
    %v1533 = vmax.f32 %v1531, %v1532
    %v1534 = vrot.slane %v1533, 2
    %v1535 = vmax.f32 %v1533, %v1534
    %v1536 = vrot.slane %v1535, 1
    %v1537 = vmax.f32 %v1535, %v1536
    %v1538 = vsel %vm1026, %v696, -inf
    %v1539 = vrot.slane %v1538, 4
    %v1540 = vmax.f32 %v1538, %v1539
    %v1541 = vrot.slane %v1540, 2
    %v1542 = vmax.f32 %v1540, %v1541
    %v1543 = vrot.slane %v1542, 1
    %v1544 = vmax.f32 %v1542, %v1543
    %v1545 = vsel %vm1026, %v697, -inf
    %v1546 = vrot.slane %v1545, 4
    %v1547 = vmax.f32 %v1545, %v1546
    %v1548 = vrot.slane %v1547, 2
    %v1549 = vmax.f32 %v1547, %v1548
    %v1550 = vrot.slane %v1549, 1
    %v1551 = vmax.f32 %v1549, %v1550
    %v1552 = vsel %vm1026, %v698, -inf
    %v1553 = vrot.slane %v1552, 4
    %v1554 = vmax.f32 %v1552, %v1553
    %v1555 = vrot.slane %v1554, 2
    %v1556 = vmax.f32 %v1554, %v1555
    %v1557 = vrot.slane %v1556, 1
    %v1558 = vmax.f32 %v1556, %v1557
    %v1559 = vsel %vm1026, %v533, -inf
    %v1560 = vrot.slane %v1559, 4
    %v1561 = vmax.f32 %v1559, %v1560
    %v1562 = vrot.slane %v1561, 2
    %v1563 = vmax.f32 %v1561, %v1562
    %v1564 = vrot.slane %v1563, 1
    %v1565 = vmax.f32 %v1563, %v1564
    %v1566 = vsel %vm1026, %v699, -inf
    %v1567 = vrot.slane %v1566, 4
    %v1568 = vmax.f32 %v1566, %v1567
    %v1569 = vrot.slane %v1568, 2
    %v1570 = vmax.f32 %v1568, %v1569
    %v1571 = vrot.slane %v1570, 1
    %v1572 = vmax.f32 %v1570, %v1571
    %v1573 = vsel %vm1026, %v700, -inf
    %v1574 = vrot.slane %v1573, 4
    %v1575 = vmax.f32 %v1573, %v1574
    %v1576 = vrot.slane %v1575, 2
    %v1577 = vmax.f32 %v1575, %v1576
    %v1578 = vrot.slane %v1577, 1
    %v1579 = vmax.f32 %v1577, %v1578
    %v1580 = vsel %vm1026, %v701, -inf
    %v1581 = vrot.slane %v1580, 4
    %v1582 = vmax.f32 %v1580, %v1581
    %v1583 = vrot.slane %v1582, 2
    %v1584 = vmax.f32 %v1582, %v1583
    %v1585 = vrot.slane %v1584, 1
    %v1586 = vmax.f32 %v1584, %v1585
    %v1587 = vsel %vm1026, %v534, -inf
    %v1588 = vrot.slane %v1587, 4
    %v1589 = vmax.f32 %v1587, %v1588
    %v1590 = vrot.slane %v1589, 2
    %v1591 = vmax.f32 %v1589, %v1590
    %v1592 = vrot.slane %v1591, 1
    %v1593 = vmax.f32 %v1591, %v1592
    %v1594 = vsel %vm1026, %v702, -inf
    %v1595 = vrot.slane %v1594, 4
    %v1596 = vmax.f32 %v1594, %v1595
    %v1597 = vrot.slane %v1596, 2
    %v1598 = vmax.f32 %v1596, %v1597
    %v1599 = vrot.slane %v1598, 1
    %v1600 = vmax.f32 %v1598, %v1599
    %v1601 = vsel %vm1026, %v703, -inf
    %v1602 = vrot.slane %v1601, 4
    %v1603 = vmax.f32 %v1601, %v1602
    %v1604 = vrot.slane %v1603, 2
    %v1605 = vmax.f32 %v1603, %v1604
    %v1606 = vrot.slane %v1605, 1
    %v1607 = vmax.f32 %v1605, %v1606
    %v1608 = vsel %vm1026, %v704, -inf
    %v1609 = vrot.slane %v1608, 4
    %v1610 = vmax.f32 %v1608, %v1609
    %v1611 = vrot.slane %v1610, 2
    %v1612 = vmax.f32 %v1610, %v1611
    %v1613 = vrot.slane %v1612, 1
    %v1614 = vmax.f32 %v1612, %v1613
    %v1615 = vsel %vm1026, %v535, -inf
    %v1616 = vrot.slane %v1615, 4
    %v1617 = vmax.f32 %v1615, %v1616
    %v1618 = vrot.slane %v1617, 2
    %v1619 = vmax.f32 %v1617, %v1618
    %v1620 = vrot.slane %v1619, 1
    %v1621 = vmax.f32 %v1619, %v1620
    %v1622 = vsel %vm1026, %v705, -inf
    %v1623 = vrot.slane %v1622, 4
    %v1624 = vmax.f32 %v1622, %v1623
    %v1625 = vrot.slane %v1624, 2
    %v1626 = vmax.f32 %v1624, %v1625
    %v1627 = vrot.slane %v1626, 1
    %v1628 = vmax.f32 %v1626, %v1627
    %v1629 = vsel %vm1026, %v706, -inf
    %v1630 = vrot.slane %v1629, 4
    %v1631 = vmax.f32 %v1629, %v1630
    %v1632 = vrot.slane %v1631, 2
    %v1633 = vmax.f32 %v1631, %v1632
    %v1634 = vrot.slane %v1633, 1
    %v1635 = vmax.f32 %v1633, %v1634
    %v1636 = vsel %vm1026, %v707, -inf
    %v1637 = vrot.slane %v1636, 4
    %v1638 = vmax.f32 %v1636, %v1637
    %v1639 = vrot.slane %v1638, 2
    %v1640 = vmax.f32 %v1638, %v1639
    %v1641 = vrot.slane %v1640, 1
    %v1642 = vmax.f32 %v1640, %v1641
    %v1643 = vsel %vm1026, %v536, -inf
    %v1644 = vrot.slane %v1643, 4
    %v1645 = vmax.f32 %v1643, %v1644
    %v1646 = vrot.slane %v1645, 2
    %v1647 = vmax.f32 %v1645, %v1646
    %v1648 = vrot.slane %v1647, 1
    %v1649 = vmax.f32 %v1647, %v1648
    %v1650 = vsel %vm1026, %v708, -inf
    %v1651 = vrot.slane %v1650, 4
    %v1652 = vmax.f32 %v1650, %v1651
    %v1653 = vrot.slane %v1652, 2
    %v1654 = vmax.f32 %v1652, %v1653
    %v1655 = vrot.slane %v1654, 1
    %v1656 = vmax.f32 %v1654, %v1655
    %v1657 = vsel %vm1026, %v709, -inf
    %v1658 = vrot.slane %v1657, 4
    %v1659 = vmax.f32 %v1657, %v1658
    %v1660 = vrot.slane %v1659, 2
    %v1661 = vmax.f32 %v1659, %v1660
    %v1662 = vrot.slane %v1661, 1
    %v1663 = vmax.f32 %v1661, %v1662
    %v1664 = vsel %vm1026, %v710, -inf
    %v1665 = vrot.slane %v1664, 4
    %v1666 = vmax.f32 %v1664, %v1665
    %v1667 = vrot.slane %v1666, 2
    %v1668 = vmax.f32 %v1666, %v1667
    %v1669 = vrot.slane %v1668, 1
    %v1670 = vmax.f32 %v1668, %v1669
    %v1671 = vsel %vm1026, %v537, -inf
    %v1672 = vrot.slane %v1671, 4
    %v1673 = vmax.f32 %v1671, %v1672
    %v1674 = vrot.slane %v1673, 2
    %v1675 = vmax.f32 %v1673, %v1674
    %v1676 = vrot.slane %v1675, 1
    %v1677 = vmax.f32 %v1675, %v1676
    %v1678 = vsel %vm1026, %v711, -inf
    %v1679 = vrot.slane %v1678, 4
    %v1680 = vmax.f32 %v1678, %v1679
    %v1681 = vrot.slane %v1680, 2
    %v1682 = vmax.f32 %v1680, %v1681
    %v1683 = vrot.slane %v1682, 1
    %v1684 = vmax.f32 %v1682, %v1683
    %v1685 = vsel %vm1026, %v712, -inf
    %v1686 = vrot.slane %v1685, 4
    %v1687 = vmax.f32 %v1685, %v1686
    %v1688 = vrot.slane %v1687, 2
    %v1689 = vmax.f32 %v1687, %v1688
    %v1690 = vrot.slane %v1689, 1
    %v1691 = vmax.f32 %v1689, %v1690
    %v1692 = vsel %vm1026, %v713, -inf
    %v1693 = vrot.slane %v1692, 4
    %v1694 = vmax.f32 %v1692, %v1693
    %v1695 = vrot.slane %v1694, 2
    %v1696 = vmax.f32 %v1694, %v1695
    %v1697 = vrot.slane %v1696, 1
    %v1698 = vmax.f32 %v1696, %v1697
    %v1699 = vsel %vm1026, %v538, -inf
    %v1700 = vrot.slane %v1699, 4
    %v1701 = vmax.f32 %v1699, %v1700
    %v1702 = vrot.slane %v1701, 2
    %v1703 = vmax.f32 %v1701, %v1702
    %v1704 = vrot.slane %v1703, 1
    %v1705 = vmax.f32 %v1703, %v1704
    %v1706 = vsel %vm1026, %v714, -inf
    %v1707 = vrot.slane %v1706, 4
    %v1708 = vmax.f32 %v1706, %v1707
    %v1709 = vrot.slane %v1708, 2
    %v1710 = vmax.f32 %v1708, %v1709
    %v1711 = vrot.slane %v1710, 1
    %v1712 = vmax.f32 %v1710, %v1711
    %v1713 = vsel %vm1026, %v715, -inf
    %v1714 = vrot.slane %v1713, 4
    %v1715 = vmax.f32 %v1713, %v1714
    %v1716 = vrot.slane %v1715, 2
    %v1717 = vmax.f32 %v1715, %v1716
    %v1718 = vrot.slane %v1717, 1
    %v1719 = vmax.f32 %v1717, %v1718
    %v1720 = vsel %vm1026, %v716, -inf
    %v1721 = vrot.slane %v1720, 4
    %v1722 = vmax.f32 %v1720, %v1721
    %v1723 = vrot.slane %v1722, 2
    %v1724 = vmax.f32 %v1722, %v1723
    %v1725 = vrot.slane %v1724, 1
    %v1726 = vmax.f32 %v1724, %v1725
    %v1727 = vsel %vm1026, %v539, -inf
    %v1728 = vrot.slane %v1727, 4
    %v1729 = vmax.f32 %v1727, %v1728
    %v1730 = vrot.slane %v1729, 2
    %v1731 = vmax.f32 %v1729, %v1730
    %v1732 = vrot.slane %v1731, 1
    %v1733 = vmax.f32 %v1731, %v1732
    %v1734 = vsel %vm1026, %v717, -inf
    %v1735 = vrot.slane %v1734, 4
    %v1736 = vmax.f32 %v1734, %v1735
    %v1737 = vrot.slane %v1736, 2
    %v1738 = vmax.f32 %v1736, %v1737
    %v1739 = vrot.slane %v1738, 1
    %v1740 = vmax.f32 %v1738, %v1739
    %v1741 = vsel %vm1026, %v718, -inf
    %v1742 = vrot.slane %v1741, 4
    %v1743 = vmax.f32 %v1741, %v1742
    %v1744 = vrot.slane %v1743, 2
    %v1745 = vmax.f32 %v1743, %v1744
    %v1746 = vrot.slane %v1745, 1
    %v1747 = vmax.f32 %v1745, %v1746
    %v1748 = vsel %vm1026, %v719, -inf
    %v1749 = vrot.slane %v1748, 4
    %v1750 = vmax.f32 %v1748, %v1749
    %v1751 = vrot.slane %v1750, 2
    %v1752 = vmax.f32 %v1750, %v1751
    %v1753 = vrot.slane %v1752, 1
    %v1754 = vmax.f32 %v1752, %v1753
    %v1755 = vsel %vm1026, %v540, -inf
    %v1756 = vrot.slane %v1755, 4
    %v1757 = vmax.f32 %v1755, %v1756
    %v1758 = vrot.slane %v1757, 2
    %v1759 = vmax.f32 %v1757, %v1758
    %v1760 = vrot.slane %v1759, 1
    %v1761 = vmax.f32 %v1759, %v1760
    %v1762 = vsel %vm1026, %v720, -inf
    %v1763 = vrot.slane %v1762, 4
    %v1764 = vmax.f32 %v1762, %v1763
    %v1765 = vrot.slane %v1764, 2
    %v1766 = vmax.f32 %v1764, %v1765
    %v1767 = vrot.slane %v1766, 1
    %v1768 = vmax.f32 %v1766, %v1767
    %v1769 = vsel %vm1026, %v721, -inf
    %v1770 = vrot.slane %v1769, 4
    %v1771 = vmax.f32 %v1769, %v1770
    %v1772 = vrot.slane %v1771, 2
    %v1773 = vmax.f32 %v1771, %v1772
    %v1774 = vrot.slane %v1773, 1
    %v1775 = vmax.f32 %v1773, %v1774
    %v1776 = vsel %vm1026, %v722, -inf
    %v1777 = vrot.slane %v1776, 4
    %v1778 = vmax.f32 %v1776, %v1777
    %v1779 = vrot.slane %v1778, 2
    %v1780 = vmax.f32 %v1778, %v1779
    %v1781 = vrot.slane %v1780, 1
    %v1782 = vmax.f32 %v1780, %v1781
    %v1783 = vsel %vm1026, %v541, -inf
    %v1784 = vrot.slane %v1783, 4
    %v1785 = vmax.f32 %v1783, %v1784
    %v1786 = vrot.slane %v1785, 2
    %v1787 = vmax.f32 %v1785, %v1786
    %v1788 = vrot.slane %v1787, 1
    %v1789 = vmax.f32 %v1787, %v1788
    %v1790 = vsel %vm1026, %v723, -inf
    %v1791 = vrot.slane %v1790, 4
    %v1792 = vmax.f32 %v1790, %v1791
    %v1793 = vrot.slane %v1792, 2
    %v1794 = vmax.f32 %v1792, %v1793
    %v1795 = vrot.slane %v1794, 1
    %v1796 = vmax.f32 %v1794, %v1795
    %v1797 = vsel %vm1026, %v724, -inf
    %v1798 = vrot.slane %v1797, 4
    %v1799 = vmax.f32 %v1797, %v1798
    %v1800 = vrot.slane %v1799, 2
    %v1801 = vmax.f32 %v1799, %v1800
    %v1802 = vrot.slane %v1801, 1
    %v1803 = vmax.f32 %v1801, %v1802
    %v1804 = vsel %vm1026, %v725, -inf
    %v1805 = vrot.slane %v1804, 4
    %v1806 = vmax.f32 %v1804, %v1805
    %v1807 = vrot.slane %v1806, 2
    %v1808 = vmax.f32 %v1806, %v1807
    %v1809 = vrot.slane %v1808, 1
    %v1810 = vmax.f32 %v1808, %v1809
    %v1811 = vsel %vm1026, %v542, -inf
    %v1812 = vrot.slane %v1811, 4
    %v1813 = vmax.f32 %v1811, %v1812
    %v1814 = vrot.slane %v1813, 2
    %v1815 = vmax.f32 %v1813, %v1814
    %v1816 = vrot.slane %v1815, 1
    %v1817 = vmax.f32 %v1815, %v1816
    %v1818 = vsel %vm1026, %v726, -inf
    %v1819 = vrot.slane %v1818, 4
    %v1820 = vmax.f32 %v1818, %v1819
    %v1821 = vrot.slane %v1820, 2
    %v1822 = vmax.f32 %v1820, %v1821
    %v1823 = vrot.slane %v1822, 1
    %v1824 = vmax.f32 %v1822, %v1823
    %v1825 = vsel %vm1026, %v727, -inf
    %v1826 = vrot.slane %v1825, 4
    %v1827 = vmax.f32 %v1825, %v1826
    %v1828 = vrot.slane %v1827, 2
    %v1829 = vmax.f32 %v1827, %v1828
    %v1830 = vrot.slane %v1829, 1
    %v1831 = vmax.f32 %v1829, %v1830
    %v1832 = vsel %vm1026, %v728, -inf
    %v1833 = vrot.slane %v1832, 4
    %v1834 = vmax.f32 %v1832, %v1833
    %v1835 = vrot.slane %v1834, 2
    %v1836 = vmax.f32 %v1834, %v1835
    %v1837 = vrot.slane %v1836, 1
    %v1838 = vmax.f32 %v1836, %v1837
    %v1839 = vsel %vm1026, %v543, -inf
    %v1840 = vrot.slane %v1839, 4
    %v1841 = vmax.f32 %v1839, %v1840
    %v1842 = vrot.slane %v1841, 2
    %v1843 = vmax.f32 %v1841, %v1842
    %v1844 = vrot.slane %v1843, 1
    %v1845 = vmax.f32 %v1843, %v1844
    %v1846 = vsel %vm1026, %v729, -inf
    %v1847 = vrot.slane %v1846, 4
    %v1848 = vmax.f32 %v1846, %v1847
    %v1849 = vrot.slane %v1848, 2
    %v1850 = vmax.f32 %v1848, %v1849
    %v1851 = vrot.slane %v1850, 1
    %v1852 = vmax.f32 %v1850, %v1851
    %v1853 = vsel %vm1026, %v730, -inf
    %v1854 = vrot.slane %v1853, 4
    %v1855 = vmax.f32 %v1853, %v1854
    %v1856 = vrot.slane %v1855, 2
    %v1857 = vmax.f32 %v1855, %v1856
    %v1858 = vrot.slane %v1857, 1
    %v1859 = vmax.f32 %v1857, %v1858
    %v1860 = vsel %vm1026, %v731, -inf
    %v1861 = vrot.slane %v1860, 4
    %v1862 = vmax.f32 %v1860, %v1861
    %v1863 = vrot.slane %v1862, 2
    %v1864 = vmax.f32 %v1862, %v1863
    %v1865 = vrot.slane %v1864, 1
    %v1866 = vmax.f32 %v1864, %v1865
    %v1867 = vsel %vm1026, %v544, -inf
    %v1868 = vrot.slane %v1867, 4
    %v1869 = vmax.f32 %v1867, %v1868
    %v1870 = vrot.slane %v1869, 2
    %v1871 = vmax.f32 %v1869, %v1870
    %v1872 = vrot.slane %v1871, 1
    %v1873 = vmax.f32 %v1871, %v1872
    %v1874 = vsel %vm1026, %v732, -inf
    %v1875 = vrot.slane %v1874, 4
    %v1876 = vmax.f32 %v1874, %v1875
    %v1877 = vrot.slane %v1876, 2
    %v1878 = vmax.f32 %v1876, %v1877
    %v1879 = vrot.slane %v1878, 1
    %v1880 = vmax.f32 %v1878, %v1879
    %v1881 = vsel %vm1026, %v733, -inf
    %v1882 = vrot.slane %v1881, 4
    %v1883 = vmax.f32 %v1881, %v1882
    %v1884 = vrot.slane %v1883, 2
    %v1885 = vmax.f32 %v1883, %v1884
    %v1886 = vrot.slane %v1885, 1
    %v1887 = vmax.f32 %v1885, %v1886
    %v1888 = vsel %vm1026, %v734, -inf
    %v1889 = vrot.slane %v1888, 4
    %v1890 = vmax.f32 %v1888, %v1889
    %v1891 = vrot.slane %v1890, 2
    %v1892 = vmax.f32 %v1890, %v1891
    %v1893 = vrot.slane %v1892, 1
    %v1894 = vmax.f32 %v1892, %v1893
    %v1895 = vsel %vm1026, %v545, -inf
    %v1896 = vrot.slane %v1895, 4
    %v1897 = vmax.f32 %v1895, %v1896
    %v1898 = vrot.slane %v1897, 2
    %v1899 = vmax.f32 %v1897, %v1898
    %v1900 = vrot.slane %v1899, 1
    %v1901 = vmax.f32 %v1899, %v1900
    %v1902 = vsel %vm1026, %v735, -inf
    %v1903 = vrot.slane %v1902, 4
    %v1904 = vmax.f32 %v1902, %v1903
    %v1905 = vrot.slane %v1904, 2
    %v1906 = vmax.f32 %v1904, %v1905
    %v1907 = vrot.slane %v1906, 1
    %v1908 = vmax.f32 %v1906, %v1907
    %v1909 = vsel %vm1026, %v736, -inf
    %v1910 = vrot.slane %v1909, 4
    %v1911 = vmax.f32 %v1909, %v1910
    %v1912 = vrot.slane %v1911, 2
    %v1913 = vmax.f32 %v1911, %v1912
    %v1914 = vrot.slane %v1913, 1
    %v1915 = vmax.f32 %v1913, %v1914
    %v1916 = vsel %vm1026, %v737, -inf
    %v1917 = vrot.slane %v1916, 4
    %v1918 = vmax.f32 %v1916, %v1917
    %v1919 = vrot.slane %v1918, 2
    %v1920 = vmax.f32 %v1918, %v1919
    %v1921 = vrot.slane %v1920, 1
    %v1922 = vmax.f32 %v1920, %v1921
    %v1923 = vsel %vm1026, %v546, -inf
    %v1924 = vrot.slane %v1923, 4
    %v1925 = vmax.f32 %v1923, %v1924
    %v1926 = vrot.slane %v1925, 2
    %v1927 = vmax.f32 %v1925, %v1926
    %v1928 = vrot.slane %v1927, 1
    %v1929 = vmax.f32 %v1927, %v1928
    %v1930 = vsel %vm1026, %v738, -inf
    %v1931 = vrot.slane %v1930, 4
    %v1932 = vmax.f32 %v1930, %v1931
    %v1933 = vrot.slane %v1932, 2
    %v1934 = vmax.f32 %v1932, %v1933
    %v1935 = vrot.slane %v1934, 1
    %v1936 = vmax.f32 %v1934, %v1935
    %v1937 = vsel %vm1026, %v739, -inf
    %v1938 = vrot.slane %v1937, 4
    %v1939 = vmax.f32 %v1937, %v1938
    %v1940 = vrot.slane %v1939, 2
    %v1941 = vmax.f32 %v1939, %v1940
    %v1942 = vrot.slane %v1941, 1
    %v1943 = vmax.f32 %v1941, %v1942
    %v1944 = vsel %vm1026, %v740, -inf
    %v1945 = vrot.slane %v1944, 4
    %v1946 = vmax.f32 %v1944, %v1945
    %v1947 = vrot.slane %v1946, 2
    %v1948 = vmax.f32 %v1946, %v1947
    %v1949 = vrot.slane %v1948, 1
    %v1950 = vmax.f32 %v1948, %v1949
    %v1951 = vsel %vm1026, %v547, -inf
    %v1952 = vrot.slane %v1951, 4
    %v1953 = vmax.f32 %v1951, %v1952
    %v1954 = vrot.slane %v1953, 2
    %v1955 = vmax.f32 %v1953, %v1954
    %v1956 = vrot.slane %v1955, 1
    %v1957 = vmax.f32 %v1955, %v1956
    %v1958 = vsel %vm1026, %v741, -inf
    %v1959 = vrot.slane %v1958, 4
    %v1960 = vmax.f32 %v1958, %v1959
    %v1961 = vrot.slane %v1960, 2
    %v1962 = vmax.f32 %v1960, %v1961
    %v1963 = vrot.slane %v1962, 1
    %v1964 = vmax.f32 %v1962, %v1963
    %v1965 = vsel %vm1026, %v742, -inf
    %v1966 = vrot.slane %v1965, 4
    %v1967 = vmax.f32 %v1965, %v1966
    %v1968 = vrot.slane %v1967, 2
    %v1969 = vmax.f32 %v1967, %v1968
    %v1970 = vrot.slane %v1969, 1
    %v1971 = vmax.f32 %v1969, %v1970
    %v1972 = vsel %vm1026, %v743, -inf
    %v1973 = vrot.slane %v1972, 4
    %v1974 = vmax.f32 %v1972, %v1973
    %v1975 = vrot.slane %v1974, 2
    %v1976 = vmax.f32 %v1974, %v1975
    %v1977 = vrot.slane %v1976, 1
    %v1978 = vmax.f32 %v1976, %v1977
    %v1979 = vsel %vm1026, %v548, -inf
    %v1980 = vrot.slane %v1979, 4
    %v1981 = vmax.f32 %v1979, %v1980
    %v1982 = vrot.slane %v1981, 2
    %v1983 = vmax.f32 %v1981, %v1982
    %v1984 = vrot.slane %v1983, 1
    %v1985 = vmax.f32 %v1983, %v1984
    %v1986 = vsel %vm1026, %v744, -inf
    %v1987 = vrot.slane %v1986, 4
    %v1988 = vmax.f32 %v1986, %v1987
    %v1989 = vrot.slane %v1988, 2
    %v1990 = vmax.f32 %v1988, %v1989
    %v1991 = vrot.slane %v1990, 1
    %v1992 = vmax.f32 %v1990, %v1991
    %v1993 = vsel %vm1026, %v745, -inf
    %v1994 = vrot.slane %v1993, 4
    %v1995 = vmax.f32 %v1993, %v1994
    %v1996 = vrot.slane %v1995, 2
    %v1997 = vmax.f32 %v1995, %v1996
    %v1998 = vrot.slane %v1997, 1
    %v1999 = vmax.f32 %v1997, %v1998
    %v2000 = vsel %vm1026, %v746, -inf
    %v2001 = vrot.slane %v2000, 4
    %v2002 = vmax.f32 %v2000, %v2001
    %v2003 = vrot.slane %v2002, 2
    %v2004 = vmax.f32 %v2002, %v2003
    %v2005 = vrot.slane %v2004, 1
    %v2006 = vmax.f32 %v2004, %v2005
    %v2007 = vsel %vm1026, %v549, -inf
    %v2008 = vrot.slane %v2007, 4
    %v2009 = vmax.f32 %v2007, %v2008
    %v2010 = vrot.slane %v2009, 2
    %v2011 = vmax.f32 %v2009, %v2010
    %v2012 = vrot.slane %v2011, 1
    %v2013 = vmax.f32 %v2011, %v2012
    %v2014 = vsel %vm1026, %v747, -inf
    %v2015 = vrot.slane %v2014, 4
    %v2016 = vmax.f32 %v2014, %v2015
    %v2017 = vrot.slane %v2016, 2
    %v2018 = vmax.f32 %v2016, %v2017
    %v2019 = vrot.slane %v2018, 1
    %v2020 = vmax.f32 %v2018, %v2019
    %v2021 = vsel %vm1026, %v748, -inf
    %v2022 = vrot.slane %v2021, 4
    %v2023 = vmax.f32 %v2021, %v2022
    %v2024 = vrot.slane %v2023, 2
    %v2025 = vmax.f32 %v2023, %v2024
    %v2026 = vrot.slane %v2025, 1
    %v2027 = vmax.f32 %v2025, %v2026
    %v2028 = vsel %vm1026, %v749, -inf
    %v2029 = vrot.slane %v2028, 4
    %v2030 = vmax.f32 %v2028, %v2029
    %v2031 = vrot.slane %v2030, 2
    %v2032 = vmax.f32 %v2030, %v2031
    %v2033 = vrot.slane %v2032, 1
    %v2034 = vmax.f32 %v2032, %v2033
    %v2035 = vsel %vm1026, %v550, -inf
    %v2036 = vrot.slane %v2035, 4
    %v2037 = vmax.f32 %v2035, %v2036
    %v2038 = vrot.slane %v2037, 2
    %v2039 = vmax.f32 %v2037, %v2038
    %v2040 = vrot.slane %v2039, 1
    %v2041 = vmax.f32 %v2039, %v2040
    %v2042 = vsel %vm1026, %v750, -inf
    %v2043 = vrot.slane %v2042, 4
    %v2044 = vmax.f32 %v2042, %v2043
    %v2045 = vrot.slane %v2044, 2
    %v2046 = vmax.f32 %v2044, %v2045
    %v2047 = vrot.slane %v2046, 1
    %v2048 = vmax.f32 %v2046, %v2047
    %v2049 = vsel %vm1026, %v751, -inf
    %v2050 = vrot.slane %v2049, 4
    %v2051 = vmax.f32 %v2049, %v2050
    %v2052 = vrot.slane %v2051, 2
    %v2053 = vmax.f32 %v2051, %v2052
    %v2054 = vrot.slane %v2053, 1
    %v2055 = vmax.f32 %v2053, %v2054
    %v2056 = vsel %vm1026, %v752, -inf
    %v2057 = vrot.slane %v2056, 4
    %v2058 = vmax.f32 %v2056, %v2057
    %v2059 = vrot.slane %v2058, 2
    %v2060 = vmax.f32 %v2058, %v2059
    %v2061 = vrot.slane %v2060, 1
    %v2062 = vmax.f32 %v2060, %v2061
    %v2063 = vsel %vm1026, %v551, -inf
    %v2064 = vrot.slane %v2063, 4
    %v2065 = vmax.f32 %v2063, %v2064
    %v2066 = vrot.slane %v2065, 2
    %v2067 = vmax.f32 %v2065, %v2066
    %v2068 = vrot.slane %v2067, 1
    %v2069 = vmax.f32 %v2067, %v2068
    %v2070 = vsel %vm1026, %v753, -inf
    %v2071 = vrot.slane %v2070, 4
    %v2072 = vmax.f32 %v2070, %v2071
    %v2073 = vrot.slane %v2072, 2
    %v2074 = vmax.f32 %v2072, %v2073
    %v2075 = vrot.slane %v2074, 1
    %v2076 = vmax.f32 %v2074, %v2075
    %v2077 = vsel %vm1026, %v754, -inf
    %v2078 = vrot.slane %v2077, 4
    %v2079 = vmax.f32 %v2077, %v2078
    %v2080 = vrot.slane %v2079, 2
    %v2081 = vmax.f32 %v2079, %v2080
    %v2082 = vrot.slane %v2081, 1
    %v2083 = vmax.f32 %v2081, %v2082
    %v2084 = vsel %vm1026, %v755, -inf
    %v2085 = vrot.slane %v2084, 4
    %v2086 = vmax.f32 %v2084, %v2085
    %v2087 = vrot.slane %v2086, 2
    %v2088 = vmax.f32 %v2086, %v2087
    %v2089 = vrot.slane %v2088, 1
    %v2090 = vmax.f32 %v2088, %v2089
    %v2091 = vsel %vm1026, %v552, -inf
    %v2092 = vrot.slane %v2091, 4
    %v2093 = vmax.f32 %v2091, %v2092
    %v2094 = vrot.slane %v2093, 2
    %v2095 = vmax.f32 %v2093, %v2094
    %v2096 = vrot.slane %v2095, 1
    %v2097 = vmax.f32 %v2095, %v2096
    %v2098 = vsel %vm1026, %v756, -inf
    %v2099 = vrot.slane %v2098, 4
    %v2100 = vmax.f32 %v2098, %v2099
    %v2101 = vrot.slane %v2100, 2
    %v2102 = vmax.f32 %v2100, %v2101
    %v2103 = vrot.slane %v2102, 1
    %v2104 = vmax.f32 %v2102, %v2103
    %v2105 = vsel %vm1026, %v757, -inf
    %v2106 = vrot.slane %v2105, 4
    %v2107 = vmax.f32 %v2105, %v2106
    %v2108 = vrot.slane %v2107, 2
    %v2109 = vmax.f32 %v2107, %v2108
    %v2110 = vrot.slane %v2109, 1
    %v2111 = vmax.f32 %v2109, %v2110
    %v2112 = vsel %vm1026, %v758, -inf
    %v2113 = vrot.slane %v2112, 4
    %v2114 = vmax.f32 %v2112, %v2113
    %v2115 = vrot.slane %v2114, 2
    %v2116 = vmax.f32 %v2114, %v2115
    %v2117 = vrot.slane %v2116, 1
    %v2118 = vmax.f32 %v2116, %v2117
    %v2119 = vsel %vm1026, %v553, -inf
    %v2120 = vrot.slane %v2119, 4
    %v2121 = vmax.f32 %v2119, %v2120
    %v2122 = vrot.slane %v2121, 2
    %v2123 = vmax.f32 %v2121, %v2122
    %v2124 = vrot.slane %v2123, 1
    %v2125 = vmax.f32 %v2123, %v2124
    %v2126 = vsel %vm1026, %v759, -inf
    %v2127 = vrot.slane %v2126, 4
    %v2128 = vmax.f32 %v2126, %v2127
    %v2129 = vrot.slane %v2128, 2
    %v2130 = vmax.f32 %v2128, %v2129
    %v2131 = vrot.slane %v2130, 1
    %v2132 = vmax.f32 %v2130, %v2131
    %v2133 = vsel %vm1026, %v760, -inf
    %v2134 = vrot.slane %v2133, 4
    %v2135 = vmax.f32 %v2133, %v2134
    %v2136 = vrot.slane %v2135, 2
    %v2137 = vmax.f32 %v2135, %v2136
    %v2138 = vrot.slane %v2137, 1
    %v2139 = vmax.f32 %v2137, %v2138
    %v2140 = vsel %vm1026, %v761, -inf
    %v2141 = vrot.slane %v2140, 4
    %v2142 = vmax.f32 %v2140, %v2141
    %v2143 = vrot.slane %v2142, 2
    %v2144 = vmax.f32 %v2142, %v2143
    %v2145 = vrot.slane %v2144, 1
    %v2146 = vmax.f32 %v2144, %v2145
    %v2147 = vsel %vm1026, %v554, -inf
    %v2148 = vrot.slane %v2147, 4
    %v2149 = vmax.f32 %v2147, %v2148
    %v2150 = vrot.slane %v2149, 2
    %v2151 = vmax.f32 %v2149, %v2150
    %v2152 = vrot.slane %v2151, 1
    %v2153 = vmax.f32 %v2151, %v2152
    %v2154 = vsel %vm1026, %v762, -inf
    %v2155 = vrot.slane %v2154, 4
    %v2156 = vmax.f32 %v2154, %v2155
    %v2157 = vrot.slane %v2156, 2
    %v2158 = vmax.f32 %v2156, %v2157
    %v2159 = vrot.slane %v2158, 1
    %v2160 = vmax.f32 %v2158, %v2159
    %v2161 = vsel %vm1026, %v763, -inf
    %v2162 = vrot.slane %v2161, 4
    %v2163 = vmax.f32 %v2161, %v2162
    %v2164 = vrot.slane %v2163, 2
    %v2165 = vmax.f32 %v2163, %v2164
    %v2166 = vrot.slane %v2165, 1
    %v2167 = vmax.f32 %v2165, %v2166
    %v2168 = vsel %vm1026, %v764, -inf
    %v2169 = vrot.slane %v2168, 4
    %v2170 = vmax.f32 %v2168, %v2169
    %v2171 = vrot.slane %v2170, 2
    %v2172 = vmax.f32 %v2170, %v2171
    %v2173 = vrot.slane %v2172, 1
    %v2174 = vmax.f32 %v2172, %v2173
    %v2175 = vsel %vm1026, %v555, -inf
    %v2176 = vrot.slane %v2175, 4
    %v2177 = vmax.f32 %v2175, %v2176
    %v2178 = vrot.slane %v2177, 2
    %v2179 = vmax.f32 %v2177, %v2178
    %v2180 = vrot.slane %v2179, 1
    %v2181 = vmax.f32 %v2179, %v2180
    %v2182 = vsel %vm1026, %v765, -inf
    %v2183 = vrot.slane %v2182, 4
    %v2184 = vmax.f32 %v2182, %v2183
    %v2185 = vrot.slane %v2184, 2
    %v2186 = vmax.f32 %v2184, %v2185
    %v2187 = vrot.slane %v2186, 1
    %v2188 = vmax.f32 %v2186, %v2187
    %v2189 = vsel %vm1026, %v766, -inf
    %v2190 = vrot.slane %v2189, 4
    %v2191 = vmax.f32 %v2189, %v2190
    %v2192 = vrot.slane %v2191, 2
    %v2193 = vmax.f32 %v2191, %v2192
    %v2194 = vrot.slane %v2193, 1
    %v2195 = vmax.f32 %v2193, %v2194
    %v2196 = vsel %vm1026, %v767, -inf
    %v2197 = vrot.slane %v2196, 4
    %v2198 = vmax.f32 %v2196, %v2197
    %v2199 = vrot.slane %v2198, 2
    %v2200 = vmax.f32 %v2198, %v2199
    %v2201 = vrot.slane %v2200, 1
    %v2202 = vmax.f32 %v2200, %v2201
    %v2203 = vsel %vm1026, %v556, -inf
    %v2204 = vrot.slane %v2203, 4
    %v2205 = vmax.f32 %v2203, %v2204
    %v2206 = vrot.slane %v2205, 2
    %v2207 = vmax.f32 %v2205, %v2206
    %v2208 = vrot.slane %v2207, 1
    %v2209 = vmax.f32 %v2207, %v2208
    %v2210 = vsel %vm1026, %v768, -inf
    %v2211 = vrot.slane %v2210, 4
    %v2212 = vmax.f32 %v2210, %v2211
    %v2213 = vrot.slane %v2212, 2
    %v2214 = vmax.f32 %v2212, %v2213
    %v2215 = vrot.slane %v2214, 1
    %v2216 = vmax.f32 %v2214, %v2215
    %v2217 = vsel %vm1026, %v769, -inf
    %v2218 = vrot.slane %v2217, 4
    %v2219 = vmax.f32 %v2217, %v2218
    %v2220 = vrot.slane %v2219, 2
    %v2221 = vmax.f32 %v2219, %v2220
    %v2222 = vrot.slane %v2221, 1
    %v2223 = vmax.f32 %v2221, %v2222
    %v2224 = vsel %vm1026, %v770, -inf
    %v2225 = vrot.slane %v2224, 4
    %v2226 = vmax.f32 %v2224, %v2225
    %v2227 = vrot.slane %v2226, 2
    %v2228 = vmax.f32 %v2226, %v2227
    %v2229 = vrot.slane %v2228, 1
    %v2230 = vmax.f32 %v2228, %v2229
    %v2231 = vsel %vm1026, %v557, -inf
    %v2232 = vrot.slane %v2231, 4
    %v2233 = vmax.f32 %v2231, %v2232
    %v2234 = vrot.slane %v2233, 2
    %v2235 = vmax.f32 %v2233, %v2234
    %v2236 = vrot.slane %v2235, 1
    %v2237 = vmax.f32 %v2235, %v2236
    %v2238 = vsel %vm1026, %v771, -inf
    %v2239 = vrot.slane %v2238, 4
    %v2240 = vmax.f32 %v2238, %v2239
    %v2241 = vrot.slane %v2240, 2
    %v2242 = vmax.f32 %v2240, %v2241
    %v2243 = vrot.slane %v2242, 1
    %v2244 = vmax.f32 %v2242, %v2243
    %v2245 = vsel %vm1026, %v772, -inf
    %v2246 = vrot.slane %v2245, 4
    %v2247 = vmax.f32 %v2245, %v2246
    %v2248 = vrot.slane %v2247, 2
    %v2249 = vmax.f32 %v2247, %v2248
    %v2250 = vrot.slane %v2249, 1
    %v2251 = vmax.f32 %v2249, %v2250
    %v2252 = vsel %vm1026, %v773, -inf
    %v2253 = vrot.slane %v2252, 4
    %v2254 = vmax.f32 %v2252, %v2253
    %v2255 = vrot.slane %v2254, 2
    %v2256 = vmax.f32 %v2254, %v2255
    %v2257 = vrot.slane %v2256, 1
    %v2258 = vmax.f32 %v2256, %v2257
    %v2259 = vsel %vm1026, %v558, -inf
    %v2260 = vrot.slane %v2259, 4
    %v2261 = vmax.f32 %v2259, %v2260
    %v2262 = vrot.slane %v2261, 2
    %v2263 = vmax.f32 %v2261, %v2262
    %v2264 = vrot.slane %v2263, 1
    %v2265 = vmax.f32 %v2263, %v2264
    %v2266 = vsel %vm1026, %v774, -inf
    %v2267 = vrot.slane %v2266, 4
    %v2268 = vmax.f32 %v2266, %v2267
    %v2269 = vrot.slane %v2268, 2
    %v2270 = vmax.f32 %v2268, %v2269
    %v2271 = vrot.slane %v2270, 1
    %v2272 = vmax.f32 %v2270, %v2271
    %v2273 = vsel %vm1026, %v775, -inf
    %v2274 = vrot.slane %v2273, 4
    %v2275 = vmax.f32 %v2273, %v2274
    %v2276 = vrot.slane %v2275, 2
    %v2277 = vmax.f32 %v2275, %v2276
    %v2278 = vrot.slane %v2277, 1
    %v2279 = vmax.f32 %v2277, %v2278
    %v2280 = vsel %vm1026, %v776, -inf
    %v2281 = vrot.slane %v2280, 4
    %v2282 = vmax.f32 %v2280, %v2281
    %v2283 = vrot.slane %v2282, 2
    %v2284 = vmax.f32 %v2282, %v2283
    %v2285 = vrot.slane %v2284, 1
    %v2286 = vmax.f32 %v2284, %v2285
    %v2287 = vsel %vm1026, %v559, -inf
    %v2288 = vrot.slane %v2287, 4
    %v2289 = vmax.f32 %v2287, %v2288
    %v2290 = vrot.slane %v2289, 2
    %v2291 = vmax.f32 %v2289, %v2290
    %v2292 = vrot.slane %v2291, 1
    %v2293 = vmax.f32 %v2291, %v2292
    %v2294 = vsel %vm1026, %v777, -inf
    %v2295 = vrot.slane %v2294, 4
    %v2296 = vmax.f32 %v2294, %v2295
    %v2297 = vrot.slane %v2296, 2
    %v2298 = vmax.f32 %v2296, %v2297
    %v2299 = vrot.slane %v2298, 1
    %v2300 = vmax.f32 %v2298, %v2299
    %v2301 = vsel %vm1026, %v778, -inf
    %v2302 = vrot.slane %v2301, 4
    %v2303 = vmax.f32 %v2301, %v2302
    %v2304 = vrot.slane %v2303, 2
    %v2305 = vmax.f32 %v2303, %v2304
    %v2306 = vrot.slane %v2305, 1
    %v2307 = vmax.f32 %v2305, %v2306
    %v2308 = vsel %vm1026, %v779, -inf
    %v2309 = vrot.slane %v2308, 4
    %v2310 = vmax.f32 %v2308, %v2309
    %v2311 = vrot.slane %v2310, 2
    %v2312 = vmax.f32 %v2310, %v2311
    %v2313 = vrot.slane %v2312, 1
    %v2314 = vmax.f32 %v2312, %v2313
    %v2315 = vsel %vm1026, %v560, -inf
    %v2316 = vrot.slane %v2315, 4
    %v2317 = vmax.f32 %v2315, %v2316
    %v2318 = vrot.slane %v2317, 2
    %v2319 = vmax.f32 %v2317, %v2318
    %v2320 = vrot.slane %v2319, 1
    %v2321 = vmax.f32 %v2319, %v2320
    %v2322 = vsel %vm1026, %v780, -inf
    %v2323 = vrot.slane %v2322, 4
    %v2324 = vmax.f32 %v2322, %v2323
    %v2325 = vrot.slane %v2324, 2
    %v2326 = vmax.f32 %v2324, %v2325
    %v2327 = vrot.slane %v2326, 1
    %v2328 = vmax.f32 %v2326, %v2327
    %v2329 = vsel %vm1026, %v781, -inf
    %v2330 = vrot.slane %v2329, 4
    %v2331 = vmax.f32 %v2329, %v2330
    %v2332 = vrot.slane %v2331, 2
    %v2333 = vmax.f32 %v2331, %v2332
    %v2334 = vrot.slane %v2333, 1
    %v2335 = vmax.f32 %v2333, %v2334
    %v2336 = vsel %vm1026, %v782, -inf
    %v2337 = vrot.slane %v2336, 4
    %v2338 = vmax.f32 %v2336, %v2337
    %v2339 = vrot.slane %v2338, 2
    %v2340 = vmax.f32 %v2338, %v2339
    %v2341 = vrot.slane %v2340, 1
    %v2342 = vmax.f32 %v2340, %v2341
    %v2343 = vsel %vm1026, %v561, -inf
    %v2344 = vrot.slane %v2343, 4
    %v2345 = vmax.f32 %v2343, %v2344
    %v2346 = vrot.slane %v2345, 2
    %v2347 = vmax.f32 %v2345, %v2346
    %v2348 = vrot.slane %v2347, 1
    %v2349 = vmax.f32 %v2347, %v2348
    %v2350 = vsel %vm1026, %v783, -inf
    %v2351 = vrot.slane %v2350, 4
    %v2352 = vmax.f32 %v2350, %v2351
    %v2353 = vrot.slane %v2352, 2
    %v2354 = vmax.f32 %v2352, %v2353
    %v2355 = vrot.slane %v2354, 1
    %v2356 = vmax.f32 %v2354, %v2355
    %v2357 = vsel %vm1026, %v784, -inf
    %v2358 = vrot.slane %v2357, 4
    %v2359 = vmax.f32 %v2357, %v2358
    %v2360 = vrot.slane %v2359, 2
    %v2361 = vmax.f32 %v2359, %v2360
    %v2362 = vrot.slane %v2361, 1
    %v2363 = vmax.f32 %v2361, %v2362
    %v2364 = vsel %vm1026, %v785, -inf
    %v2365 = vrot.slane %v2364, 4
    %v2366 = vmax.f32 %v2364, %v2365
    %v2367 = vrot.slane %v2366, 2
    %v2368 = vmax.f32 %v2366, %v2367
    %v2369 = vrot.slane %v2368, 1
    %v2370 = vmax.f32 %v2368, %v2369
    %v2371 = vsel %vm1026, %v562, -inf
    %v2372 = vrot.slane %v2371, 4
    %v2373 = vmax.f32 %v2371, %v2372
    %v2374 = vrot.slane %v2373, 2
    %v2375 = vmax.f32 %v2373, %v2374
    %v2376 = vrot.slane %v2375, 1
    %v2377 = vmax.f32 %v2375, %v2376
    %v2378 = vsel %vm1026, %v786, -inf
    %v2379 = vrot.slane %v2378, 4
    %v2380 = vmax.f32 %v2378, %v2379
    %v2381 = vrot.slane %v2380, 2
    %v2382 = vmax.f32 %v2380, %v2381
    %v2383 = vrot.slane %v2382, 1
    %v2384 = vmax.f32 %v2382, %v2383
    %v2385 = vsel %vm1026, %v787, -inf
    %v2386 = vrot.slane %v2385, 4
    %v2387 = vmax.f32 %v2385, %v2386
    %v2388 = vrot.slane %v2387, 2
    %v2389 = vmax.f32 %v2387, %v2388
    %v2390 = vrot.slane %v2389, 1
    %v2391 = vmax.f32 %v2389, %v2390
    %v2392 = vsel %vm1026, %v788, -inf
    %v2393 = vrot.slane %v2392, 4
    %v2394 = vmax.f32 %v2392, %v2393
    %v2395 = vrot.slane %v2394, 2
    %v2396 = vmax.f32 %v2394, %v2395
    %v2397 = vrot.slane %v2396, 1
    %v2398 = vmax.f32 %v2396, %v2397
    %v2399 = vsel %vm1026, %v563, -inf
    %v2400 = vrot.slane %v2399, 4
    %v2401 = vmax.f32 %v2399, %v2400
    %v2402 = vrot.slane %v2401, 2
    %v2403 = vmax.f32 %v2401, %v2402
    %v2404 = vrot.slane %v2403, 1
    %v2405 = vmax.f32 %v2403, %v2404
    %v2406 = vsel %vm1026, %v789, -inf
    %v2407 = vrot.slane %v2406, 4
    %v2408 = vmax.f32 %v2406, %v2407
    %v2409 = vrot.slane %v2408, 2
    %v2410 = vmax.f32 %v2408, %v2409
    %v2411 = vrot.slane %v2410, 1
    %v2412 = vmax.f32 %v2410, %v2411
    %v2413 = vsel %vm1026, %v790, -inf
    %v2414 = vrot.slane %v2413, 4
    %v2415 = vmax.f32 %v2413, %v2414
    %v2416 = vrot.slane %v2415, 2
    %v2417 = vmax.f32 %v2415, %v2416
    %v2418 = vrot.slane %v2417, 1
    %v2419 = vmax.f32 %v2417, %v2418
    %v2420 = vsel %vm1026, %v791, -inf
    %v2421 = vrot.slane %v2420, 4
    %v2422 = vmax.f32 %v2420, %v2421
    %v2423 = vrot.slane %v2422, 2
    %v2424 = vmax.f32 %v2422, %v2423
    %v2425 = vrot.slane %v2424, 1
    %v2426 = vmax.f32 %v2424, %v2425
    %v2427 = vsel %vm1026, %v564, -inf
    %v2428 = vrot.slane %v2427, 4
    %v2429 = vmax.f32 %v2427, %v2428
    %v2430 = vrot.slane %v2429, 2
    %v2431 = vmax.f32 %v2429, %v2430
    %v2432 = vrot.slane %v2431, 1
    %v2433 = vmax.f32 %v2431, %v2432
    %v2434 = vsel %vm1026, %v792, -inf
    %v2435 = vrot.slane %v2434, 4
    %v2436 = vmax.f32 %v2434, %v2435
    %v2437 = vrot.slane %v2436, 2
    %v2438 = vmax.f32 %v2436, %v2437
    %v2439 = vrot.slane %v2438, 1
    %v2440 = vmax.f32 %v2438, %v2439
    %v2441 = vsel %vm1026, %v793, -inf
    %v2442 = vrot.slane %v2441, 4
    %v2443 = vmax.f32 %v2441, %v2442
    %v2444 = vrot.slane %v2443, 2
    %v2445 = vmax.f32 %v2443, %v2444
    %v2446 = vrot.slane %v2445, 1
    %v2447 = vmax.f32 %v2445, %v2446
    %v2448 = vsel %vm1026, %v794, -inf
    %v2449 = vrot.slane %v2448, 4
    %v2450 = vmax.f32 %v2448, %v2449
    %v2451 = vrot.slane %v2450, 2
    %v2452 = vmax.f32 %v2450, %v2451
    %v2453 = vrot.slane %v2452, 1
    %v2454 = vmax.f32 %v2452, %v2453
    %v2455 = vsel %vm1026, %v565, -inf
    %v2456 = vrot.slane %v2455, 4
    %v2457 = vmax.f32 %v2455, %v2456
    %v2458 = vrot.slane %v2457, 2
    %v2459 = vmax.f32 %v2457, %v2458
    %v2460 = vrot.slane %v2459, 1
    %v2461 = vmax.f32 %v2459, %v2460
    %v2462 = vsel %vm1026, %v795, -inf
    %v2463 = vrot.slane %v2462, 4
    %v2464 = vmax.f32 %v2462, %v2463
    %v2465 = vrot.slane %v2464, 2
    %v2466 = vmax.f32 %v2464, %v2465
    %v2467 = vrot.slane %v2466, 1
    %v2468 = vmax.f32 %v2466, %v2467
    %v2469 = vsel %vm1026, %v796, -inf
    %v2470 = vrot.slane %v2469, 4
    %v2471 = vmax.f32 %v2469, %v2470
    %v2472 = vrot.slane %v2471, 2
    %v2473 = vmax.f32 %v2471, %v2472
    %v2474 = vrot.slane %v2473, 1
    %v2475 = vmax.f32 %v2473, %v2474
    %v2476 = vsel %vm1026, %v797, -inf
    %v2477 = vrot.slane %v2476, 4
    %v2478 = vmax.f32 %v2476, %v2477
    %v2479 = vrot.slane %v2478, 2
    %v2480 = vmax.f32 %v2478, %v2479
    %v2481 = vrot.slane %v2480, 1
    %v2482 = vmax.f32 %v2480, %v2481
    %v2483 = vsel %vm1026, %v566, -inf
    %v2484 = vrot.slane %v2483, 4
    %v2485 = vmax.f32 %v2483, %v2484
    %v2486 = vrot.slane %v2485, 2
    %v2487 = vmax.f32 %v2485, %v2486
    %v2488 = vrot.slane %v2487, 1
    %v2489 = vmax.f32 %v2487, %v2488
    %v2490 = vsel %vm1026, %v798, -inf
    %v2491 = vrot.slane %v2490, 4
    %v2492 = vmax.f32 %v2490, %v2491
    %v2493 = vrot.slane %v2492, 2
    %v2494 = vmax.f32 %v2492, %v2493
    %v2495 = vrot.slane %v2494, 1
    %v2496 = vmax.f32 %v2494, %v2495
    %v2497 = vsel %vm1026, %v799, -inf
    %v2498 = vrot.slane %v2497, 4
    %v2499 = vmax.f32 %v2497, %v2498
    %v2500 = vrot.slane %v2499, 2
    %v2501 = vmax.f32 %v2499, %v2500
    %v2502 = vrot.slane %v2501, 1
    %v2503 = vmax.f32 %v2501, %v2502
    %v2504 = vsel %vm1026, %v800, -inf
    %v2505 = vrot.slane %v2504, 4
    %v2506 = vmax.f32 %v2504, %v2505
    %v2507 = vrot.slane %v2506, 2
    %v2508 = vmax.f32 %v2506, %v2507
    %v2509 = vrot.slane %v2508, 1
    %v2510 = vmax.f32 %v2508, %v2509
    %v2511 = vsel %vm1026, %v567, -inf
    %v2512 = vrot.slane %v2511, 4
    %v2513 = vmax.f32 %v2511, %v2512
    %v2514 = vrot.slane %v2513, 2
    %v2515 = vmax.f32 %v2513, %v2514
    %v2516 = vrot.slane %v2515, 1
    %v2517 = vmax.f32 %v2515, %v2516
    %v2518 = vsel %vm1026, %v801, -inf
    %v2519 = vrot.slane %v2518, 4
    %v2520 = vmax.f32 %v2518, %v2519
    %v2521 = vrot.slane %v2520, 2
    %v2522 = vmax.f32 %v2520, %v2521
    %v2523 = vrot.slane %v2522, 1
    %v2524 = vmax.f32 %v2522, %v2523
    %v2525 = vsel %vm1026, %v802, -inf
    %v2526 = vrot.slane %v2525, 4
    %v2527 = vmax.f32 %v2525, %v2526
    %v2528 = vrot.slane %v2527, 2
    %v2529 = vmax.f32 %v2527, %v2528
    %v2530 = vrot.slane %v2529, 1
    %v2531 = vmax.f32 %v2529, %v2530
    %v2532 = vsel %vm1026, %v803, -inf
    %v2533 = vrot.slane %v2532, 4
    %v2534 = vmax.f32 %v2532, %v2533
    %v2535 = vrot.slane %v2534, 2
    %v2536 = vmax.f32 %v2534, %v2535
    %v2537 = vrot.slane %v2536, 1
    %v2538 = vmax.f32 %v2536, %v2537
    %v2539 = vsel %vm1026, %v568, -inf
    %v2540 = vrot.slane %v2539, 4
    %v2541 = vmax.f32 %v2539, %v2540
    %v2542 = vrot.slane %v2541, 2
    %v2543 = vmax.f32 %v2541, %v2542
    %v2544 = vrot.slane %v2543, 1
    %v2545 = vmax.f32 %v2543, %v2544
    %v2546 = vsel %vm1026, %v804, -inf
    %v2547 = vrot.slane %v2546, 4
    %v2548 = vmax.f32 %v2546, %v2547
    %v2549 = vrot.slane %v2548, 2
    %v2550 = vmax.f32 %v2548, %v2549
    %v2551 = vrot.slane %v2550, 1
    %v2552 = vmax.f32 %v2550, %v2551
    %v2553 = vsel %vm1026, %v805, -inf
    %v2554 = vrot.slane %v2553, 4
    %v2555 = vmax.f32 %v2553, %v2554
    %v2556 = vrot.slane %v2555, 2
    %v2557 = vmax.f32 %v2555, %v2556
    %v2558 = vrot.slane %v2557, 1
    %v2559 = vmax.f32 %v2557, %v2558
    %v2560 = vsel %vm1026, %v806, -inf
    %v2561 = vrot.slane %v2560, 4
    %v2562 = vmax.f32 %v2560, %v2561
    %v2563 = vrot.slane %v2562, 2
    %v2564 = vmax.f32 %v2562, %v2563
    %v2565 = vrot.slane %v2564, 1
    %v2566 = vmax.f32 %v2564, %v2565
    %v2567 = vsel %vm1026, %v569, -inf
    %v2568 = vrot.slane %v2567, 4
    %v2569 = vmax.f32 %v2567, %v2568
    %v2570 = vrot.slane %v2569, 2
    %v2571 = vmax.f32 %v2569, %v2570
    %v2572 = vrot.slane %v2571, 1
    %v2573 = vmax.f32 %v2571, %v2572
    %v2574 = vsel %vm1026, %v807, -inf
    %v2575 = vrot.slane %v2574, 4
    %v2576 = vmax.f32 %v2574, %v2575
    %v2577 = vrot.slane %v2576, 2
    %v2578 = vmax.f32 %v2576, %v2577
    %v2579 = vrot.slane %v2578, 1
    %v2580 = vmax.f32 %v2578, %v2579
    %v2581 = vsel %vm1026, %v808, -inf
    %v2582 = vrot.slane %v2581, 4
    %v2583 = vmax.f32 %v2581, %v2582
    %v2584 = vrot.slane %v2583, 2
    %v2585 = vmax.f32 %v2583, %v2584
    %v2586 = vrot.slane %v2585, 1
    %v2587 = vmax.f32 %v2585, %v2586
    %v2588 = vsel %vm1026, %v809, -inf
    %v2589 = vrot.slane %v2588, 4
    %v2590 = vmax.f32 %v2588, %v2589
    %v2591 = vrot.slane %v2590, 2
    %v2592 = vmax.f32 %v2590, %v2591
    %v2593 = vrot.slane %v2592, 1
    %v2594 = vmax.f32 %v2592, %v2593
    %v2595 = vsel %vm1026, %v570, -inf
    %v2596 = vrot.slane %v2595, 4
    %v2597 = vmax.f32 %v2595, %v2596
    %v2598 = vrot.slane %v2597, 2
    %v2599 = vmax.f32 %v2597, %v2598
    %v2600 = vrot.slane %v2599, 1
    %v2601 = vmax.f32 %v2599, %v2600
    %v2602 = vsel %vm1026, %v810, -inf
    %v2603 = vrot.slane %v2602, 4
    %v2604 = vmax.f32 %v2602, %v2603
    %v2605 = vrot.slane %v2604, 2
    %v2606 = vmax.f32 %v2604, %v2605
    %v2607 = vrot.slane %v2606, 1
    %v2608 = vmax.f32 %v2606, %v2607
    %v2609 = vsel %vm1026, %v811, -inf
    %v2610 = vrot.slane %v2609, 4
    %v2611 = vmax.f32 %v2609, %v2610
    %v2612 = vrot.slane %v2611, 2
    %v2613 = vmax.f32 %v2611, %v2612
    %v2614 = vrot.slane %v2613, 1
    %v2615 = vmax.f32 %v2613, %v2614
    %v2616 = vsel %vm1026, %v812, -inf
    %v2617 = vrot.slane %v2616, 4
    %v2618 = vmax.f32 %v2616, %v2617
    %v2619 = vrot.slane %v2618, 2
    %v2620 = vmax.f32 %v2618, %v2619
    %v2621 = vrot.slane %v2620, 1
    %v2622 = vmax.f32 %v2620, %v2621
    %v2623 = vsel %vm1026, %v571, -inf
    %v2624 = vrot.slane %v2623, 4
    %v2625 = vmax.f32 %v2623, %v2624
    %v2626 = vrot.slane %v2625, 2
    %v2627 = vmax.f32 %v2625, %v2626
    %v2628 = vrot.slane %v2627, 1
    %v2629 = vmax.f32 %v2627, %v2628
    %v2630 = vsel %vm1026, %v813, -inf
    %v2631 = vrot.slane %v2630, 4
    %v2632 = vmax.f32 %v2630, %v2631
    %v2633 = vrot.slane %v2632, 2
    %v2634 = vmax.f32 %v2632, %v2633
    %v2635 = vrot.slane %v2634, 1
    %v2636 = vmax.f32 %v2634, %v2635
    %v2637 = vsel %vm1026, %v814, -inf
    %v2638 = vrot.slane %v2637, 4
    %v2639 = vmax.f32 %v2637, %v2638
    %v2640 = vrot.slane %v2639, 2
    %v2641 = vmax.f32 %v2639, %v2640
    %v2642 = vrot.slane %v2641, 1
    %v2643 = vmax.f32 %v2641, %v2642
    %v2644 = vsel %vm1026, %v815, -inf
    %v2645 = vrot.slane %v2644, 4
    %v2646 = vmax.f32 %v2644, %v2645
    %v2647 = vrot.slane %v2646, 2
    %v2648 = vmax.f32 %v2646, %v2647
    %v2649 = vrot.slane %v2648, 1
    %v2650 = vmax.f32 %v2648, %v2649
    %v2651 = vsel %vm1026, %v572, -inf
    %v2652 = vrot.slane %v2651, 4
    %v2653 = vmax.f32 %v2651, %v2652
    %v2654 = vrot.slane %v2653, 2
    %v2655 = vmax.f32 %v2653, %v2654
    %v2656 = vrot.slane %v2655, 1
    %v2657 = vmax.f32 %v2655, %v2656
    %v2658 = vsel %vm1026, %v816, -inf
    %v2659 = vrot.slane %v2658, 4
    %v2660 = vmax.f32 %v2658, %v2659
    %v2661 = vrot.slane %v2660, 2
    %v2662 = vmax.f32 %v2660, %v2661
    %v2663 = vrot.slane %v2662, 1
    %v2664 = vmax.f32 %v2662, %v2663
    %v2665 = vsel %vm1026, %v817, -inf
    %v2666 = vrot.slane %v2665, 4
    %v2667 = vmax.f32 %v2665, %v2666
    %v2668 = vrot.slane %v2667, 2
    %v2669 = vmax.f32 %v2667, %v2668
    %v2670 = vrot.slane %v2669, 1
    %v2671 = vmax.f32 %v2669, %v2670
    %v2672 = vsel %vm1026, %v818, -inf
    %v2673 = vrot.slane %v2672, 4
    %v2674 = vmax.f32 %v2672, %v2673
    %v2675 = vrot.slane %v2674, 2
    %v2676 = vmax.f32 %v2674, %v2675
    %v2677 = vrot.slane %v2676, 1
    %v2678 = vmax.f32 %v2676, %v2677
    %v2679 = vsel %vm1026, %v573, -inf
    %v2680 = vrot.slane %v2679, 4
    %v2681 = vmax.f32 %v2679, %v2680
    %v2682 = vrot.slane %v2681, 2
    %v2683 = vmax.f32 %v2681, %v2682
    %v2684 = vrot.slane %v2683, 1
    %v2685 = vmax.f32 %v2683, %v2684
    %v2686 = vsel %vm1026, %v819, -inf
    %v2687 = vrot.slane %v2686, 4
    %v2688 = vmax.f32 %v2686, %v2687
    %v2689 = vrot.slane %v2688, 2
    %v2690 = vmax.f32 %v2688, %v2689
    %v2691 = vrot.slane %v2690, 1
    %v2692 = vmax.f32 %v2690, %v2691
    %v2693 = vsel %vm1026, %v820, -inf
    %v2694 = vrot.slane %v2693, 4
    %v2695 = vmax.f32 %v2693, %v2694
    %v2696 = vrot.slane %v2695, 2
    %v2697 = vmax.f32 %v2695, %v2696
    %v2698 = vrot.slane %v2697, 1
    %v2699 = vmax.f32 %v2697, %v2698
    %v2700 = vsel %vm1026, %v821, -inf
    %v2701 = vrot.slane %v2700, 4
    %v2702 = vmax.f32 %v2700, %v2701
    %v2703 = vrot.slane %v2702, 2
    %v2704 = vmax.f32 %v2702, %v2703
    %v2705 = vrot.slane %v2704, 1
    %v2706 = vmax.f32 %v2704, %v2705
    %v2707 = vsel %vm1026, %v574, -inf
    %v2708 = vrot.slane %v2707, 4
    %v2709 = vmax.f32 %v2707, %v2708
    %v2710 = vrot.slane %v2709, 2
    %v2711 = vmax.f32 %v2709, %v2710
    %v2712 = vrot.slane %v2711, 1
    %v2713 = vmax.f32 %v2711, %v2712
    %v2714 = vsel %vm1026, %v822, -inf
    %v2715 = vrot.slane %v2714, 4
    %v2716 = vmax.f32 %v2714, %v2715
    %v2717 = vrot.slane %v2716, 2
    %v2718 = vmax.f32 %v2716, %v2717
    %v2719 = vrot.slane %v2718, 1
    %v2720 = vmax.f32 %v2718, %v2719
    %v2721 = vsel %vm1026, %v823, -inf
    %v2722 = vrot.slane %v2721, 4
    %v2723 = vmax.f32 %v2721, %v2722
    %v2724 = vrot.slane %v2723, 2
    %v2725 = vmax.f32 %v2723, %v2724
    %v2726 = vrot.slane %v2725, 1
    %v2727 = vmax.f32 %v2725, %v2726
    %v2728 = vsel %vm1026, %v824, -inf
    %v2729 = vrot.slane %v2728, 4
    %v2730 = vmax.f32 %v2728, %v2729
    %v2731 = vrot.slane %v2730, 2
    %v2732 = vmax.f32 %v2730, %v2731
    %v2733 = vrot.slane %v2732, 1
    %v2734 = vmax.f32 %v2732, %v2733
    %v2735 = vsel %vm1026, %v575, -inf
    %v2736 = vrot.slane %v2735, 4
    %v2737 = vmax.f32 %v2735, %v2736
    %v2738 = vrot.slane %v2737, 2
    %v2739 = vmax.f32 %v2737, %v2738
    %v2740 = vrot.slane %v2739, 1
    %v2741 = vmax.f32 %v2739, %v2740
    %v2742 = vsel %vm1026, %v825, -inf
    %v2743 = vrot.slane %v2742, 4
    %v2744 = vmax.f32 %v2742, %v2743
    %v2745 = vrot.slane %v2744, 2
    %v2746 = vmax.f32 %v2744, %v2745
    %v2747 = vrot.slane %v2746, 1
    %v2748 = vmax.f32 %v2746, %v2747
    %v2749 = vsel %vm1026, %v826, -inf
    %v2750 = vrot.slane %v2749, 4
    %v2751 = vmax.f32 %v2749, %v2750
    %v2752 = vrot.slane %v2751, 2
    %v2753 = vmax.f32 %v2751, %v2752
    %v2754 = vrot.slane %v2753, 1
    %v2755 = vmax.f32 %v2753, %v2754
    %v2756 = vsel %vm1026, %v827, -inf
    %v2757 = vrot.slane %v2756, 4
    %v2758 = vmax.f32 %v2756, %v2757
    %v2759 = vrot.slane %v2758, 2
    %v2760 = vmax.f32 %v2758, %v2759
    %v2761 = vrot.slane %v2760, 1
    %v2762 = vmax.f32 %v2760, %v2761
    %v2763 = vsel %vm1026, %v576, -inf
    %v2764 = vrot.slane %v2763, 4
    %v2765 = vmax.f32 %v2763, %v2764
    %v2766 = vrot.slane %v2765, 2
    %v2767 = vmax.f32 %v2765, %v2766
    %v2768 = vrot.slane %v2767, 1
    %v2769 = vmax.f32 %v2767, %v2768
    %v2770 = vsel %vm1026, %v828, -inf
    %v2771 = vrot.slane %v2770, 4
    %v2772 = vmax.f32 %v2770, %v2771
    %v2773 = vrot.slane %v2772, 2
    %v2774 = vmax.f32 %v2772, %v2773
    %v2775 = vrot.slane %v2774, 1
    %v2776 = vmax.f32 %v2774, %v2775
    %v2777 = vsel %vm1026, %v829, -inf
    %v2778 = vrot.slane %v2777, 4
    %v2779 = vmax.f32 %v2777, %v2778
    %v2780 = vrot.slane %v2779, 2
    %v2781 = vmax.f32 %v2779, %v2780
    %v2782 = vrot.slane %v2781, 1
    %v2783 = vmax.f32 %v2781, %v2782
    %v2784 = vsel %vm1026, %v830, -inf
    %v2785 = vrot.slane %v2784, 4
    %v2786 = vmax.f32 %v2784, %v2785
    %v2787 = vrot.slane %v2786, 2
    %v2788 = vmax.f32 %v2786, %v2787
    %v2789 = vrot.slane %v2788, 1
    %v2790 = vmax.f32 %v2788, %v2789
    %v2791 = vsel %vm1026, %v577, -inf
    %v2792 = vrot.slane %v2791, 4
    %v2793 = vmax.f32 %v2791, %v2792
    %v2794 = vrot.slane %v2793, 2
    %v2795 = vmax.f32 %v2793, %v2794
    %v2796 = vrot.slane %v2795, 1
    %v2797 = vmax.f32 %v2795, %v2796
    %v2798 = vsel %vm1026, %v831, -inf
    %v2799 = vrot.slane %v2798, 4
    %v2800 = vmax.f32 %v2798, %v2799
    %v2801 = vrot.slane %v2800, 2
    %v2802 = vmax.f32 %v2800, %v2801
    %v2803 = vrot.slane %v2802, 1
    %v2804 = vmax.f32 %v2802, %v2803
    %v2805 = vsel %vm1026, %v832, -inf
    %v2806 = vrot.slane %v2805, 4
    %v2807 = vmax.f32 %v2805, %v2806
    %v2808 = vrot.slane %v2807, 2
    %v2809 = vmax.f32 %v2807, %v2808
    %v2810 = vrot.slane %v2809, 1
    %v2811 = vmax.f32 %v2809, %v2810
    %v2812 = vsel %vm1026, %v833, -inf
    %v2813 = vrot.slane %v2812, 4
    %v2814 = vmax.f32 %v2812, %v2813
    %v2815 = vrot.slane %v2814, 2
    %v2816 = vmax.f32 %v2814, %v2815
    %v2817 = vrot.slane %v2816, 1
    %v2818 = vmax.f32 %v2816, %v2817
    %vm2819 = vcmask 162816
    %v2820 = vsel %vm2819, %v1033, -inf
    %v2821 = vsel %vm2819, %v1089, -inf
    %v2822 = vmax.f32 %v2820, %v2821
    %v2823 = vsel %vm2819, %v1040, -inf
    %v2824 = vsel %vm2819, %v1096, -inf
    %v2825 = vmax.f32 %v2823, %v2824
    %v2826 = vsel %vm2819, %v1047, -inf
    %v2827 = vsel %vm2819, %v1103, -inf
    %v2828 = vmax.f32 %v2826, %v2827
    %v2829 = vsel %vm2819, %v1054, -inf
    %v2830 = vsel %vm2819, %v1110, -inf
    %v2831 = vmax.f32 %v2829, %v2830
    %v2832 = vsel %vm2819, %v1061, -inf
    %v2833 = vsel %vm2819, %v1117, -inf
    %v2834 = vmax.f32 %v2832, %v2833
    %v2835 = vsel %vm2819, %v1068, -inf
    %v2836 = vsel %vm2819, %v1124, -inf
    %v2837 = vmax.f32 %v2835, %v2836
    %v2838 = vsel %vm2819, %v1075, -inf
    %v2839 = vsel %vm2819, %v1131, -inf
    %v2840 = vmax.f32 %v2838, %v2839
    %v2841 = vsel %vm2819, %v1082, -inf
    %v2842 = vsel %vm2819, %v1138, -inf
    %v2843 = vmax.f32 %v2841, %v2842
    %v2844 = vsel %vm2819, %v1145, -inf
    %v2845 = vsel %vm2819, %v1201, -inf
    %v2846 = vmax.f32 %v2844, %v2845
    %v2847 = vsel %vm2819, %v1152, -inf
    %v2848 = vsel %vm2819, %v1208, -inf
    %v2849 = vmax.f32 %v2847, %v2848
    %v2850 = vsel %vm2819, %v1159, -inf
    %v2851 = vsel %vm2819, %v1215, -inf
    %v2852 = vmax.f32 %v2850, %v2851
    %v2853 = vsel %vm2819, %v1166, -inf
    %v2854 = vsel %vm2819, %v1222, -inf
    %v2855 = vmax.f32 %v2853, %v2854
    %v2856 = vsel %vm2819, %v1173, -inf
    %v2857 = vsel %vm2819, %v1229, -inf
    %v2858 = vmax.f32 %v2856, %v2857
    %v2859 = vsel %vm2819, %v1180, -inf
    %v2860 = vsel %vm2819, %v1236, -inf
    %v2861 = vmax.f32 %v2859, %v2860
    %v2862 = vsel %vm2819, %v1187, -inf
    %v2863 = vsel %vm2819, %v1243, -inf
    %v2864 = vmax.f32 %v2862, %v2863
    %v2865 = vsel %vm2819, %v1194, -inf
    %v2866 = vsel %vm2819, %v1250, -inf
    %v2867 = vmax.f32 %v2865, %v2866
    %v2868 = vsel %vm2819, %v1257, -inf
    %v2869 = vsel %vm2819, %v1313, -inf
    %v2870 = vmax.f32 %v2868, %v2869
    %v2871 = vsel %vm2819, %v1264, -inf
    %v2872 = vsel %vm2819, %v1320, -inf
    %v2873 = vmax.f32 %v2871, %v2872
    %v2874 = vsel %vm2819, %v1271, -inf
    %v2875 = vsel %vm2819, %v1327, -inf
    %v2876 = vmax.f32 %v2874, %v2875
    %v2877 = vsel %vm2819, %v1278, -inf
    %v2878 = vsel %vm2819, %v1334, -inf
    %v2879 = vmax.f32 %v2877, %v2878
    %v2880 = vsel %vm2819, %v1285, -inf
    %v2881 = vsel %vm2819, %v1341, -inf
    %v2882 = vmax.f32 %v2880, %v2881
    %v2883 = vsel %vm2819, %v1292, -inf
    %v2884 = vsel %vm2819, %v1348, -inf
    %v2885 = vmax.f32 %v2883, %v2884
    %v2886 = vsel %vm2819, %v1299, -inf
    %v2887 = vsel %vm2819, %v1355, -inf
    %v2888 = vmax.f32 %v2886, %v2887
    %v2889 = vsel %vm2819, %v1306, -inf
    %v2890 = vsel %vm2819, %v1362, -inf
    %v2891 = vmax.f32 %v2889, %v2890
    %v2892 = vsel %vm2819, %v1369, -inf
    %v2893 = vsel %vm2819, %v1425, -inf
    %v2894 = vmax.f32 %v2892, %v2893
    %v2895 = vsel %vm2819, %v1376, -inf
    %v2896 = vsel %vm2819, %v1432, -inf
    %v2897 = vmax.f32 %v2895, %v2896
    %v2898 = vsel %vm2819, %v1383, -inf
    %v2899 = vsel %vm2819, %v1439, -inf
    %v2900 = vmax.f32 %v2898, %v2899
    %v2901 = vsel %vm2819, %v1390, -inf
    %v2902 = vsel %vm2819, %v1446, -inf
    %v2903 = vmax.f32 %v2901, %v2902
    %v2904 = vsel %vm2819, %v1397, -inf
    %v2905 = vsel %vm2819, %v1453, -inf
    %v2906 = vmax.f32 %v2904, %v2905
    %v2907 = vsel %vm2819, %v1404, -inf
    %v2908 = vsel %vm2819, %v1460, -inf
    %v2909 = vmax.f32 %v2907, %v2908
    %v2910 = vsel %vm2819, %v1411, -inf
    %v2911 = vsel %vm2819, %v1467, -inf
    %v2912 = vmax.f32 %v2910, %v2911
    %v2913 = vsel %vm2819, %v1418, -inf
    %v2914 = vsel %vm2819, %v1474, -inf
    %v2915 = vmax.f32 %v2913, %v2914
    %v2916 = vsel %vm2819, %v1481, -inf
    %v2917 = vsel %vm2819, %v1537, -inf
    %v2918 = vmax.f32 %v2916, %v2917
    %v2919 = vsel %vm2819, %v1488, -inf
    %v2920 = vsel %vm2819, %v1544, -inf
    %v2921 = vmax.f32 %v2919, %v2920
    %v2922 = vsel %vm2819, %v1495, -inf
    %v2923 = vsel %vm2819, %v1551, -inf
    %v2924 = vmax.f32 %v2922, %v2923
    %v2925 = vsel %vm2819, %v1502, -inf
    %v2926 = vsel %vm2819, %v1558, -inf
    %v2927 = vmax.f32 %v2925, %v2926
    %v2928 = vsel %vm2819, %v1509, -inf
    %v2929 = vsel %vm2819, %v1565, -inf
    %v2930 = vmax.f32 %v2928, %v2929
    %v2931 = vsel %vm2819, %v1516, -inf
    %v2932 = vsel %vm2819, %v1572, -inf
    %v2933 = vmax.f32 %v2931, %v2932
    %v2934 = vsel %vm2819, %v1523, -inf
    %v2935 = vsel %vm2819, %v1579, -inf
    %v2936 = vmax.f32 %v2934, %v2935
    %v2937 = vsel %vm2819, %v1530, -inf
    %v2938 = vsel %vm2819, %v1586, -inf
    %v2939 = vmax.f32 %v2937, %v2938
    %v2940 = vsel %vm2819, %v1593, -inf
    %v2941 = vsel %vm2819, %v1649, -inf
    %v2942 = vmax.f32 %v2940, %v2941
    %v2943 = vsel %vm2819, %v1600, -inf
    %v2944 = vsel %vm2819, %v1656, -inf
    %v2945 = vmax.f32 %v2943, %v2944
    %v2946 = vsel %vm2819, %v1607, -inf
    %v2947 = vsel %vm2819, %v1663, -inf
    %v2948 = vmax.f32 %v2946, %v2947
    %v2949 = vsel %vm2819, %v1614, -inf
    %v2950 = vsel %vm2819, %v1670, -inf
    %v2951 = vmax.f32 %v2949, %v2950
    %v2952 = vsel %vm2819, %v1621, -inf
    %v2953 = vsel %vm2819, %v1677, -inf
    %v2954 = vmax.f32 %v2952, %v2953
    %v2955 = vsel %vm2819, %v1628, -inf
    %v2956 = vsel %vm2819, %v1684, -inf
    %v2957 = vmax.f32 %v2955, %v2956
    %v2958 = vsel %vm2819, %v1635, -inf
    %v2959 = vsel %vm2819, %v1691, -inf
    %v2960 = vmax.f32 %v2958, %v2959
    %v2961 = vsel %vm2819, %v1642, -inf
    %v2962 = vsel %vm2819, %v1698, -inf
    %v2963 = vmax.f32 %v2961, %v2962
    %v2964 = vsel %vm2819, %v1705, -inf
    %v2965 = vsel %vm2819, %v1761, -inf
    %v2966 = vmax.f32 %v2964, %v2965
    %v2967 = vsel %vm2819, %v1712, -inf
    %v2968 = vsel %vm2819, %v1768, -inf
    %v2969 = vmax.f32 %v2967, %v2968
    %v2970 = vsel %vm2819, %v1719, -inf
    %v2971 = vsel %vm2819, %v1775, -inf
    %v2972 = vmax.f32 %v2970, %v2971
    %v2973 = vsel %vm2819, %v1726, -inf
    %v2974 = vsel %vm2819, %v1782, -inf
    %v2975 = vmax.f32 %v2973, %v2974
    %v2976 = vsel %vm2819, %v1733, -inf
    %v2977 = vsel %vm2819, %v1789, -inf
    %v2978 = vmax.f32 %v2976, %v2977
    %v2979 = vsel %vm2819, %v1740, -inf
    %v2980 = vsel %vm2819, %v1796, -inf
    %v2981 = vmax.f32 %v2979, %v2980
    %v2982 = vsel %vm2819, %v1747, -inf
    %v2983 = vsel %vm2819, %v1803, -inf
    %v2984 = vmax.f32 %v2982, %v2983
    %v2985 = vsel %vm2819, %v1754, -inf
    %v2986 = vsel %vm2819, %v1810, -inf
    %v2987 = vmax.f32 %v2985, %v2986
    %v2988 = vsel %vm2819, %v1817, -inf
    %v2989 = vsel %vm2819, %v1873, -inf
    %v2990 = vmax.f32 %v2988, %v2989
    %v2991 = vsel %vm2819, %v1824, -inf
    %v2992 = vsel %vm2819, %v1880, -inf
    %v2993 = vmax.f32 %v2991, %v2992
    %v2994 = vsel %vm2819, %v1831, -inf
    %v2995 = vsel %vm2819, %v1887, -inf
    %v2996 = vmax.f32 %v2994, %v2995
    %v2997 = vsel %vm2819, %v1838, -inf
    %v2998 = vsel %vm2819, %v1894, -inf
    %v2999 = vmax.f32 %v2997, %v2998
    %v3000 = vsel %vm2819, %v1845, -inf
    %v3001 = vsel %vm2819, %v1901, -inf
    %v3002 = vmax.f32 %v3000, %v3001
    %v3003 = vsel %vm2819, %v1852, -inf
    %v3004 = vsel %vm2819, %v1908, -inf
    %v3005 = vmax.f32 %v3003, %v3004
    %v3006 = vsel %vm2819, %v1859, -inf
    %v3007 = vsel %vm2819, %v1915, -inf
    %v3008 = vmax.f32 %v3006, %v3007
    %v3009 = vsel %vm2819, %v1866, -inf
    %v3010 = vsel %vm2819, %v1922, -inf
    %v3011 = vmax.f32 %v3009, %v3010
    %v3012 = vsel %vm2819, %v1929, -inf
    %v3013 = vsel %vm2819, %v1985, -inf
    %v3014 = vmax.f32 %v3012, %v3013
    %v3015 = vsel %vm2819, %v1936, -inf
    %v3016 = vsel %vm2819, %v1992, -inf
    %v3017 = vmax.f32 %v3015, %v3016
    %v3018 = vsel %vm2819, %v1943, -inf
    %v3019 = vsel %vm2819, %v1999, -inf
    %v3020 = vmax.f32 %v3018, %v3019
    %v3021 = vsel %vm2819, %v1950, -inf
    %v3022 = vsel %vm2819, %v2006, -inf
    %v3023 = vmax.f32 %v3021, %v3022
    %v3024 = vsel %vm2819, %v1957, -inf
    %v3025 = vsel %vm2819, %v2013, -inf
    %v3026 = vmax.f32 %v3024, %v3025
    %v3027 = vsel %vm2819, %v1964, -inf
    %v3028 = vsel %vm2819, %v2020, -inf
    %v3029 = vmax.f32 %v3027, %v3028
    %v3030 = vsel %vm2819, %v1971, -inf
    %v3031 = vsel %vm2819, %v2027, -inf
    %v3032 = vmax.f32 %v3030, %v3031
    %v3033 = vsel %vm2819, %v1978, -inf
    %v3034 = vsel %vm2819, %v2034, -inf
    %v3035 = vmax.f32 %v3033, %v3034
    %v3036 = vsel %vm2819, %v2041, -inf
    %v3037 = vsel %vm2819, %v2097, -inf
    %v3038 = vmax.f32 %v3036, %v3037
    %v3039 = vsel %vm2819, %v2048, -inf
    %v3040 = vsel %vm2819, %v2104, -inf
    %v3041 = vmax.f32 %v3039, %v3040
    %v3042 = vsel %vm2819, %v2055, -inf
    %v3043 = vsel %vm2819, %v2111, -inf
    %v3044 = vmax.f32 %v3042, %v3043
    %v3045 = vsel %vm2819, %v2062, -inf
    %v3046 = vsel %vm2819, %v2118, -inf
    %v3047 = vmax.f32 %v3045, %v3046
    %v3048 = vsel %vm2819, %v2069, -inf
    %v3049 = vsel %vm2819, %v2125, -inf
    %v3050 = vmax.f32 %v3048, %v3049
    %v3051 = vsel %vm2819, %v2076, -inf
    %v3052 = vsel %vm2819, %v2132, -inf
    %v3053 = vmax.f32 %v3051, %v3052
    %v3054 = vsel %vm2819, %v2083, -inf
    %v3055 = vsel %vm2819, %v2139, -inf
    %v3056 = vmax.f32 %v3054, %v3055
    %v3057 = vsel %vm2819, %v2090, -inf
    %v3058 = vsel %vm2819, %v2146, -inf
    %v3059 = vmax.f32 %v3057, %v3058
    %v3060 = vsel %vm2819, %v2153, -inf
    %v3061 = vsel %vm2819, %v2209, -inf
    %v3062 = vmax.f32 %v3060, %v3061
    %v3063 = vsel %vm2819, %v2160, -inf
    %v3064 = vsel %vm2819, %v2216, -inf
    %v3065 = vmax.f32 %v3063, %v3064
    %v3066 = vsel %vm2819, %v2167, -inf
    %v3067 = vsel %vm2819, %v2223, -inf
    %v3068 = vmax.f32 %v3066, %v3067
    %v3069 = vsel %vm2819, %v2174, -inf
    %v3070 = vsel %vm2819, %v2230, -inf
    %v3071 = vmax.f32 %v3069, %v3070
    %v3072 = vsel %vm2819, %v2181, -inf
    %v3073 = vsel %vm2819, %v2237, -inf
    %v3074 = vmax.f32 %v3072, %v3073
    %v3075 = vsel %vm2819, %v2188, -inf
    %v3076 = vsel %vm2819, %v2244, -inf
    %v3077 = vmax.f32 %v3075, %v3076
    %v3078 = vsel %vm2819, %v2195, -inf
    %v3079 = vsel %vm2819, %v2251, -inf
    %v3080 = vmax.f32 %v3078, %v3079
    %v3081 = vsel %vm2819, %v2202, -inf
    %v3082 = vsel %vm2819, %v2258, -inf
    %v3083 = vmax.f32 %v3081, %v3082
    %v3084 = vsel %vm2819, %v2265, -inf
    %v3085 = vsel %vm2819, %v2321, -inf
    %v3086 = vmax.f32 %v3084, %v3085
    %v3087 = vsel %vm2819, %v2272, -inf
    %v3088 = vsel %vm2819, %v2328, -inf
    %v3089 = vmax.f32 %v3087, %v3088
    %v3090 = vsel %vm2819, %v2279, -inf
    %v3091 = vsel %vm2819, %v2335, -inf
    %v3092 = vmax.f32 %v3090, %v3091
    %v3093 = vsel %vm2819, %v2286, -inf
    %v3094 = vsel %vm2819, %v2342, -inf
    %v3095 = vmax.f32 %v3093, %v3094
    %v3096 = vsel %vm2819, %v2293, -inf
    %v3097 = vsel %vm2819, %v2349, -inf
    %v3098 = vmax.f32 %v3096, %v3097
    %v3099 = vsel %vm2819, %v2300, -inf
    %v3100 = vsel %vm2819, %v2356, -inf
    %v3101 = vmax.f32 %v3099, %v3100
    %v3102 = vsel %vm2819, %v2307, -inf
    %v3103 = vsel %vm2819, %v2363, -inf
    %v3104 = vmax.f32 %v3102, %v3103
    %v3105 = vsel %vm2819, %v2314, -inf
    %v3106 = vsel %vm2819, %v2370, -inf
    %v3107 = vmax.f32 %v3105, %v3106
    %v3108 = vsel %vm2819, %v2377, -inf
    %v3109 = vsel %vm2819, %v2433, -inf
    %v3110 = vmax.f32 %v3108, %v3109
    %v3111 = vsel %vm2819, %v2384, -inf
    %v3112 = vsel %vm2819, %v2440, -inf
    %v3113 = vmax.f32 %v3111, %v3112
    %v3114 = vsel %vm2819, %v2391, -inf
    %v3115 = vsel %vm2819, %v2447, -inf
    %v3116 = vmax.f32 %v3114, %v3115
    %v3117 = vsel %vm2819, %v2398, -inf
    %v3118 = vsel %vm2819, %v2454, -inf
    %v3119 = vmax.f32 %v3117, %v3118
    %v3120 = vsel %vm2819, %v2405, -inf
    %v3121 = vsel %vm2819, %v2461, -inf
    %v3122 = vmax.f32 %v3120, %v3121
    %v3123 = vsel %vm2819, %v2412, -inf
    %v3124 = vsel %vm2819, %v2468, -inf
    %v3125 = vmax.f32 %v3123, %v3124
    %v3126 = vsel %vm2819, %v2419, -inf
    %v3127 = vsel %vm2819, %v2475, -inf
    %v3128 = vmax.f32 %v3126, %v3127
    %v3129 = vsel %vm2819, %v2426, -inf
    %v3130 = vsel %vm2819, %v2482, -inf
    %v3131 = vmax.f32 %v3129, %v3130
    %v3132 = vsel %vm2819, %v2489, -inf
    %v3133 = vsel %vm2819, %v2545, -inf
    %v3134 = vmax.f32 %v3132, %v3133
    %v3135 = vsel %vm2819, %v2496, -inf
    %v3136 = vsel %vm2819, %v2552, -inf
    %v3137 = vmax.f32 %v3135, %v3136
    %v3138 = vsel %vm2819, %v2503, -inf
    %v3139 = vsel %vm2819, %v2559, -inf
    %v3140 = vmax.f32 %v3138, %v3139
    %v3141 = vsel %vm2819, %v2510, -inf
    %v3142 = vsel %vm2819, %v2566, -inf
    %v3143 = vmax.f32 %v3141, %v3142
    %v3144 = vsel %vm2819, %v2517, -inf
    %v3145 = vsel %vm2819, %v2573, -inf
    %v3146 = vmax.f32 %v3144, %v3145
    %v3147 = vsel %vm2819, %v2524, -inf
    %v3148 = vsel %vm2819, %v2580, -inf
    %v3149 = vmax.f32 %v3147, %v3148
    %v3150 = vsel %vm2819, %v2531, -inf
    %v3151 = vsel %vm2819, %v2587, -inf
    %v3152 = vmax.f32 %v3150, %v3151
    %v3153 = vsel %vm2819, %v2538, -inf
    %v3154 = vsel %vm2819, %v2594, -inf
    %v3155 = vmax.f32 %v3153, %v3154
    %v3156 = vsel %vm2819, %v2601, -inf
    %v3157 = vsel %vm2819, %v2657, -inf
    %v3158 = vmax.f32 %v3156, %v3157
    %v3159 = vsel %vm2819, %v2608, -inf
    %v3160 = vsel %vm2819, %v2664, -inf
    %v3161 = vmax.f32 %v3159, %v3160
    %v3162 = vsel %vm2819, %v2615, -inf
    %v3163 = vsel %vm2819, %v2671, -inf
    %v3164 = vmax.f32 %v3162, %v3163
    %v3165 = vsel %vm2819, %v2622, -inf
    %v3166 = vsel %vm2819, %v2678, -inf
    %v3167 = vmax.f32 %v3165, %v3166
    %v3168 = vsel %vm2819, %v2629, -inf
    %v3169 = vsel %vm2819, %v2685, -inf
    %v3170 = vmax.f32 %v3168, %v3169
    %v3171 = vsel %vm2819, %v2636, -inf
    %v3172 = vsel %vm2819, %v2692, -inf
    %v3173 = vmax.f32 %v3171, %v3172
    %v3174 = vsel %vm2819, %v2643, -inf
    %v3175 = vsel %vm2819, %v2699, -inf
    %v3176 = vmax.f32 %v3174, %v3175
    %v3177 = vsel %vm2819, %v2650, -inf
    %v3178 = vsel %vm2819, %v2706, -inf
    %v3179 = vmax.f32 %v3177, %v3178
    %v3180 = vsel %vm2819, %v2713, -inf
    %v3181 = vsel %vm2819, %v2769, -inf
    %v3182 = vmax.f32 %v3180, %v3181
    %v3183 = vsel %vm2819, %v2720, -inf
    %v3184 = vsel %vm2819, %v2776, -inf
    %v3185 = vmax.f32 %v3183, %v3184
    %v3186 = vsel %vm2819, %v2727, -inf
    %v3187 = vsel %vm2819, %v2783, -inf
    %v3188 = vmax.f32 %v3186, %v3187
    %v3189 = vsel %vm2819, %v2734, -inf
    %v3190 = vsel %vm2819, %v2790, -inf
    %v3191 = vmax.f32 %v3189, %v3190
    %v3192 = vsel %vm2819, %v2741, -inf
    %v3193 = vsel %vm2819, %v2797, -inf
    %v3194 = vmax.f32 %v3192, %v3193
    %v3195 = vsel %vm2819, %v2748, -inf
    %v3196 = vsel %vm2819, %v2804, -inf
    %v3197 = vmax.f32 %v3195, %v3196
    %v3198 = vsel %vm2819, %v2755, -inf
    %v3199 = vsel %vm2819, %v2811, -inf
    %v3200 = vmax.f32 %v3198, %v3199
    %v3201 = vsel %vm2819, %v2762, -inf
    %v3202 = vsel %vm2819, %v2818, -inf
    %v3203 = vmax.f32 %v3201, %v3202
    %vm3332 = vcmask 1041409
    %v3333 = vsel %vm3332, %v2825, %v2822
    %vm3334 = vcmask 1042434
    %v3335 = vsel %vm3334, %v2828, %v3333
    %vm3336 = vcmask 1043459
    %v3337 = vsel %vm3336, %v2831, %v3335
    %vm3338 = vcmask 1044484
    %v3339 = vsel %vm3338, %v2834, %v3337
    %vm3340 = vcmask 1045509
    %v3341 = vsel %vm3340, %v2837, %v3339
    %vm3342 = vcmask 1046534
    %v3343 = vsel %vm3342, %v2840, %v3341
    %vm3344 = vcmask 1047559
    %v3345 = vsel %vm3344, %v2843, %v3343
    %v3346 = vsel %vm3332, %v2849, %v2846
    %v3347 = vsel %vm3334, %v2852, %v3346
    %v3348 = vsel %vm3336, %v2855, %v3347
    %v3349 = vsel %vm3338, %v2858, %v3348
    %v3350 = vsel %vm3340, %v2861, %v3349
    %v3351 = vsel %vm3342, %v2864, %v3350
    %v3352 = vsel %vm3344, %v2867, %v3351
    %v3353 = vsel %vm3332, %v2873, %v2870
    %v3354 = vsel %vm3334, %v2876, %v3353
    %v3355 = vsel %vm3336, %v2879, %v3354
    %v3356 = vsel %vm3338, %v2882, %v3355
    %v3357 = vsel %vm3340, %v2885, %v3356
    %v3358 = vsel %vm3342, %v2888, %v3357
    %v3359 = vsel %vm3344, %v2891, %v3358
    %v3360 = vsel %vm3332, %v2897, %v2894
    %v3361 = vsel %vm3334, %v2900, %v3360
    %v3362 = vsel %vm3336, %v2903, %v3361
    %v3363 = vsel %vm3338, %v2906, %v3362
    %v3364 = vsel %vm3340, %v2909, %v3363
    %v3365 = vsel %vm3342, %v2912, %v3364
    %v3366 = vsel %vm3344, %v2915, %v3365
    %v3367 = vsel %vm3332, %v2921, %v2918
    %v3368 = vsel %vm3334, %v2924, %v3367
    %v3369 = vsel %vm3336, %v2927, %v3368
    %v3370 = vsel %vm3338, %v2930, %v3369
    %v3371 = vsel %vm3340, %v2933, %v3370
    %v3372 = vsel %vm3342, %v2936, %v3371
    %v3373 = vsel %vm3344, %v2939, %v3372
    %v3374 = vsel %vm3332, %v2945, %v2942
    %v3375 = vsel %vm3334, %v2948, %v3374
    %v3376 = vsel %vm3336, %v2951, %v3375
    %v3377 = vsel %vm3338, %v2954, %v3376
    %v3378 = vsel %vm3340, %v2957, %v3377
    %v3379 = vsel %vm3342, %v2960, %v3378
    %v3380 = vsel %vm3344, %v2963, %v3379
    %v3381 = vsel %vm3332, %v2969, %v2966
    %v3382 = vsel %vm3334, %v2972, %v3381
    %v3383 = vsel %vm3336, %v2975, %v3382
    %v3384 = vsel %vm3338, %v2978, %v3383
    %v3385 = vsel %vm3340, %v2981, %v3384
    %v3386 = vsel %vm3342, %v2984, %v3385
    %v3387 = vsel %vm3344, %v2987, %v3386
    %v3388 = vsel %vm3332, %v2993, %v2990
    %v3389 = vsel %vm3334, %v2996, %v3388
    %v3390 = vsel %vm3336, %v2999, %v3389
    %v3391 = vsel %vm3338, %v3002, %v3390
    %v3392 = vsel %vm3340, %v3005, %v3391
    %v3393 = vsel %vm3342, %v3008, %v3392
    %v3394 = vsel %vm3344, %v3011, %v3393
    %v3395 = vsel %vm3332, %v3017, %v3014
    %v3396 = vsel %vm3334, %v3020, %v3395
    %v3397 = vsel %vm3336, %v3023, %v3396
    %v3398 = vsel %vm3338, %v3026, %v3397
    %v3399 = vsel %vm3340, %v3029, %v3398
    %v3400 = vsel %vm3342, %v3032, %v3399
    %v3401 = vsel %vm3344, %v3035, %v3400
    %v3402 = vsel %vm3332, %v3041, %v3038
    %v3403 = vsel %vm3334, %v3044, %v3402
    %v3404 = vsel %vm3336, %v3047, %v3403
    %v3405 = vsel %vm3338, %v3050, %v3404
    %v3406 = vsel %vm3340, %v3053, %v3405
    %v3407 = vsel %vm3342, %v3056, %v3406
    %v3408 = vsel %vm3344, %v3059, %v3407
    %v3409 = vsel %vm3332, %v3065, %v3062
    %v3410 = vsel %vm3334, %v3068, %v3409
    %v3411 = vsel %vm3336, %v3071, %v3410
    %v3412 = vsel %vm3338, %v3074, %v3411
    %v3413 = vsel %vm3340, %v3077, %v3412
    %v3414 = vsel %vm3342, %v3080, %v3413
    %v3415 = vsel %vm3344, %v3083, %v3414
    %v3416 = vsel %vm3332, %v3089, %v3086
    %v3417 = vsel %vm3334, %v3092, %v3416
    %v3418 = vsel %vm3336, %v3095, %v3417
    %v3419 = vsel %vm3338, %v3098, %v3418
    %v3420 = vsel %vm3340, %v3101, %v3419
    %v3421 = vsel %vm3342, %v3104, %v3420
    %v3422 = vsel %vm3344, %v3107, %v3421
    %v3423 = vsel %vm3332, %v3113, %v3110
    %v3424 = vsel %vm3334, %v3116, %v3423
    %v3425 = vsel %vm3336, %v3119, %v3424
    %v3426 = vsel %vm3338, %v3122, %v3425
    %v3427 = vsel %vm3340, %v3125, %v3426
    %v3428 = vsel %vm3342, %v3128, %v3427
    %v3429 = vsel %vm3344, %v3131, %v3428
    %v3430 = vsel %vm3332, %v3137, %v3134
    %v3431 = vsel %vm3334, %v3140, %v3430
    %v3432 = vsel %vm3336, %v3143, %v3431
    %v3433 = vsel %vm3338, %v3146, %v3432
    %v3434 = vsel %vm3340, %v3149, %v3433
    %v3435 = vsel %vm3342, %v3152, %v3434
    %v3436 = vsel %vm3344, %v3155, %v3435
    %v3437 = vsel %vm3332, %v3161, %v3158
    %v3438 = vsel %vm3334, %v3164, %v3437
    %v3439 = vsel %vm3336, %v3167, %v3438
    %v3440 = vsel %vm3338, %v3170, %v3439
    %v3441 = vsel %vm3340, %v3173, %v3440
    %v3442 = vsel %vm3342, %v3176, %v3441
    %v3443 = vsel %vm3344, %v3179, %v3442
    %v3444 = vsel %vm3332, %v3185, %v3182
    %v3445 = vsel %vm3334, %v3188, %v3444
    %v3446 = vsel %vm3336, %v3191, %v3445
    %v3447 = vsel %vm3338, %v3194, %v3446
    %v3448 = vsel %vm3340, %v3197, %v3447
    %v3449 = vsel %vm3342, %v3200, %v3448
    %v3450 = vsel %vm3344, %v3203, %v3449
    %3467 = vst.msk [vmem:[#allocation2] sm:$0xff] %vm2819, %v3345
    %3468 = vst.msk [vmem:[#allocation2 + $0x8] sm:$0xff] %vm2819, %v3352
    %3469 = vst.msk [vmem:[#allocation2 + $0x10] sm:$0xff] %vm2819, %v3359
    %3470 = vst.msk [vmem:[#allocation2 + $0x18] sm:$0xff] %vm2819, %v3366
    %3471 = vst.msk [vmem:[#allocation2 + $0x20] sm:$0xff] %vm2819, %v3373
    %3472 = vst.msk [vmem:[#allocation2 + $0x28] sm:$0xff] %vm2819, %v3380
    %3473 = vst.msk [vmem:[#allocation2 + $0x30] sm:$0xff] %vm2819, %v3387
    %3474 = vst.msk [vmem:[#allocation2 + $0x38] sm:$0xff] %vm2819, %v3394
    %3475 = vst.msk [vmem:[#allocation2 + $0x40] sm:$0xff] %vm2819, %v3401
    %3476 = vst.msk [vmem:[#allocation2 + $0x48] sm:$0xff] %vm2819, %v3408
    %3477 = vst.msk [vmem:[#allocation2 + $0x50] sm:$0xff] %vm2819, %v3415
    %3478 = vst.msk [vmem:[#allocation2 + $0x58] sm:$0xff] %vm2819, %v3422
    %3479 = vst.msk [vmem:[#allocation2 + $0x60] sm:$0xff] %vm2819, %v3429
    %3480 = vst.msk [vmem:[#allocation2 + $0x68] sm:$0xff] %vm2819, %v3436
    %3481 = vst.msk [vmem:[#allocation2 + $0x70] sm:$0xff] %vm2819, %v3443
    %3482 = vst.msk [vmem:[#allocation2 + $0x78] sm:$0xff] %vm2819, %v3450
    %v3483 = vld [vmem:[#allocation2] sm:$0x1]
    %v3484 = vld [vmem:[#allocation2 + $0x40] sm:$0x1]
    %v3485 = vld [vmem:[%s3] sm:$0xff]
    %v3486 = vld [vmem:[%s3 + $0x8] sm:$0xff]
    %v3487 = vld [vmem:[%s3 + $0x10] sm:$0xf]
    %v3488 = vld [vmem:[#allocation2 + $0x1] sm:$0x1]
    %v3489 = vld [vmem:[#allocation2 + $0x41] sm:$0x1]
    %s3490 = scalar_lea.vmem %s3, 24
    %v3491 = vld [vmem:[%s3490] sm:$0xff]
    %v3492 = vld [vmem:[%s3490 + $0x8] sm:$0xff]
    %v3493 = vld [vmem:[%s3490 + $0x10] sm:$0xf]
    %v3496 = vrot.slane %v3489, 7
    %v3497 = vsel %vm3332, %v3496, %v3488
    %v3498 = vsel %vm2819, %v3497, 0
    %v3501 = vsel %vm301, %v3493, 0
    %3503 = vmatpush.msra.mxu0 0.0
    %3504 = vmatpush.msra.mxu0 0.0
    %3505 = vmatpush.msra.mxu0 0.0
    %3506 = vmatpush.msra.mxu0 0.0
    %3507 = vmatpush.msra.mxu0 0.0
    %3508 = vmatpush.msra.mxu0 0.0
    %3509 = vmatpush.msra.mxu0 0.0
    %3510 = vmatpush.msra.mxu0 0.0
    %3511 = vmatpush.msra.mxu0 0.0
    %3512 = vmatpush.msra.mxu0 0.0
    %3513 = vmatpush.msra.mxu0 0.0
    %3514 = vmatpush.msra.mxu0 0.0
    %3515 = vmatpush.msra.mxu0 0.0
    %3516 = vmatpush.msra.mxu0 %v3501
    %3517 = vmatpush.msra.mxu0 %v3492
    %3518 = vmatpush.msra.mxu0 %v3491
    %3519 = vmatmul.f32.gmra.mxu0 %v3498
    %v3520 = vpop.f32.mrf.mxu0
    %v3521 = vadd.f32 0.0, %v3520
    %3522 = vdwg.mxu0
    %v3525 = vrot.slane %v3484, 7
    %v3526 = vsel %vm3332, %v3525, %v3483
    %v3527 = vsel %vm2819, %v3526, 0
    %v3530 = vsel %vm301, %v3487, 0
    %3532 = vmatpush.msra.mxu0 0.0
    %3533 = vmatpush.msra.mxu0 0.0
    %3534 = vmatpush.msra.mxu0 0.0
    %3535 = vmatpush.msra.mxu0 0.0
    %3536 = vmatpush.msra.mxu0 0.0
    %3537 = vmatpush.msra.mxu0 0.0
    %3538 = vmatpush.msra.mxu0 0.0
    %3539 = vmatpush.msra.mxu0 0.0
    %3540 = vmatpush.msra.mxu0 0.0
    %3541 = vmatpush.msra.mxu0 0.0
    %3542 = vmatpush.msra.mxu0 0.0
    %3543 = vmatpush.msra.mxu0 0.0
    %3544 = vmatpush.msra.mxu0 0.0
    %3545 = vmatpush.msra.mxu0 %v3530
    %3546 = vmatpush.msra.mxu0 %v3486
    %3547 = vmatpush.msra.mxu0 %v3485
    %3548 = vmatmul.f32.gmra.mxu0 %v3527
    %v3549 = vpop.f32.mrf.mxu0
    %v3550 = vadd.f32 %v3521, %v3549
    %3551 = vdwg.mxu0
    %v3552 = vld [vmem:[#allocation2 + $0x2] sm:$0x1]
    %v3553 = vld [vmem:[#allocation2 + $0x42] sm:$0x1]
    %s3554 = scalar_lea.vmem %s3, 48
    %v3555 = vld [vmem:[%s3554] sm:$0xff]
    %v3556 = vld [vmem:[%s3554 + $0x8] sm:$0xff]
    %v3557 = vld [vmem:[%s3554 + $0x10] sm:$0xf]
    %v3560 = vrot.slane %v3553, 7
    %v3561 = vsel %vm3332, %v3560, %v3552
    %v3562 = vsel %vm2819, %v3561, 0
    %v3565 = vsel %vm301, %v3557, 0
    %3567 = vmatpush.msra.mxu0 0.0
    %3568 = vmatpush.msra.mxu0 0.0
    %3569 = vmatpush.msra.mxu0 0.0
    %3570 = vmatpush.msra.mxu0 0.0
    %3571 = vmatpush.msra.mxu0 0.0
    %3572 = vmatpush.msra.mxu0 0.0
    %3573 = vmatpush.msra.mxu0 0.0
    %3574 = vmatpush.msra.mxu0 0.0
    %3575 = vmatpush.msra.mxu0 0.0
    %3576 = vmatpush.msra.mxu0 0.0
    %3577 = vmatpush.msra.mxu0 0.0
    %3578 = vmatpush.msra.mxu0 0.0
    %3579 = vmatpush.msra.mxu0 0.0
    %3580 = vmatpush.msra.mxu0 %v3565
    %3581 = vmatpush.msra.mxu0 %v3556
    %3582 = vmatpush.msra.mxu0 %v3555
    %3583 = vmatmul.f32.gmra.mxu0 %v3562
    %v3584 = vpop.f32.mrf.mxu0
    %v3585 = vadd.f32 0.0, %v3584
    %3586 = vdwg.mxu0
    %v3587 = vadd.f32 %v3550, %v3585
    %v3588 = vld [vmem:[#allocation2 + $0x3] sm:$0x1]
    %v3589 = vld [vmem:[#allocation2 + $0x43] sm:$0x1]
    %s3590 = scalar_lea.vmem %s3, 72
    %v3591 = vld [vmem:[%s3590] sm:$0xff]
    %v3592 = vld [vmem:[%s3590 + $0x8] sm:$0xff]
    %v3593 = vld [vmem:[%s3590 + $0x10] sm:$0xf]
    %v3596 = vrot.slane %v3589, 7
    %v3597 = vsel %vm3332, %v3596, %v3588
    %v3598 = vsel %vm2819, %v3597, 0
    %v3601 = vsel %vm301, %v3593, 0
    %3603 = vmatpush.msra.mxu0 0.0
    %3604 = vmatpush.msra.mxu0 0.0
    %3605 = vmatpush.msra.mxu0 0.0
    %3606 = vmatpush.msra.mxu0 0.0
    %3607 = vmatpush.msra.mxu0 0.0
    %3608 = vmatpush.msra.mxu0 0.0
    %3609 = vmatpush.msra.mxu0 0.0
    %3610 = vmatpush.msra.mxu0 0.0
    %3611 = vmatpush.msra.mxu0 0.0
    %3612 = vmatpush.msra.mxu0 0.0
    %3613 = vmatpush.msra.mxu0 0.0
    %3614 = vmatpush.msra.mxu0 0.0
    %3615 = vmatpush.msra.mxu0 0.0
    %3616 = vmatpush.msra.mxu0 %v3601
    %3617 = vmatpush.msra.mxu0 %v3592
    %3618 = vmatpush.msra.mxu0 %v3591
    %3619 = vmatmul.f32.gmra.mxu0 %v3598
    %v3620 = vpop.f32.mrf.mxu0
    %v3621 = vadd.f32 0.0, %v3620
    %3622 = vdwg.mxu0
    %v3623 = vadd.f32 %v3587, %v3621
    %v3624 = vld [vmem:[#allocation2 + $0x4] sm:$0x1]
    %v3625 = vld [vmem:[#allocation2 + $0x44] sm:$0x1]
    %s3626 = scalar_lea.vmem %s3, 96
    %v3627 = vld [vmem:[%s3626] sm:$0xff]
    %v3628 = vld [vmem:[%s3626 + $0x8] sm:$0xff]
    %v3629 = vld [vmem:[%s3626 + $0x10] sm:$0xf]
    %v3632 = vrot.slane %v3625, 7
    %v3633 = vsel %vm3332, %v3632, %v3624
    %v3634 = vsel %vm2819, %v3633, 0
    %v3637 = vsel %vm301, %v3629, 0
    %3639 = vmatpush.msra.mxu0 0.0
    %3640 = vmatpush.msra.mxu0 0.0
    %3641 = vmatpush.msra.mxu0 0.0
    %3642 = vmatpush.msra.mxu0 0.0
    %3643 = vmatpush.msra.mxu0 0.0
    %3644 = vmatpush.msra.mxu0 0.0
    %3645 = vmatpush.msra.mxu0 0.0
    %3646 = vmatpush.msra.mxu0 0.0
    %3647 = vmatpush.msra.mxu0 0.0
    %3648 = vmatpush.msra.mxu0 0.0
    %3649 = vmatpush.msra.mxu0 0.0
    %3650 = vmatpush.msra.mxu0 0.0
    %3651 = vmatpush.msra.mxu0 0.0
    %3652 = vmatpush.msra.mxu0 %v3637
    %3653 = vmatpush.msra.mxu0 %v3628
    %3654 = vmatpush.msra.mxu0 %v3627
    %3655 = vmatmul.f32.gmra.mxu0 %v3634
    %v3656 = vpop.f32.mrf.mxu0
    %v3657 = vadd.f32 0.0, %v3656
    %3658 = vdwg.mxu0
    %v3659 = vadd.f32 %v3623, %v3657
    %v3660 = vld [vmem:[#allocation2 + $0x5] sm:$0x1]
    %v3661 = vld [vmem:[#allocation2 + $0x45] sm:$0x1]
    %s3662 = scalar_lea.vmem %s3, 120
    %v3663 = vld [vmem:[%s3662] sm:$0xff]
    %v3664 = vld [vmem:[%s3662 + $0x8] sm:$0xff]
    %v3665 = vld [vmem:[%s3662 + $0x10] sm:$0xf]
    %v3668 = vrot.slane %v3661, 7
    %v3669 = vsel %vm3332, %v3668, %v3660
    %v3670 = vsel %vm2819, %v3669, 0
    %v3673 = vsel %vm301, %v3665, 0
    %3675 = vmatpush.msra.mxu0 0.0
    %3676 = vmatpush.msra.mxu0 0.0
    %3677 = vmatpush.msra.mxu0 0.0
    %3678 = vmatpush.msra.mxu0 0.0
    %3679 = vmatpush.msra.mxu0 0.0
    %3680 = vmatpush.msra.mxu0 0.0
    %3681 = vmatpush.msra.mxu0 0.0
    %3682 = vmatpush.msra.mxu0 0.0
    %3683 = vmatpush.msra.mxu0 0.0
    %3684 = vmatpush.msra.mxu0 0.0
    %3685 = vmatpush.msra.mxu0 0.0
    %3686 = vmatpush.msra.mxu0 0.0
    %3687 = vmatpush.msra.mxu0 0.0
    %3688 = vmatpush.msra.mxu0 %v3673
    %3689 = vmatpush.msra.mxu0 %v3664
    %3690 = vmatpush.msra.mxu0 %v3663
    %3691 = vmatmul.f32.gmra.mxu0 %v3670
    %v3692 = vpop.f32.mrf.mxu0
    %v3693 = vadd.f32 0.0, %v3692
    %3694 = vdwg.mxu0
    %v3695 = vadd.f32 %v3659, %v3693
    %v3696 = vld [vmem:[#allocation2 + $0x6] sm:$0x1]
    %v3697 = vld [vmem:[#allocation2 + $0x46] sm:$0x1]
    %s3698 = scalar_lea.vmem %s3, 144
    %v3699 = vld [vmem:[%s3698] sm:$0xff]
    %v3700 = vld [vmem:[%s3698 + $0x8] sm:$0xff]
    %v3701 = vld [vmem:[%s3698 + $0x10] sm:$0xf]
    %v3704 = vrot.slane %v3697, 7
    %v3705 = vsel %vm3332, %v3704, %v3696
    %v3706 = vsel %vm2819, %v3705, 0
    %v3709 = vsel %vm301, %v3701, 0
    %3711 = vmatpush.msra.mxu0 0.0
    %3712 = vmatpush.msra.mxu0 0.0
    %3713 = vmatpush.msra.mxu0 0.0
    %3714 = vmatpush.msra.mxu0 0.0
    %3715 = vmatpush.msra.mxu0 0.0
    %3716 = vmatpush.msra.mxu0 0.0
    %3717 = vmatpush.msra.mxu0 0.0
    %3718 = vmatpush.msra.mxu0 0.0
    %3719 = vmatpush.msra.mxu0 0.0
    %3720 = vmatpush.msra.mxu0 0.0
    %3721 = vmatpush.msra.mxu0 0.0
    %3722 = vmatpush.msra.mxu0 0.0
    %3723 = vmatpush.msra.mxu0 0.0
    %3724 = vmatpush.msra.mxu0 %v3709
    %3725 = vmatpush.msra.mxu0 %v3700
    %3726 = vmatpush.msra.mxu0 %v3699
    %3727 = vmatmul.f32.gmra.mxu0 %v3706
    %v3728 = vpop.f32.mrf.mxu0
    %v3729 = vadd.f32 0.0, %v3728
    %3730 = vdwg.mxu0
    %v3731 = vadd.f32 %v3695, %v3729
    %s3732 = scalar_lea.vmem [#allocation2], 8
    %v3733 = vld [vmem:[%s3732] sm:$0x1]
    %v3734 = vld [vmem:[%s3732 + $0x40] sm:$0x1]
    %s3735 = scalar_lea.vmem %s3, 168
    %v3736 = vld [vmem:[%s3735] sm:$0xff]
    %v3737 = vld [vmem:[%s3735 + $0x8] sm:$0xff]
    %v3738 = vld [vmem:[%s3735 + $0x10] sm:$0xf]
    %v3741 = vrot.slane %v3734, 7
    %v3742 = vsel %vm3332, %v3741, %v3733
    %v3743 = vsel %vm2819, %v3742, 0
    %v3746 = vsel %vm301, %v3738, 0
    %3748 = vmatpush.msra.mxu0 0.0
    %3749 = vmatpush.msra.mxu0 0.0
    %3750 = vmatpush.msra.mxu0 0.0
    %3751 = vmatpush.msra.mxu0 0.0
    %3752 = vmatpush.msra.mxu0 0.0
    %3753 = vmatpush.msra.mxu0 0.0
    %3754 = vmatpush.msra.mxu0 0.0
    %3755 = vmatpush.msra.mxu0 0.0
    %3756 = vmatpush.msra.mxu0 0.0
    %3757 = vmatpush.msra.mxu0 0.0
    %3758 = vmatpush.msra.mxu0 0.0
    %3759 = vmatpush.msra.mxu0 0.0
    %3760 = vmatpush.msra.mxu0 0.0
    %3761 = vmatpush.msra.mxu0 %v3746
    %3762 = vmatpush.msra.mxu0 %v3737
    %3763 = vmatpush.msra.mxu0 %v3736
    %3764 = vmatmul.f32.gmra.mxu0 %v3743
    %v3765 = vpop.f32.mrf.mxu0
    %v3766 = vadd.f32 0.0, %v3765
    %3767 = vdwg.mxu0
    %v3768 = vadd.f32 %v3731, %v3766
    %v3769 = vld [vmem:[%s3732 + $0x1] sm:$0x1]
    %v3770 = vld [vmem:[%s3732 + $0x41] sm:$0x1]
    %s3771 = scalar_lea.vmem %s3, 192
    %v3772 = vld [vmem:[%s3771] sm:$0xff]
    %v3773 = vld [vmem:[%s3771 + $0x8] sm:$0xff]
    %v3774 = vld [vmem:[%s3771 + $0x10] sm:$0xf]
    %v3777 = vrot.slane %v3770, 7
    %v3778 = vsel %vm3332, %v3777, %v3769
    %v3779 = vsel %vm2819, %v3778, 0
    %v3782 = vsel %vm301, %v3774, 0
    %3784 = vmatpush.msra.mxu0 0.0
    %3785 = vmatpush.msra.mxu0 0.0
    %3786 = vmatpush.msra.mxu0 0.0
    %3787 = vmatpush.msra.mxu0 0.0
    %3788 = vmatpush.msra.mxu0 0.0
    %3789 = vmatpush.msra.mxu0 0.0
    %3790 = vmatpush.msra.mxu0 0.0
    %3791 = vmatpush.msra.mxu0 0.0
    %3792 = vmatpush.msra.mxu0 0.0
    %3793 = vmatpush.msra.mxu0 0.0
    %3794 = vmatpush.msra.mxu0 0.0
    %3795 = vmatpush.msra.mxu0 0.0
    %3796 = vmatpush.msra.mxu0 0.0
    %3797 = vmatpush.msra.mxu0 %v3782
    %3798 = vmatpush.msra.mxu0 %v3773
    %3799 = vmatpush.msra.mxu0 %v3772
    %3800 = vmatmul.f32.gmra.mxu0 %v3779
    %v3801 = vpop.f32.mrf.mxu0
    %v3802 = vadd.f32 0.0, %v3801
    %3803 = vdwg.mxu0
    %v3804 = vadd.f32 %v3768, %v3802
    %v3805 = vld [vmem:[%s3732 + $0x2] sm:$0x1]
    %v3806 = vld [vmem:[%s3732 + $0x42] sm:$0x1]
    %s3807 = scalar_lea.vmem %s3, 216
    %v3808 = vld [vmem:[%s3807] sm:$0xff]
    %v3809 = vld [vmem:[%s3807 + $0x8] sm:$0xff]
    %v3810 = vld [vmem:[%s3807 + $0x10] sm:$0xf]
    %v3813 = vrot.slane %v3806, 7
    %v3814 = vsel %vm3332, %v3813, %v3805
    %v3815 = vsel %vm2819, %v3814, 0
    %v3818 = vsel %vm301, %v3810, 0
    %3820 = vmatpush.msra.mxu0 0.0
    %3821 = vmatpush.msra.mxu0 0.0
    %3822 = vmatpush.msra.mxu0 0.0
    %3823 = vmatpush.msra.mxu0 0.0
    %3824 = vmatpush.msra.mxu0 0.0
    %3825 = vmatpush.msra.mxu0 0.0
    %3826 = vmatpush.msra.mxu0 0.0
    %3827 = vmatpush.msra.mxu0 0.0
    %3828 = vmatpush.msra.mxu0 0.0
    %3829 = vmatpush.msra.mxu0 0.0
    %3830 = vmatpush.msra.mxu0 0.0
    %3831 = vmatpush.msra.mxu0 0.0
    %3832 = vmatpush.msra.mxu0 0.0
    %3833 = vmatpush.msra.mxu0 %v3818
    %3834 = vmatpush.msra.mxu0 %v3809
    %3835 = vmatpush.msra.mxu0 %v3808
    %3836 = vmatmul.f32.gmra.mxu0 %v3815
    %v3837 = vpop.f32.mrf.mxu0
    %v3838 = vadd.f32 0.0, %v3837
    %3839 = vdwg.mxu0
    %v3840 = vadd.f32 %v3804, %v3838
    %v3841 = vld [vmem:[%s3732 + $0x3] sm:$0x1]
    %v3842 = vld [vmem:[%s3732 + $0x43] sm:$0x1]
    %s3843 = scalar_lea.vmem %s3, 240
    %v3844 = vld [vmem:[%s3843] sm:$0xff]
    %v3845 = vld [vmem:[%s3843 + $0x8] sm:$0xff]
    %v3846 = vld [vmem:[%s3843 + $0x10] sm:$0xf]
    %v3849 = vrot.slane %v3842, 7
    %v3850 = vsel %vm3332, %v3849, %v3841
    %v3851 = vsel %vm2819, %v3850, 0
    %v3854 = vsel %vm301, %v3846, 0
    %3856 = vmatpush.msra.mxu0 0.0
    %3857 = vmatpush.msra.mxu0 0.0
    %3858 = vmatpush.msra.mxu0 0.0
    %3859 = vmatpush.msra.mxu0 0.0
    %3860 = vmatpush.msra.mxu0 0.0
    %3861 = vmatpush.msra.mxu0 0.0
    %3862 = vmatpush.msra.mxu0 0.0
    %3863 = vmatpush.msra.mxu0 0.0
    %3864 = vmatpush.msra.mxu0 0.0
    %3865 = vmatpush.msra.mxu0 0.0
    %3866 = vmatpush.msra.mxu0 0.0
    %3867 = vmatpush.msra.mxu0 0.0
    %3868 = vmatpush.msra.mxu0 0.0
    %3869 = vmatpush.msra.mxu0 %v3854
    %3870 = vmatpush.msra.mxu0 %v3845
    %3871 = vmatpush.msra.mxu0 %v3844
    %3872 = vmatmul.f32.gmra.mxu0 %v3851
    %v3873 = vpop.f32.mrf.mxu0
    %v3874 = vadd.f32 0.0, %v3873
    %3875 = vdwg.mxu0
    %v3876 = vadd.f32 %v3840, %v3874
    %v3877 = vld [vmem:[%s3732 + $0x4] sm:$0x1]
    %v3878 = vld [vmem:[%s3732 + $0x44] sm:$0x1]
    %s3879 = scalar_lea.vmem %s3, 264
    %v3880 = vld [vmem:[%s3879] sm:$0xff]
    %v3881 = vld [vmem:[%s3879 + $0x8] sm:$0xff]
    %v3882 = vld [vmem:[%s3879 + $0x10] sm:$0xf]
    %v3885 = vrot.slane %v3878, 7
    %v3886 = vsel %vm3332, %v3885, %v3877
    %v3887 = vsel %vm2819, %v3886, 0
    %v3890 = vsel %vm301, %v3882, 0
    %3892 = vmatpush.msra.mxu0 0.0
    %3893 = vmatpush.msra.mxu0 0.0
    %3894 = vmatpush.msra.mxu0 0.0
    %3895 = vmatpush.msra.mxu0 0.0
    %3896 = vmatpush.msra.mxu0 0.0
    %3897 = vmatpush.msra.mxu0 0.0
    %3898 = vmatpush.msra.mxu0 0.0
    %3899 = vmatpush.msra.mxu0 0.0
    %3900 = vmatpush.msra.mxu0 0.0
    %3901 = vmatpush.msra.mxu0 0.0
    %3902 = vmatpush.msra.mxu0 0.0
    %3903 = vmatpush.msra.mxu0 0.0
    %3904 = vmatpush.msra.mxu0 0.0
    %3905 = vmatpush.msra.mxu0 %v3890
    %3906 = vmatpush.msra.mxu0 %v3881
    %3907 = vmatpush.msra.mxu0 %v3880
    %3908 = vmatmul.f32.gmra.mxu0 %v3887
    %v3909 = vpop.f32.mrf.mxu0
    %v3910 = vadd.f32 0.0, %v3909
    %3911 = vdwg.mxu0
    %v3912 = vadd.f32 %v3876, %v3910
    %v3913 = vld [vmem:[%s3732 + $0x5] sm:$0x1]
    %v3914 = vld [vmem:[%s3732 + $0x45] sm:$0x1]
    %s3915 = scalar_lea.vmem %s3, 288
    %v3916 = vld [vmem:[%s3915] sm:$0xff]
    %v3917 = vld [vmem:[%s3915 + $0x8] sm:$0xff]
    %v3918 = vld [vmem:[%s3915 + $0x10] sm:$0xf]
    %v3921 = vrot.slane %v3914, 7
    %v3922 = vsel %vm3332, %v3921, %v3913
    %v3923 = vsel %vm2819, %v3922, 0
    %v3926 = vsel %vm301, %v3918, 0
    %3928 = vmatpush.msra.mxu0 0.0
    %3929 = vmatpush.msra.mxu0 0.0
    %3930 = vmatpush.msra.mxu0 0.0
    %3931 = vmatpush.msra.mxu0 0.0
    %3932 = vmatpush.msra.mxu0 0.0
    %3933 = vmatpush.msra.mxu0 0.0
    %3934 = vmatpush.msra.mxu0 0.0
    %3935 = vmatpush.msra.mxu0 0.0
    %3936 = vmatpush.msra.mxu0 0.0
    %3937 = vmatpush.msra.mxu0 0.0
    %3938 = vmatpush.msra.mxu0 0.0
    %3939 = vmatpush.msra.mxu0 0.0
    %3940 = vmatpush.msra.mxu0 0.0
    %3941 = vmatpush.msra.mxu0 %v3926
    %3942 = vmatpush.msra.mxu0 %v3917
    %3943 = vmatpush.msra.mxu0 %v3916
    %3944 = vmatmul.f32.gmra.mxu0 %v3923
    %v3945 = vpop.f32.mrf.mxu0
    %v3946 = vadd.f32 0.0, %v3945
    %3947 = vdwg.mxu0
    %v3948 = vadd.f32 %v3912, %v3946
    %v3949 = vld [vmem:[%s3732 + $0x6] sm:$0x1]
    %v3950 = vld [vmem:[%s3732 + $0x46] sm:$0x1]
    %s3951 = scalar_lea.vmem %s3, 312
    %v3952 = vld [vmem:[%s3951] sm:$0xff]
    %v3953 = vld [vmem:[%s3951 + $0x8] sm:$0xff]
    %v3954 = vld [vmem:[%s3951 + $0x10] sm:$0xf]
    %v3957 = vrot.slane %v3950, 7
    %v3958 = vsel %vm3332, %v3957, %v3949
    %v3959 = vsel %vm2819, %v3958, 0
    %v3962 = vsel %vm301, %v3954, 0
    %3964 = vmatpush.msra.mxu0 0.0
    %3965 = vmatpush.msra.mxu0 0.0
    %3966 = vmatpush.msra.mxu0 0.0
    %3967 = vmatpush.msra.mxu0 0.0
    %3968 = vmatpush.msra.mxu0 0.0
    %3969 = vmatpush.msra.mxu0 0.0
    %3970 = vmatpush.msra.mxu0 0.0
    %3971 = vmatpush.msra.mxu0 0.0
    %3972 = vmatpush.msra.mxu0 0.0
    %3973 = vmatpush.msra.mxu0 0.0
    %3974 = vmatpush.msra.mxu0 0.0
    %3975 = vmatpush.msra.mxu0 0.0
    %3976 = vmatpush.msra.mxu0 0.0
    %3977 = vmatpush.msra.mxu0 %v3962
    %3978 = vmatpush.msra.mxu0 %v3953
    %3979 = vmatpush.msra.mxu0 %v3952
    %3980 = vmatmul.f32.gmra.mxu0 %v3959
    %v3981 = vpop.f32.mrf.mxu0
    %v3982 = vadd.f32 0.0, %v3981
    %3983 = vdwg.mxu0
    %v3984 = vadd.f32 %v3948, %v3982
    %s3985 = scalar_lea.vmem [#allocation2], 16
    %v3986 = vld [vmem:[%s3985] sm:$0x1]
    %v3987 = vld [vmem:[%s3985 + $0x40] sm:$0x1]
    %s3988 = scalar_lea.vmem %s3, 336
    %v3989 = vld [vmem:[%s3988] sm:$0xff]
    %v3990 = vld [vmem:[%s3988 + $0x8] sm:$0xff]
    %v3991 = vld [vmem:[%s3988 + $0x10] sm:$0xf]
    %v3994 = vrot.slane %v3987, 7
    %v3995 = vsel %vm3332, %v3994, %v3986
    %v3996 = vsel %vm2819, %v3995, 0
    %v3999 = vsel %vm301, %v3991, 0
    %4001 = vmatpush.msra.mxu0 0.0
    %4002 = vmatpush.msra.mxu0 0.0
    %4003 = vmatpush.msra.mxu0 0.0
    %4004 = vmatpush.msra.mxu0 0.0
    %4005 = vmatpush.msra.mxu0 0.0
    %4006 = vmatpush.msra.mxu0 0.0
    %4007 = vmatpush.msra.mxu0 0.0
    %4008 = vmatpush.msra.mxu0 0.0
    %4009 = vmatpush.msra.mxu0 0.0
    %4010 = vmatpush.msra.mxu0 0.0
    %4011 = vmatpush.msra.mxu0 0.0
    %4012 = vmatpush.msra.mxu0 0.0
    %4013 = vmatpush.msra.mxu0 0.0
    %4014 = vmatpush.msra.mxu0 %v3999
    %4015 = vmatpush.msra.mxu0 %v3990
    %4016 = vmatpush.msra.mxu0 %v3989
    %4017 = vmatmul.f32.gmra.mxu0 %v3996
    %v4018 = vpop.f32.mrf.mxu0
    %v4019 = vadd.f32 0.0, %v4018
    %4020 = vdwg.mxu0
    %v4021 = vadd.f32 %v3984, %v4019
    %v4022 = vld [vmem:[%s3985 + $0x1] sm:$0x1]
    %v4023 = vld [vmem:[%s3985 + $0x41] sm:$0x1]
    %s4024 = scalar_lea.vmem %s3, 360
    %v4025 = vld [vmem:[%s4024] sm:$0xff]
    %v4026 = vld [vmem:[%s4024 + $0x8] sm:$0xff]
    %v4027 = vld [vmem:[%s4024 + $0x10] sm:$0xf]
    %v4030 = vrot.slane %v4023, 7
    %v4031 = vsel %vm3332, %v4030, %v4022
    %v4032 = vsel %vm2819, %v4031, 0
    %v4035 = vsel %vm301, %v4027, 0
    %4037 = vmatpush.msra.mxu0 0.0
    %4038 = vmatpush.msra.mxu0 0.0
    %4039 = vmatpush.msra.mxu0 0.0
    %4040 = vmatpush.msra.mxu0 0.0
    %4041 = vmatpush.msra.mxu0 0.0
    %4042 = vmatpush.msra.mxu0 0.0
    %4043 = vmatpush.msra.mxu0 0.0
    %4044 = vmatpush.msra.mxu0 0.0
    %4045 = vmatpush.msra.mxu0 0.0
    %4046 = vmatpush.msra.mxu0 0.0
    %4047 = vmatpush.msra.mxu0 0.0
    %4048 = vmatpush.msra.mxu0 0.0
    %4049 = vmatpush.msra.mxu0 0.0
    %4050 = vmatpush.msra.mxu0 %v4035
    %4051 = vmatpush.msra.mxu0 %v4026
    %4052 = vmatpush.msra.mxu0 %v4025
    %4053 = vmatmul.f32.gmra.mxu0 %v4032
    %v4054 = vpop.f32.mrf.mxu0
    %v4055 = vadd.f32 0.0, %v4054
    %4056 = vdwg.mxu0
    %v4057 = vadd.f32 %v4021, %v4055
    %v4058 = vld [vmem:[%s3985 + $0x2] sm:$0x1]
    %v4059 = vld [vmem:[%s3985 + $0x42] sm:$0x1]
    %s4060 = scalar_lea.vmem %s3, 384
    %v4061 = vld [vmem:[%s4060] sm:$0xff]
    %v4062 = vld [vmem:[%s4060 + $0x8] sm:$0xff]
    %v4063 = vld [vmem:[%s4060 + $0x10] sm:$0xf]
    %v4066 = vrot.slane %v4059, 7
    %v4067 = vsel %vm3332, %v4066, %v4058
    %v4068 = vsel %vm2819, %v4067, 0
    %v4071 = vsel %vm301, %v4063, 0
    %4073 = vmatpush.msra.mxu0 0.0
    %4074 = vmatpush.msra.mxu0 0.0
    %4075 = vmatpush.msra.mxu0 0.0
    %4076 = vmatpush.msra.mxu0 0.0
    %4077 = vmatpush.msra.mxu0 0.0
    %4078 = vmatpush.msra.mxu0 0.0
    %4079 = vmatpush.msra.mxu0 0.0
    %4080 = vmatpush.msra.mxu0 0.0
    %4081 = vmatpush.msra.mxu0 0.0
    %4082 = vmatpush.msra.mxu0 0.0
    %4083 = vmatpush.msra.mxu0 0.0
    %4084 = vmatpush.msra.mxu0 0.0
    %4085 = vmatpush.msra.mxu0 0.0
    %4086 = vmatpush.msra.mxu0 %v4071
    %4087 = vmatpush.msra.mxu0 %v4062
    %4088 = vmatpush.msra.mxu0 %v4061
    %4089 = vmatmul.f32.gmra.mxu0 %v4068
    %v4090 = vpop.f32.mrf.mxu0
    %v4091 = vadd.f32 0.0, %v4090
    %4092 = vdwg.mxu0
    %v4093 = vadd.f32 %v4057, %v4091
    %v4094 = vld [vmem:[%s3985 + $0x3] sm:$0x1]
    %v4095 = vld [vmem:[%s3985 + $0x43] sm:$0x1]
    %s4096 = scalar_lea.vmem %s3, 408
    %v4097 = vld [vmem:[%s4096] sm:$0xff]
    %v4098 = vld [vmem:[%s4096 + $0x8] sm:$0xff]
    %v4099 = vld [vmem:[%s4096 + $0x10] sm:$0xf]
    %v4102 = vrot.slane %v4095, 7
    %v4103 = vsel %vm3332, %v4102, %v4094
    %v4104 = vsel %vm2819, %v4103, 0
    %v4107 = vsel %vm301, %v4099, 0
    %4109 = vmatpush.msra.mxu0 0.0
    %4110 = vmatpush.msra.mxu0 0.0
    %4111 = vmatpush.msra.mxu0 0.0
    %4112 = vmatpush.msra.mxu0 0.0
    %4113 = vmatpush.msra.mxu0 0.0
    %4114 = vmatpush.msra.mxu0 0.0
    %4115 = vmatpush.msra.mxu0 0.0
    %4116 = vmatpush.msra.mxu0 0.0
    %4117 = vmatpush.msra.mxu0 0.0
    %4118 = vmatpush.msra.mxu0 0.0
    %4119 = vmatpush.msra.mxu0 0.0
    %4120 = vmatpush.msra.mxu0 0.0
    %4121 = vmatpush.msra.mxu0 0.0
    %4122 = vmatpush.msra.mxu0 %v4107
    %4123 = vmatpush.msra.mxu0 %v4098
    %4124 = vmatpush.msra.mxu0 %v4097
    %4125 = vmatmul.f32.gmra.mxu0 %v4104
    %v4126 = vpop.f32.mrf.mxu0
    %v4127 = vadd.f32 0.0, %v4126
    %4128 = vdwg.mxu0
    %v4129 = vadd.f32 %v4093, %v4127
    %v4130 = vld [vmem:[%s3985 + $0x4] sm:$0x1]
    %v4131 = vld [vmem:[%s3985 + $0x44] sm:$0x1]
    %s4132 = scalar_lea.vmem %s3, 432
    %v4133 = vld [vmem:[%s4132] sm:$0xff]
    %v4134 = vld [vmem:[%s4132 + $0x8] sm:$0xff]
    %v4135 = vld [vmem:[%s4132 + $0x10] sm:$0xf]
    %v4138 = vrot.slane %v4131, 7
    %v4139 = vsel %vm3332, %v4138, %v4130
    %v4140 = vsel %vm2819, %v4139, 0
    %v4143 = vsel %vm301, %v4135, 0
    %4145 = vmatpush.msra.mxu0 0.0
    %4146 = vmatpush.msra.mxu0 0.0
    %4147 = vmatpush.msra.mxu0 0.0
    %4148 = vmatpush.msra.mxu0 0.0
    %4149 = vmatpush.msra.mxu0 0.0
    %4150 = vmatpush.msra.mxu0 0.0
    %4151 = vmatpush.msra.mxu0 0.0
    %4152 = vmatpush.msra.mxu0 0.0
    %4153 = vmatpush.msra.mxu0 0.0
    %4154 = vmatpush.msra.mxu0 0.0
    %4155 = vmatpush.msra.mxu0 0.0
    %4156 = vmatpush.msra.mxu0 0.0
    %4157 = vmatpush.msra.mxu0 0.0
    %4158 = vmatpush.msra.mxu0 %v4143
    %4159 = vmatpush.msra.mxu0 %v4134
    %4160 = vmatpush.msra.mxu0 %v4133
    %4161 = vmatmul.f32.gmra.mxu0 %v4140
    %v4162 = vpop.f32.mrf.mxu0
    %v4163 = vadd.f32 0.0, %v4162
    %4164 = vdwg.mxu0
    %v4165 = vadd.f32 %v4129, %v4163
    %v4166 = vld [vmem:[%s3985 + $0x5] sm:$0x1]
    %v4167 = vld [vmem:[%s3985 + $0x45] sm:$0x1]
    %s4168 = scalar_lea.vmem %s3, 456
    %v4169 = vld [vmem:[%s4168] sm:$0xff]
    %v4170 = vld [vmem:[%s4168 + $0x8] sm:$0xff]
    %v4171 = vld [vmem:[%s4168 + $0x10] sm:$0xf]
    %v4174 = vrot.slane %v4167, 7
    %v4175 = vsel %vm3332, %v4174, %v4166
    %v4176 = vsel %vm2819, %v4175, 0
    %v4179 = vsel %vm301, %v4171, 0
    %4181 = vmatpush.msra.mxu0 0.0
    %4182 = vmatpush.msra.mxu0 0.0
    %4183 = vmatpush.msra.mxu0 0.0
    %4184 = vmatpush.msra.mxu0 0.0
    %4185 = vmatpush.msra.mxu0 0.0
    %4186 = vmatpush.msra.mxu0 0.0
    %4187 = vmatpush.msra.mxu0 0.0
    %4188 = vmatpush.msra.mxu0 0.0
    %4189 = vmatpush.msra.mxu0 0.0
    %4190 = vmatpush.msra.mxu0 0.0
    %4191 = vmatpush.msra.mxu0 0.0
    %4192 = vmatpush.msra.mxu0 0.0
    %4193 = vmatpush.msra.mxu0 0.0
    %4194 = vmatpush.msra.mxu0 %v4179
    %4195 = vmatpush.msra.mxu0 %v4170
    %4196 = vmatpush.msra.mxu0 %v4169
    %4197 = vmatmul.f32.gmra.mxu0 %v4176
    %v4198 = vpop.f32.mrf.mxu0
    %v4199 = vadd.f32 0.0, %v4198
    %4200 = vdwg.mxu0
    %v4201 = vadd.f32 %v4165, %v4199
    %v4202 = vld [vmem:[%s3985 + $0x6] sm:$0x1]
    %v4203 = vld [vmem:[%s3985 + $0x46] sm:$0x1]
    %s4204 = scalar_lea.vmem %s3, 480
    %v4205 = vld [vmem:[%s4204] sm:$0xff]
    %v4206 = vld [vmem:[%s4204 + $0x8] sm:$0xff]
    %v4207 = vld [vmem:[%s4204 + $0x10] sm:$0xf]
    %v4210 = vrot.slane %v4203, 7
    %v4211 = vsel %vm3332, %v4210, %v4202
    %v4212 = vsel %vm2819, %v4211, 0
    %v4215 = vsel %vm301, %v4207, 0
    %4217 = vmatpush.msra.mxu0 0.0
    %4218 = vmatpush.msra.mxu0 0.0
    %4219 = vmatpush.msra.mxu0 0.0
    %4220 = vmatpush.msra.mxu0 0.0
    %4221 = vmatpush.msra.mxu0 0.0
    %4222 = vmatpush.msra.mxu0 0.0
    %4223 = vmatpush.msra.mxu0 0.0
    %4224 = vmatpush.msra.mxu0 0.0
    %4225 = vmatpush.msra.mxu0 0.0
    %4226 = vmatpush.msra.mxu0 0.0
    %4227 = vmatpush.msra.mxu0 0.0
    %4228 = vmatpush.msra.mxu0 0.0
    %4229 = vmatpush.msra.mxu0 0.0
    %4230 = vmatpush.msra.mxu0 %v4215
    %4231 = vmatpush.msra.mxu0 %v4206
    %4232 = vmatpush.msra.mxu0 %v4205
    %4233 = vmatmul.f32.gmra.mxu0 %v4212
    %v4234 = vpop.f32.mrf.mxu0
    %v4235 = vadd.f32 0.0, %v4234
    %4236 = vdwg.mxu0
    %v4237 = vadd.f32 %v4201, %v4235
    %s4238 = scalar_lea.vmem [#allocation2], 24
    %v4239 = vld [vmem:[%s4238] sm:$0x1]
    %v4240 = vld [vmem:[%s4238 + $0x40] sm:$0x1]
    %s4241 = scalar_lea.vmem %s3, 504
    %v4242 = vld [vmem:[%s4241] sm:$0xff]
    %v4243 = vld [vmem:[%s4241 + $0x8] sm:$0xff]
    %v4244 = vld [vmem:[%s4241 + $0x10] sm:$0xf]
    %v4247 = vrot.slane %v4240, 7
    %v4248 = vsel %vm3332, %v4247, %v4239
    %v4249 = vsel %vm2819, %v4248, 0
    %v4252 = vsel %vm301, %v4244, 0
    %4254 = vmatpush.msra.mxu0 0.0
    %4255 = vmatpush.msra.mxu0 0.0
    %4256 = vmatpush.msra.mxu0 0.0
    %4257 = vmatpush.msra.mxu0 0.0
    %4258 = vmatpush.msra.mxu0 0.0
    %4259 = vmatpush.msra.mxu0 0.0
    %4260 = vmatpush.msra.mxu0 0.0
    %4261 = vmatpush.msra.mxu0 0.0
    %4262 = vmatpush.msra.mxu0 0.0
    %4263 = vmatpush.msra.mxu0 0.0
    %4264 = vmatpush.msra.mxu0 0.0
    %4265 = vmatpush.msra.mxu0 0.0
    %4266 = vmatpush.msra.mxu0 0.0
    %4267 = vmatpush.msra.mxu0 %v4252
    %4268 = vmatpush.msra.mxu0 %v4243
    %4269 = vmatpush.msra.mxu0 %v4242
    %4270 = vmatmul.f32.gmra.mxu0 %v4249
    %v4271 = vpop.f32.mrf.mxu0
    %v4272 = vadd.f32 0.0, %v4271
    %4273 = vdwg.mxu0
    %v4274 = vadd.f32 %v4237, %v4272
    %v4275 = vld [vmem:[%s4238 + $0x1] sm:$0x1]
    %v4276 = vld [vmem:[%s4238 + $0x41] sm:$0x1]
    %s4277 = scalar_lea.vmem %s3, 528
    %v4278 = vld [vmem:[%s4277] sm:$0xff]
    %v4279 = vld [vmem:[%s4277 + $0x8] sm:$0xff]
    %v4280 = vld [vmem:[%s4277 + $0x10] sm:$0xf]
    %v4283 = vrot.slane %v4276, 7
    %v4284 = vsel %vm3332, %v4283, %v4275
    %v4285 = vsel %vm2819, %v4284, 0
    %v4288 = vsel %vm301, %v4280, 0
    %4290 = vmatpush.msra.mxu0 0.0
    %4291 = vmatpush.msra.mxu0 0.0
    %4292 = vmatpush.msra.mxu0 0.0
    %4293 = vmatpush.msra.mxu0 0.0
    %4294 = vmatpush.msra.mxu0 0.0
    %4295 = vmatpush.msra.mxu0 0.0
    %4296 = vmatpush.msra.mxu0 0.0
    %4297 = vmatpush.msra.mxu0 0.0
    %4298 = vmatpush.msra.mxu0 0.0
    %4299 = vmatpush.msra.mxu0 0.0
    %4300 = vmatpush.msra.mxu0 0.0
    %4301 = vmatpush.msra.mxu0 0.0
    %4302 = vmatpush.msra.mxu0 0.0
    %4303 = vmatpush.msra.mxu0 %v4288
    %4304 = vmatpush.msra.mxu0 %v4279
    %4305 = vmatpush.msra.mxu0 %v4278
    %4306 = vmatmul.f32.gmra.mxu0 %v4285
    %v4307 = vpop.f32.mrf.mxu0
    %v4308 = vadd.f32 0.0, %v4307
    %4309 = vdwg.mxu0
    %v4310 = vadd.f32 %v4274, %v4308
    %v4311 = vld [vmem:[%s4238 + $0x2] sm:$0x1]
    %v4312 = vld [vmem:[%s4238 + $0x42] sm:$0x1]
    %s4313 = scalar_lea.vmem %s3, 552
    %v4314 = vld [vmem:[%s4313] sm:$0xff]
    %v4315 = vld [vmem:[%s4313 + $0x8] sm:$0xff]
    %v4316 = vld [vmem:[%s4313 + $0x10] sm:$0xf]
    %v4319 = vrot.slane %v4312, 7
    %v4320 = vsel %vm3332, %v4319, %v4311
    %v4321 = vsel %vm2819, %v4320, 0
    %v4324 = vsel %vm301, %v4316, 0
    %4326 = vmatpush.msra.mxu0 0.0
    %4327 = vmatpush.msra.mxu0 0.0
    %4328 = vmatpush.msra.mxu0 0.0
    %4329 = vmatpush.msra.mxu0 0.0
    %4330 = vmatpush.msra.mxu0 0.0
    %4331 = vmatpush.msra.mxu0 0.0
    %4332 = vmatpush.msra.mxu0 0.0
    %4333 = vmatpush.msra.mxu0 0.0
    %4334 = vmatpush.msra.mxu0 0.0
    %4335 = vmatpush.msra.mxu0 0.0
    %4336 = vmatpush.msra.mxu0 0.0
    %4337 = vmatpush.msra.mxu0 0.0
    %4338 = vmatpush.msra.mxu0 0.0
    %4339 = vmatpush.msra.mxu0 %v4324
    %4340 = vmatpush.msra.mxu0 %v4315
    %4341 = vmatpush.msra.mxu0 %v4314
    %4342 = vmatmul.f32.gmra.mxu0 %v4321
    %v4343 = vpop.f32.mrf.mxu0
    %v4344 = vadd.f32 0.0, %v4343
    %4345 = vdwg.mxu0
    %v4346 = vadd.f32 %v4310, %v4344
    %v4347 = vld [vmem:[%s4238 + $0x3] sm:$0x1]
    %v4348 = vld [vmem:[%s4238 + $0x43] sm:$0x1]
    %s4349 = scalar_lea.vmem %s3, 576
    %v4350 = vld [vmem:[%s4349] sm:$0xff]
    %v4351 = vld [vmem:[%s4349 + $0x8] sm:$0xff]
    %v4352 = vld [vmem:[%s4349 + $0x10] sm:$0xf]
    %v4355 = vrot.slane %v4348, 7
    %v4356 = vsel %vm3332, %v4355, %v4347
    %v4357 = vsel %vm2819, %v4356, 0
    %v4360 = vsel %vm301, %v4352, 0
    %4362 = vmatpush.msra.mxu0 0.0
    %4363 = vmatpush.msra.mxu0 0.0
    %4364 = vmatpush.msra.mxu0 0.0
    %4365 = vmatpush.msra.mxu0 0.0
    %4366 = vmatpush.msra.mxu0 0.0
    %4367 = vmatpush.msra.mxu0 0.0
    %4368 = vmatpush.msra.mxu0 0.0
    %4369 = vmatpush.msra.mxu0 0.0
    %4370 = vmatpush.msra.mxu0 0.0
    %4371 = vmatpush.msra.mxu0 0.0
    %4372 = vmatpush.msra.mxu0 0.0
    %4373 = vmatpush.msra.mxu0 0.0
    %4374 = vmatpush.msra.mxu0 0.0
    %4375 = vmatpush.msra.mxu0 %v4360
    %4376 = vmatpush.msra.mxu0 %v4351
    %4377 = vmatpush.msra.mxu0 %v4350
    %4378 = vmatmul.f32.gmra.mxu0 %v4357
    %v4379 = vpop.f32.mrf.mxu0
    %v4380 = vadd.f32 0.0, %v4379
    %4381 = vdwg.mxu0
    %v4382 = vadd.f32 %v4346, %v4380
    %v4383 = vld [vmem:[%s4238 + $0x4] sm:$0x1]
    %v4384 = vld [vmem:[%s4238 + $0x44] sm:$0x1]
    %s4385 = scalar_lea.vmem %s3, 600
    %v4386 = vld [vmem:[%s4385] sm:$0xff]
    %v4387 = vld [vmem:[%s4385 + $0x8] sm:$0xff]
    %v4388 = vld [vmem:[%s4385 + $0x10] sm:$0xf]
    %v4391 = vrot.slane %v4384, 7
    %v4392 = vsel %vm3332, %v4391, %v4383
    %v4393 = vsel %vm2819, %v4392, 0
    %v4396 = vsel %vm301, %v4388, 0
    %4398 = vmatpush.msra.mxu0 0.0
    %4399 = vmatpush.msra.mxu0 0.0
    %4400 = vmatpush.msra.mxu0 0.0
    %4401 = vmatpush.msra.mxu0 0.0
    %4402 = vmatpush.msra.mxu0 0.0
    %4403 = vmatpush.msra.mxu0 0.0
    %4404 = vmatpush.msra.mxu0 0.0
    %4405 = vmatpush.msra.mxu0 0.0
    %4406 = vmatpush.msra.mxu0 0.0
    %4407 = vmatpush.msra.mxu0 0.0
    %4408 = vmatpush.msra.mxu0 0.0
    %4409 = vmatpush.msra.mxu0 0.0
    %4410 = vmatpush.msra.mxu0 0.0
    %4411 = vmatpush.msra.mxu0 %v4396
    %4412 = vmatpush.msra.mxu0 %v4387
    %4413 = vmatpush.msra.mxu0 %v4386
    %4414 = vmatmul.f32.gmra.mxu0 %v4393
    %v4415 = vpop.f32.mrf.mxu0
    %v4416 = vadd.f32 0.0, %v4415
    %4417 = vdwg.mxu0
    %v4418 = vadd.f32 %v4382, %v4416
    %v4419 = vld [vmem:[%s4238 + $0x5] sm:$0x1]
    %v4420 = vld [vmem:[%s4238 + $0x45] sm:$0x1]
    %s4421 = scalar_lea.vmem %s3, 624
    %v4422 = vld [vmem:[%s4421] sm:$0xff]
    %v4423 = vld [vmem:[%s4421 + $0x8] sm:$0xff]
    %v4424 = vld [vmem:[%s4421 + $0x10] sm:$0xf]
    %v4427 = vrot.slane %v4420, 7
    %v4428 = vsel %vm3332, %v4427, %v4419
    %v4429 = vsel %vm2819, %v4428, 0
    %v4432 = vsel %vm301, %v4424, 0
    %4434 = vmatpush.msra.mxu0 0.0
    %4435 = vmatpush.msra.mxu0 0.0
    %4436 = vmatpush.msra.mxu0 0.0
    %4437 = vmatpush.msra.mxu0 0.0
    %4438 = vmatpush.msra.mxu0 0.0
    %4439 = vmatpush.msra.mxu0 0.0
    %4440 = vmatpush.msra.mxu0 0.0
    %4441 = vmatpush.msra.mxu0 0.0
    %4442 = vmatpush.msra.mxu0 0.0
    %4443 = vmatpush.msra.mxu0 0.0
    %4444 = vmatpush.msra.mxu0 0.0
    %4445 = vmatpush.msra.mxu0 0.0
    %4446 = vmatpush.msra.mxu0 0.0
    %4447 = vmatpush.msra.mxu0 %v4432
    %4448 = vmatpush.msra.mxu0 %v4423
    %4449 = vmatpush.msra.mxu0 %v4422
    %4450 = vmatmul.f32.gmra.mxu0 %v4429
    %v4451 = vpop.f32.mrf.mxu0
    %v4452 = vadd.f32 0.0, %v4451
    %4453 = vdwg.mxu0
    %v4454 = vadd.f32 %v4418, %v4452
    %v4455 = vld [vmem:[%s4238 + $0x6] sm:$0x1]
    %v4456 = vld [vmem:[%s4238 + $0x46] sm:$0x1]
    %s4457 = scalar_lea.vmem %s3, 648
    %v4458 = vld [vmem:[%s4457] sm:$0xff]
    %v4459 = vld [vmem:[%s4457 + $0x8] sm:$0xff]
    %v4460 = vld [vmem:[%s4457 + $0x10] sm:$0xf]
    %v4463 = vrot.slane %v4456, 7
    %v4464 = vsel %vm3332, %v4463, %v4455
    %v4465 = vsel %vm2819, %v4464, 0
    %v4468 = vsel %vm301, %v4460, 0
    %4470 = vmatpush.msra.mxu0 0.0
    %4471 = vmatpush.msra.mxu0 0.0
    %4472 = vmatpush.msra.mxu0 0.0
    %4473 = vmatpush.msra.mxu0 0.0
    %4474 = vmatpush.msra.mxu0 0.0
    %4475 = vmatpush.msra.mxu0 0.0
    %4476 = vmatpush.msra.mxu0 0.0
    %4477 = vmatpush.msra.mxu0 0.0
    %4478 = vmatpush.msra.mxu0 0.0
    %4479 = vmatpush.msra.mxu0 0.0
    %4480 = vmatpush.msra.mxu0 0.0
    %4481 = vmatpush.msra.mxu0 0.0
    %4482 = vmatpush.msra.mxu0 0.0
    %4483 = vmatpush.msra.mxu0 %v4468
    %4484 = vmatpush.msra.mxu0 %v4459
    %4485 = vmatpush.msra.mxu0 %v4458
    %4486 = vmatmul.f32.gmra.mxu0 %v4465
    %v4487 = vpop.f32.mrf.mxu0
    %v4488 = vadd.f32 0.0, %v4487
    %4489 = vdwg.mxu0
    %v4490 = vadd.f32 %v4454, %v4488
    %s4491 = scalar_lea.vmem [#allocation2], 32
    %v4492 = vld [vmem:[%s4491] sm:$0x1]
    %v4493 = vld [vmem:[%s4491 + $0x40] sm:$0x1]
    %s4494 = scalar_lea.vmem %s3, 672
    %v4495 = vld [vmem:[%s4494] sm:$0xff]
    %v4496 = vld [vmem:[%s4494 + $0x8] sm:$0xff]
    %v4497 = vld [vmem:[%s4494 + $0x10] sm:$0xf]
    %v4500 = vrot.slane %v4493, 7
    %v4501 = vsel %vm3332, %v4500, %v4492
    %v4502 = vsel %vm2819, %v4501, 0
    %v4505 = vsel %vm301, %v4497, 0
    %4507 = vmatpush.msra.mxu0 0.0
    %4508 = vmatpush.msra.mxu0 0.0
    %4509 = vmatpush.msra.mxu0 0.0
    %4510 = vmatpush.msra.mxu0 0.0
    %4511 = vmatpush.msra.mxu0 0.0
    %4512 = vmatpush.msra.mxu0 0.0
    %4513 = vmatpush.msra.mxu0 0.0
    %4514 = vmatpush.msra.mxu0 0.0
    %4515 = vmatpush.msra.mxu0 0.0
    %4516 = vmatpush.msra.mxu0 0.0
    %4517 = vmatpush.msra.mxu0 0.0
    %4518 = vmatpush.msra.mxu0 0.0
    %4519 = vmatpush.msra.mxu0 0.0
    %4520 = vmatpush.msra.mxu0 %v4505
    %4521 = vmatpush.msra.mxu0 %v4496
    %4522 = vmatpush.msra.mxu0 %v4495
    %4523 = vmatmul.f32.gmra.mxu0 %v4502
    %v4524 = vpop.f32.mrf.mxu0
    %v4525 = vadd.f32 0.0, %v4524
    %4526 = vdwg.mxu0
    %v4527 = vadd.f32 %v4490, %v4525
    %v4528 = vld [vmem:[%s4491 + $0x1] sm:$0x1]
    %v4529 = vld [vmem:[%s4491 + $0x41] sm:$0x1]
    %s4530 = scalar_lea.vmem %s3, 696
    %v4531 = vld [vmem:[%s4530] sm:$0xff]
    %v4532 = vld [vmem:[%s4530 + $0x8] sm:$0xff]
    %v4533 = vld [vmem:[%s4530 + $0x10] sm:$0xf]
    %v4536 = vrot.slane %v4529, 7
    %v4537 = vsel %vm3332, %v4536, %v4528
    %v4538 = vsel %vm2819, %v4537, 0
    %v4541 = vsel %vm301, %v4533, 0
    %4543 = vmatpush.msra.mxu0 0.0
    %4544 = vmatpush.msra.mxu0 0.0
    %4545 = vmatpush.msra.mxu0 0.0
    %4546 = vmatpush.msra.mxu0 0.0
    %4547 = vmatpush.msra.mxu0 0.0
    %4548 = vmatpush.msra.mxu0 0.0
    %4549 = vmatpush.msra.mxu0 0.0
    %4550 = vmatpush.msra.mxu0 0.0
    %4551 = vmatpush.msra.mxu0 0.0
    %4552 = vmatpush.msra.mxu0 0.0
    %4553 = vmatpush.msra.mxu0 0.0
    %4554 = vmatpush.msra.mxu0 0.0
    %4555 = vmatpush.msra.mxu0 0.0
    %4556 = vmatpush.msra.mxu0 %v4541
    %4557 = vmatpush.msra.mxu0 %v4532
    %4558 = vmatpush.msra.mxu0 %v4531
    %4559 = vmatmul.f32.gmra.mxu0 %v4538
    %v4560 = vpop.f32.mrf.mxu0
    %v4561 = vadd.f32 0.0, %v4560
    %4562 = vdwg.mxu0
    %v4563 = vadd.f32 %v4527, %v4561
    %v4564 = vld [vmem:[%s4491 + $0x2] sm:$0x1]
    %v4565 = vld [vmem:[%s4491 + $0x42] sm:$0x1]
    %s4566 = scalar_lea.vmem %s3, 720
    %v4567 = vld [vmem:[%s4566] sm:$0xff]
    %v4568 = vld [vmem:[%s4566 + $0x8] sm:$0xff]
    %v4569 = vld [vmem:[%s4566 + $0x10] sm:$0xf]
    %v4572 = vrot.slane %v4565, 7
    %v4573 = vsel %vm3332, %v4572, %v4564
    %v4574 = vsel %vm2819, %v4573, 0
    %v4577 = vsel %vm301, %v4569, 0
    %4579 = vmatpush.msra.mxu0 0.0
    %4580 = vmatpush.msra.mxu0 0.0
    %4581 = vmatpush.msra.mxu0 0.0
    %4582 = vmatpush.msra.mxu0 0.0
    %4583 = vmatpush.msra.mxu0 0.0
    %4584 = vmatpush.msra.mxu0 0.0
    %4585 = vmatpush.msra.mxu0 0.0
    %4586 = vmatpush.msra.mxu0 0.0
    %4587 = vmatpush.msra.mxu0 0.0
    %4588 = vmatpush.msra.mxu0 0.0
    %4589 = vmatpush.msra.mxu0 0.0
    %4590 = vmatpush.msra.mxu0 0.0
    %4591 = vmatpush.msra.mxu0 0.0
    %4592 = vmatpush.msra.mxu0 %v4577
    %4593 = vmatpush.msra.mxu0 %v4568
    %4594 = vmatpush.msra.mxu0 %v4567
    %4595 = vmatmul.f32.gmra.mxu0 %v4574
    %v4596 = vpop.f32.mrf.mxu0
    %v4597 = vadd.f32 0.0, %v4596
    %4598 = vdwg.mxu0
    %v4599 = vadd.f32 %v4563, %v4597
    %v4600 = vld [vmem:[%s4491 + $0x3] sm:$0x1]
    %v4601 = vld [vmem:[%s4491 + $0x43] sm:$0x1]
    %s4602 = scalar_lea.vmem %s3, 744
    %v4603 = vld [vmem:[%s4602] sm:$0xff]
    %v4604 = vld [vmem:[%s4602 + $0x8] sm:$0xff]
    %v4605 = vld [vmem:[%s4602 + $0x10] sm:$0xf]
    %v4608 = vrot.slane %v4601, 7
    %v4609 = vsel %vm3332, %v4608, %v4600
    %v4610 = vsel %vm2819, %v4609, 0
    %v4613 = vsel %vm301, %v4605, 0
    %4615 = vmatpush.msra.mxu0 0.0
    %4616 = vmatpush.msra.mxu0 0.0
    %4617 = vmatpush.msra.mxu0 0.0
    %4618 = vmatpush.msra.mxu0 0.0
    %4619 = vmatpush.msra.mxu0 0.0
    %4620 = vmatpush.msra.mxu0 0.0
    %4621 = vmatpush.msra.mxu0 0.0
    %4622 = vmatpush.msra.mxu0 0.0
    %4623 = vmatpush.msra.mxu0 0.0
    %4624 = vmatpush.msra.mxu0 0.0
    %4625 = vmatpush.msra.mxu0 0.0
    %4626 = vmatpush.msra.mxu0 0.0
    %4627 = vmatpush.msra.mxu0 0.0
    %4628 = vmatpush.msra.mxu0 %v4613
    %4629 = vmatpush.msra.mxu0 %v4604
    %4630 = vmatpush.msra.mxu0 %v4603
    %4631 = vmatmul.f32.gmra.mxu0 %v4610
    %v4632 = vpop.f32.mrf.mxu0
    %v4633 = vadd.f32 0.0, %v4632
    %4634 = vdwg.mxu0
    %v4635 = vadd.f32 %v4599, %v4633
    %v4636 = vld [vmem:[%s4491 + $0x4] sm:$0x1]
    %v4637 = vld [vmem:[%s4491 + $0x44] sm:$0x1]
    %s4638 = scalar_lea.vmem %s3, 768
    %v4639 = vld [vmem:[%s4638] sm:$0xff]
    %v4640 = vld [vmem:[%s4638 + $0x8] sm:$0xff]
    %v4641 = vld [vmem:[%s4638 + $0x10] sm:$0xf]
    %v4644 = vrot.slane %v4637, 7
    %v4645 = vsel %vm3332, %v4644, %v4636
    %v4646 = vsel %vm2819, %v4645, 0
    %v4649 = vsel %vm301, %v4641, 0
    %4651 = vmatpush.msra.mxu0 0.0
    %4652 = vmatpush.msra.mxu0 0.0
    %4653 = vmatpush.msra.mxu0 0.0
    %4654 = vmatpush.msra.mxu0 0.0
    %4655 = vmatpush.msra.mxu0 0.0
    %4656 = vmatpush.msra.mxu0 0.0
    %4657 = vmatpush.msra.mxu0 0.0
    %4658 = vmatpush.msra.mxu0 0.0
    %4659 = vmatpush.msra.mxu0 0.0
    %4660 = vmatpush.msra.mxu0 0.0
    %4661 = vmatpush.msra.mxu0 0.0
    %4662 = vmatpush.msra.mxu0 0.0
    %4663 = vmatpush.msra.mxu0 0.0
    %4664 = vmatpush.msra.mxu0 %v4649
    %4665 = vmatpush.msra.mxu0 %v4640
    %4666 = vmatpush.msra.mxu0 %v4639
    %4667 = vmatmul.f32.gmra.mxu0 %v4646
    %v4668 = vpop.f32.mrf.mxu0
    %v4669 = vadd.f32 0.0, %v4668
    %4670 = vdwg.mxu0
    %v4671 = vadd.f32 %v4635, %v4669
    %v4672 = vld [vmem:[%s4491 + $0x5] sm:$0x1]
    %v4673 = vld [vmem:[%s4491 + $0x45] sm:$0x1]
    %s4674 = scalar_lea.vmem %s3, 792
    %v4675 = vld [vmem:[%s4674] sm:$0xff]
    %v4676 = vld [vmem:[%s4674 + $0x8] sm:$0xff]
    %v4677 = vld [vmem:[%s4674 + $0x10] sm:$0xf]
    %v4680 = vrot.slane %v4673, 7
    %v4681 = vsel %vm3332, %v4680, %v4672
    %v4682 = vsel %vm2819, %v4681, 0
    %v4685 = vsel %vm301, %v4677, 0
    %4687 = vmatpush.msra.mxu0 0.0
    %4688 = vmatpush.msra.mxu0 0.0
    %4689 = vmatpush.msra.mxu0 0.0
    %4690 = vmatpush.msra.mxu0 0.0
    %4691 = vmatpush.msra.mxu0 0.0
    %4692 = vmatpush.msra.mxu0 0.0
    %4693 = vmatpush.msra.mxu0 0.0
    %4694 = vmatpush.msra.mxu0 0.0
    %4695 = vmatpush.msra.mxu0 0.0
    %4696 = vmatpush.msra.mxu0 0.0
    %4697 = vmatpush.msra.mxu0 0.0
    %4698 = vmatpush.msra.mxu0 0.0
    %4699 = vmatpush.msra.mxu0 0.0
    %4700 = vmatpush.msra.mxu0 %v4685
    %4701 = vmatpush.msra.mxu0 %v4676
    %4702 = vmatpush.msra.mxu0 %v4675
    %4703 = vmatmul.f32.gmra.mxu0 %v4682
    %v4704 = vpop.f32.mrf.mxu0
    %v4705 = vadd.f32 0.0, %v4704
    %4706 = vdwg.mxu0
    %v4707 = vadd.f32 %v4671, %v4705
    %v4708 = vld [vmem:[%s4491 + $0x6] sm:$0x1]
    %v4709 = vld [vmem:[%s4491 + $0x46] sm:$0x1]
    %s4710 = scalar_lea.vmem %s3, 816
    %v4711 = vld [vmem:[%s4710] sm:$0xff]
    %v4712 = vld [vmem:[%s4710 + $0x8] sm:$0xff]
    %v4713 = vld [vmem:[%s4710 + $0x10] sm:$0xf]
    %v4716 = vrot.slane %v4709, 7
    %v4717 = vsel %vm3332, %v4716, %v4708
    %v4718 = vsel %vm2819, %v4717, 0
    %v4721 = vsel %vm301, %v4713, 0
    %4723 = vmatpush.msra.mxu0 0.0
    %4724 = vmatpush.msra.mxu0 0.0
    %4725 = vmatpush.msra.mxu0 0.0
    %4726 = vmatpush.msra.mxu0 0.0
    %4727 = vmatpush.msra.mxu0 0.0
    %4728 = vmatpush.msra.mxu0 0.0
    %4729 = vmatpush.msra.mxu0 0.0
    %4730 = vmatpush.msra.mxu0 0.0
    %4731 = vmatpush.msra.mxu0 0.0
    %4732 = vmatpush.msra.mxu0 0.0
    %4733 = vmatpush.msra.mxu0 0.0
    %4734 = vmatpush.msra.mxu0 0.0
    %4735 = vmatpush.msra.mxu0 0.0
    %4736 = vmatpush.msra.mxu0 %v4721
    %4737 = vmatpush.msra.mxu0 %v4712
    %4738 = vmatpush.msra.mxu0 %v4711
    %4739 = vmatmul.f32.gmra.mxu0 %v4718
    %v4740 = vpop.f32.mrf.mxu0
    %v4741 = vadd.f32 0.0, %v4740
    %4742 = vdwg.mxu0
    %v4743 = vadd.f32 %v4707, %v4741
    %s4744 = scalar_lea.vmem [#allocation2], 40
    %v4745 = vld [vmem:[%s4744] sm:$0x1]
    %v4746 = vld [vmem:[%s4744 + $0x40] sm:$0x1]
    %s4747 = scalar_lea.vmem %s3, 840
    %v4748 = vld [vmem:[%s4747] sm:$0xff]
    %v4749 = vld [vmem:[%s4747 + $0x8] sm:$0xff]
    %v4750 = vld [vmem:[%s4747 + $0x10] sm:$0xf]
    %v4753 = vrot.slane %v4746, 7
    %v4754 = vsel %vm3332, %v4753, %v4745
    %v4755 = vsel %vm2819, %v4754, 0
    %v4758 = vsel %vm301, %v4750, 0
    %4760 = vmatpush.msra.mxu0 0.0
    %4761 = vmatpush.msra.mxu0 0.0
    %4762 = vmatpush.msra.mxu0 0.0
    %4763 = vmatpush.msra.mxu0 0.0
    %4764 = vmatpush.msra.mxu0 0.0
    %4765 = vmatpush.msra.mxu0 0.0
    %4766 = vmatpush.msra.mxu0 0.0
    %4767 = vmatpush.msra.mxu0 0.0
    %4768 = vmatpush.msra.mxu0 0.0
    %4769 = vmatpush.msra.mxu0 0.0
    %4770 = vmatpush.msra.mxu0 0.0
    %4771 = vmatpush.msra.mxu0 0.0
    %4772 = vmatpush.msra.mxu0 0.0
    %4773 = vmatpush.msra.mxu0 %v4758
    %4774 = vmatpush.msra.mxu0 %v4749
    %4775 = vmatpush.msra.mxu0 %v4748
    %4776 = vmatmul.f32.gmra.mxu0 %v4755
    %v4777 = vpop.f32.mrf.mxu0
    %v4778 = vadd.f32 0.0, %v4777
    %4779 = vdwg.mxu0
    %v4780 = vadd.f32 %v4743, %v4778
    %v4781 = vld [vmem:[%s4744 + $0x1] sm:$0x1]
    %v4782 = vld [vmem:[%s4744 + $0x41] sm:$0x1]
    %s4783 = scalar_lea.vmem %s3, 864
    %v4784 = vld [vmem:[%s4783] sm:$0xff]
    %v4785 = vld [vmem:[%s4783 + $0x8] sm:$0xff]
    %v4786 = vld [vmem:[%s4783 + $0x10] sm:$0xf]
    %v4789 = vrot.slane %v4782, 7
    %v4790 = vsel %vm3332, %v4789, %v4781
    %v4791 = vsel %vm2819, %v4790, 0
    %v4794 = vsel %vm301, %v4786, 0
    %4796 = vmatpush.msra.mxu0 0.0
    %4797 = vmatpush.msra.mxu0 0.0
    %4798 = vmatpush.msra.mxu0 0.0
    %4799 = vmatpush.msra.mxu0 0.0
    %4800 = vmatpush.msra.mxu0 0.0
    %4801 = vmatpush.msra.mxu0 0.0
    %4802 = vmatpush.msra.mxu0 0.0
    %4803 = vmatpush.msra.mxu0 0.0
    %4804 = vmatpush.msra.mxu0 0.0
    %4805 = vmatpush.msra.mxu0 0.0
    %4806 = vmatpush.msra.mxu0 0.0
    %4807 = vmatpush.msra.mxu0 0.0
    %4808 = vmatpush.msra.mxu0 0.0
    %4809 = vmatpush.msra.mxu0 %v4794
    %4810 = vmatpush.msra.mxu0 %v4785
    %4811 = vmatpush.msra.mxu0 %v4784
    %4812 = vmatmul.f32.gmra.mxu0 %v4791
    %v4813 = vpop.f32.mrf.mxu0
    %v4814 = vadd.f32 0.0, %v4813
    %4815 = vdwg.mxu0
    %v4816 = vadd.f32 %v4780, %v4814
    %v4817 = vld [vmem:[%s4744 + $0x2] sm:$0x1]
    %v4818 = vld [vmem:[%s4744 + $0x42] sm:$0x1]
    %s4819 = scalar_lea.vmem %s3, 888
    %v4820 = vld [vmem:[%s4819] sm:$0xff]
    %v4821 = vld [vmem:[%s4819 + $0x8] sm:$0xff]
    %v4822 = vld [vmem:[%s4819 + $0x10] sm:$0xf]
    %v4825 = vrot.slane %v4818, 7
    %v4826 = vsel %vm3332, %v4825, %v4817
    %v4827 = vsel %vm2819, %v4826, 0
    %v4830 = vsel %vm301, %v4822, 0
    %4832 = vmatpush.msra.mxu0 0.0
    %4833 = vmatpush.msra.mxu0 0.0
    %4834 = vmatpush.msra.mxu0 0.0
    %4835 = vmatpush.msra.mxu0 0.0
    %4836 = vmatpush.msra.mxu0 0.0
    %4837 = vmatpush.msra.mxu0 0.0
    %4838 = vmatpush.msra.mxu0 0.0
    %4839 = vmatpush.msra.mxu0 0.0
    %4840 = vmatpush.msra.mxu0 0.0
    %4841 = vmatpush.msra.mxu0 0.0
    %4842 = vmatpush.msra.mxu0 0.0
    %4843 = vmatpush.msra.mxu0 0.0
    %4844 = vmatpush.msra.mxu0 0.0
    %4845 = vmatpush.msra.mxu0 %v4830
    %4846 = vmatpush.msra.mxu0 %v4821
    %4847 = vmatpush.msra.mxu0 %v4820
    %4848 = vmatmul.f32.gmra.mxu0 %v4827
    %v4849 = vpop.f32.mrf.mxu0
    %v4850 = vadd.f32 0.0, %v4849
    %4851 = vdwg.mxu0
    %v4852 = vadd.f32 %v4816, %v4850
    %v4853 = vld [vmem:[%s4744 + $0x3] sm:$0x1]
    %v4854 = vld [vmem:[%s4744 + $0x43] sm:$0x1]
    %s4855 = scalar_lea.vmem %s3, 912
    %v4856 = vld [vmem:[%s4855] sm:$0xff]
    %v4857 = vld [vmem:[%s4855 + $0x8] sm:$0xff]
    %v4858 = vld [vmem:[%s4855 + $0x10] sm:$0xf]
    %v4861 = vrot.slane %v4854, 7
    %v4862 = vsel %vm3332, %v4861, %v4853
    %v4863 = vsel %vm2819, %v4862, 0
    %v4866 = vsel %vm301, %v4858, 0
    %4868 = vmatpush.msra.mxu0 0.0
    %4869 = vmatpush.msra.mxu0 0.0
    %4870 = vmatpush.msra.mxu0 0.0
    %4871 = vmatpush.msra.mxu0 0.0
    %4872 = vmatpush.msra.mxu0 0.0
    %4873 = vmatpush.msra.mxu0 0.0
    %4874 = vmatpush.msra.mxu0 0.0
    %4875 = vmatpush.msra.mxu0 0.0
    %4876 = vmatpush.msra.mxu0 0.0
    %4877 = vmatpush.msra.mxu0 0.0
    %4878 = vmatpush.msra.mxu0 0.0
    %4879 = vmatpush.msra.mxu0 0.0
    %4880 = vmatpush.msra.mxu0 0.0
    %4881 = vmatpush.msra.mxu0 %v4866
    %4882 = vmatpush.msra.mxu0 %v4857
    %4883 = vmatpush.msra.mxu0 %v4856
    %4884 = vmatmul.f32.gmra.mxu0 %v4863
    %v4885 = vpop.f32.mrf.mxu0
    %v4886 = vadd.f32 0.0, %v4885
    %4887 = vdwg.mxu0
    %v4888 = vadd.f32 %v4852, %v4886
    %v4889 = vld [vmem:[%s4744 + $0x4] sm:$0x1]
    %v4890 = vld [vmem:[%s4744 + $0x44] sm:$0x1]
    %s4891 = scalar_lea.vmem %s3, 936
    %v4892 = vld [vmem:[%s4891] sm:$0xff]
    %v4893 = vld [vmem:[%s4891 + $0x8] sm:$0xff]
    %v4894 = vld [vmem:[%s4891 + $0x10] sm:$0xf]
    %v4897 = vrot.slane %v4890, 7
    %v4898 = vsel %vm3332, %v4897, %v4889
    %v4899 = vsel %vm2819, %v4898, 0
    %v4902 = vsel %vm301, %v4894, 0
    %4904 = vmatpush.msra.mxu0 0.0
    %4905 = vmatpush.msra.mxu0 0.0
    %4906 = vmatpush.msra.mxu0 0.0
    %4907 = vmatpush.msra.mxu0 0.0
    %4908 = vmatpush.msra.mxu0 0.0
    %4909 = vmatpush.msra.mxu0 0.0
    %4910 = vmatpush.msra.mxu0 0.0
    %4911 = vmatpush.msra.mxu0 0.0
    %4912 = vmatpush.msra.mxu0 0.0
    %4913 = vmatpush.msra.mxu0 0.0
    %4914 = vmatpush.msra.mxu0 0.0
    %4915 = vmatpush.msra.mxu0 0.0
    %4916 = vmatpush.msra.mxu0 0.0
    %4917 = vmatpush.msra.mxu0 %v4902
    %4918 = vmatpush.msra.mxu0 %v4893
    %4919 = vmatpush.msra.mxu0 %v4892
    %4920 = vmatmul.f32.gmra.mxu0 %v4899
    %v4921 = vpop.f32.mrf.mxu0
    %v4922 = vadd.f32 0.0, %v4921
    %4923 = vdwg.mxu0
    %v4924 = vadd.f32 %v4888, %v4922
    %v4925 = vld [vmem:[%s4744 + $0x5] sm:$0x1]
    %v4926 = vld [vmem:[%s4744 + $0x45] sm:$0x1]
    %s4927 = scalar_lea.vmem %s3, 960
    %v4928 = vld [vmem:[%s4927] sm:$0xff]
    %v4929 = vld [vmem:[%s4927 + $0x8] sm:$0xff]
    %v4930 = vld [vmem:[%s4927 + $0x10] sm:$0xf]
    %v4933 = vrot.slane %v4926, 7
    %v4934 = vsel %vm3332, %v4933, %v4925
    %v4935 = vsel %vm2819, %v4934, 0
    %v4938 = vsel %vm301, %v4930, 0
    %4940 = vmatpush.msra.mxu0 0.0
    %4941 = vmatpush.msra.mxu0 0.0
    %4942 = vmatpush.msra.mxu0 0.0
    %4943 = vmatpush.msra.mxu0 0.0
    %4944 = vmatpush.msra.mxu0 0.0
    %4945 = vmatpush.msra.mxu0 0.0
    %4946 = vmatpush.msra.mxu0 0.0
    %4947 = vmatpush.msra.mxu0 0.0
    %4948 = vmatpush.msra.mxu0 0.0
    %4949 = vmatpush.msra.mxu0 0.0
    %4950 = vmatpush.msra.mxu0 0.0
    %4951 = vmatpush.msra.mxu0 0.0
    %4952 = vmatpush.msra.mxu0 0.0
    %4953 = vmatpush.msra.mxu0 %v4938
    %4954 = vmatpush.msra.mxu0 %v4929
    %4955 = vmatpush.msra.mxu0 %v4928
    %4956 = vmatmul.f32.gmra.mxu0 %v4935
    %v4957 = vpop.f32.mrf.mxu0
    %v4958 = vadd.f32 0.0, %v4957
    %4959 = vdwg.mxu0
    %v4960 = vadd.f32 %v4924, %v4958
    %v4961 = vld [vmem:[%s4744 + $0x6] sm:$0x1]
    %v4962 = vld [vmem:[%s4744 + $0x46] sm:$0x1]
    %s4963 = scalar_lea.vmem %s3, 984
    %v4964 = vld [vmem:[%s4963] sm:$0xff]
    %v4965 = vld [vmem:[%s4963 + $0x8] sm:$0xff]
    %v4966 = vld [vmem:[%s4963 + $0x10] sm:$0xf]
    %v4969 = vrot.slane %v4962, 7
    %v4970 = vsel %vm3332, %v4969, %v4961
    %v4971 = vsel %vm2819, %v4970, 0
    %v4974 = vsel %vm301, %v4966, 0
    %4976 = vmatpush.msra.mxu0 0.0
    %4977 = vmatpush.msra.mxu0 0.0
    %4978 = vmatpush.msra.mxu0 0.0
    %4979 = vmatpush.msra.mxu0 0.0
    %4980 = vmatpush.msra.mxu0 0.0
    %4981 = vmatpush.msra.mxu0 0.0
    %4982 = vmatpush.msra.mxu0 0.0
    %4983 = vmatpush.msra.mxu0 0.0
    %4984 = vmatpush.msra.mxu0 0.0
    %4985 = vmatpush.msra.mxu0 0.0
    %4986 = vmatpush.msra.mxu0 0.0
    %4987 = vmatpush.msra.mxu0 0.0
    %4988 = vmatpush.msra.mxu0 0.0
    %4989 = vmatpush.msra.mxu0 %v4974
    %4990 = vmatpush.msra.mxu0 %v4965
    %4991 = vmatpush.msra.mxu0 %v4964
    %4992 = vmatmul.f32.gmra.mxu0 %v4971
    %v4993 = vpop.f32.mrf.mxu0
    %v4994 = vadd.f32 0.0, %v4993
    %4995 = vdwg.mxu0
    %v4996 = vadd.f32 %v4960, %v4994
    %s4997 = scalar_lea.vmem [#allocation2], 48
    %v4998 = vld [vmem:[%s4997] sm:$0x1]
    %v4999 = vld [vmem:[%s4997 + $0x40] sm:$0x1]
    %s5000 = scalar_lea.vmem %s3, 1008
    %v5001 = vld [vmem:[%s5000] sm:$0xff]
    %v5002 = vld [vmem:[%s5000 + $0x8] sm:$0xff]
    %v5003 = vld [vmem:[%s5000 + $0x10] sm:$0xf]
    %v5006 = vrot.slane %v4999, 7
    %v5007 = vsel %vm3332, %v5006, %v4998
    %v5008 = vsel %vm2819, %v5007, 0
    %v5011 = vsel %vm301, %v5003, 0
    %5013 = vmatpush.msra.mxu0 0.0
    %5014 = vmatpush.msra.mxu0 0.0
    %5015 = vmatpush.msra.mxu0 0.0
    %5016 = vmatpush.msra.mxu0 0.0
    %5017 = vmatpush.msra.mxu0 0.0
    %5018 = vmatpush.msra.mxu0 0.0
    %5019 = vmatpush.msra.mxu0 0.0
    %5020 = vmatpush.msra.mxu0 0.0
    %5021 = vmatpush.msra.mxu0 0.0
    %5022 = vmatpush.msra.mxu0 0.0
    %5023 = vmatpush.msra.mxu0 0.0
    %5024 = vmatpush.msra.mxu0 0.0
    %5025 = vmatpush.msra.mxu0 0.0
    %5026 = vmatpush.msra.mxu0 %v5011
    %5027 = vmatpush.msra.mxu0 %v5002
    %5028 = vmatpush.msra.mxu0 %v5001
    %5029 = vmatmul.f32.gmra.mxu0 %v5008
    %v5030 = vpop.f32.mrf.mxu0
    %v5031 = vadd.f32 0.0, %v5030
    %5032 = vdwg.mxu0
    %v5033 = vadd.f32 %v4996, %v5031
    %v5034 = vld [vmem:[%s4997 + $0x1] sm:$0x1]
    %v5035 = vld [vmem:[%s4997 + $0x41] sm:$0x1]
    %s5036 = scalar_lea.vmem %s3, 1032
    %v5037 = vld [vmem:[%s5036] sm:$0xff]
    %v5038 = vld [vmem:[%s5036 + $0x8] sm:$0xff]
    %v5039 = vld [vmem:[%s5036 + $0x10] sm:$0xf]
    %v5042 = vrot.slane %v5035, 7
    %v5043 = vsel %vm3332, %v5042, %v5034
    %v5044 = vsel %vm2819, %v5043, 0
    %v5047 = vsel %vm301, %v5039, 0
    %5049 = vmatpush.msra.mxu0 0.0
    %5050 = vmatpush.msra.mxu0 0.0
    %5051 = vmatpush.msra.mxu0 0.0
    %5052 = vmatpush.msra.mxu0 0.0
    %5053 = vmatpush.msra.mxu0 0.0
    %5054 = vmatpush.msra.mxu0 0.0
    %5055 = vmatpush.msra.mxu0 0.0
    %5056 = vmatpush.msra.mxu0 0.0
    %5057 = vmatpush.msra.mxu0 0.0
    %5058 = vmatpush.msra.mxu0 0.0
    %5059 = vmatpush.msra.mxu0 0.0
    %5060 = vmatpush.msra.mxu0 0.0
    %5061 = vmatpush.msra.mxu0 0.0
    %5062 = vmatpush.msra.mxu0 %v5047
    %5063 = vmatpush.msra.mxu0 %v5038
    %5064 = vmatpush.msra.mxu0 %v5037
    %5065 = vmatmul.f32.gmra.mxu0 %v5044
    %v5066 = vpop.f32.mrf.mxu0
    %v5067 = vadd.f32 0.0, %v5066
    %5068 = vdwg.mxu0
    %v5069 = vadd.f32 %v5033, %v5067
    %v5070 = vld [vmem:[%s4997 + $0x2] sm:$0x1]
    %v5071 = vld [vmem:[%s4997 + $0x42] sm:$0x1]
    %s5072 = scalar_lea.vmem %s3, 1056
    %v5073 = vld [vmem:[%s5072] sm:$0xff]
    %v5074 = vld [vmem:[%s5072 + $0x8] sm:$0xff]
    %v5075 = vld [vmem:[%s5072 + $0x10] sm:$0xf]
    %v5078 = vrot.slane %v5071, 7
    %v5079 = vsel %vm3332, %v5078, %v5070
    %v5080 = vsel %vm2819, %v5079, 0
    %v5083 = vsel %vm301, %v5075, 0
    %5085 = vmatpush.msra.mxu0 0.0
    %5086 = vmatpush.msra.mxu0 0.0
    %5087 = vmatpush.msra.mxu0 0.0
    %5088 = vmatpush.msra.mxu0 0.0
    %5089 = vmatpush.msra.mxu0 0.0
    %5090 = vmatpush.msra.mxu0 0.0
    %5091 = vmatpush.msra.mxu0 0.0
    %5092 = vmatpush.msra.mxu0 0.0
    %5093 = vmatpush.msra.mxu0 0.0
    %5094 = vmatpush.msra.mxu0 0.0
    %5095 = vmatpush.msra.mxu0 0.0
    %5096 = vmatpush.msra.mxu0 0.0
    %5097 = vmatpush.msra.mxu0 0.0
    %5098 = vmatpush.msra.mxu0 %v5083
    %5099 = vmatpush.msra.mxu0 %v5074
    %5100 = vmatpush.msra.mxu0 %v5073
    %5101 = vmatmul.f32.gmra.mxu0 %v5080
    %v5102 = vpop.f32.mrf.mxu0
    %v5103 = vadd.f32 0.0, %v5102
    %5104 = vdwg.mxu0
    %v5105 = vadd.f32 %v5069, %v5103
    %v5106 = vld [vmem:[%s4997 + $0x3] sm:$0x1]
    %v5107 = vld [vmem:[%s4997 + $0x43] sm:$0x1]
    %s5108 = scalar_lea.vmem %s3, 1080
    %v5109 = vld [vmem:[%s5108] sm:$0xff]
    %v5110 = vld [vmem:[%s5108 + $0x8] sm:$0xff]
    %v5111 = vld [vmem:[%s5108 + $0x10] sm:$0xf]
    %v5114 = vrot.slane %v5107, 7
    %v5115 = vsel %vm3332, %v5114, %v5106
    %v5116 = vsel %vm2819, %v5115, 0
    %v5119 = vsel %vm301, %v5111, 0
    %5121 = vmatpush.msra.mxu0 0.0
    %5122 = vmatpush.msra.mxu0 0.0
    %5123 = vmatpush.msra.mxu0 0.0
    %5124 = vmatpush.msra.mxu0 0.0
    %5125 = vmatpush.msra.mxu0 0.0
    %5126 = vmatpush.msra.mxu0 0.0
    %5127 = vmatpush.msra.mxu0 0.0
    %5128 = vmatpush.msra.mxu0 0.0
    %5129 = vmatpush.msra.mxu0 0.0
    %5130 = vmatpush.msra.mxu0 0.0
    %5131 = vmatpush.msra.mxu0 0.0
    %5132 = vmatpush.msra.mxu0 0.0
    %5133 = vmatpush.msra.mxu0 0.0
    %5134 = vmatpush.msra.mxu0 %v5119
    %5135 = vmatpush.msra.mxu0 %v5110
    %5136 = vmatpush.msra.mxu0 %v5109
    %5137 = vmatmul.f32.gmra.mxu0 %v5116
    %v5138 = vpop.f32.mrf.mxu0
    %v5139 = vadd.f32 0.0, %v5138
    %5140 = vdwg.mxu0
    %v5141 = vadd.f32 %v5105, %v5139
    %v5142 = vld [vmem:[%s4997 + $0x4] sm:$0x1]
    %v5143 = vld [vmem:[%s4997 + $0x44] sm:$0x1]
    %s5144 = scalar_lea.vmem %s3, 1104
    %v5145 = vld [vmem:[%s5144] sm:$0xff]
    %v5146 = vld [vmem:[%s5144 + $0x8] sm:$0xff]
    %v5147 = vld [vmem:[%s5144 + $0x10] sm:$0xf]
    %v5150 = vrot.slane %v5143, 7
    %v5151 = vsel %vm3332, %v5150, %v5142
    %v5152 = vsel %vm2819, %v5151, 0
    %v5155 = vsel %vm301, %v5147, 0
    %5157 = vmatpush.msra.mxu0 0.0
    %5158 = vmatpush.msra.mxu0 0.0
    %5159 = vmatpush.msra.mxu0 0.0
    %5160 = vmatpush.msra.mxu0 0.0
    %5161 = vmatpush.msra.mxu0 0.0
    %5162 = vmatpush.msra.mxu0 0.0
    %5163 = vmatpush.msra.mxu0 0.0
    %5164 = vmatpush.msra.mxu0 0.0
    %5165 = vmatpush.msra.mxu0 0.0
    %5166 = vmatpush.msra.mxu0 0.0
    %5167 = vmatpush.msra.mxu0 0.0
    %5168 = vmatpush.msra.mxu0 0.0
    %5169 = vmatpush.msra.mxu0 0.0
    %5170 = vmatpush.msra.mxu0 %v5155
    %5171 = vmatpush.msra.mxu0 %v5146
    %5172 = vmatpush.msra.mxu0 %v5145
    %5173 = vmatmul.f32.gmra.mxu0 %v5152
    %v5174 = vpop.f32.mrf.mxu0
    %v5175 = vadd.f32 0.0, %v5174
    %5176 = vdwg.mxu0
    %v5177 = vadd.f32 %v5141, %v5175
    %v5178 = vld [vmem:[%s4997 + $0x5] sm:$0x1]
    %v5179 = vld [vmem:[%s4997 + $0x45] sm:$0x1]
    %s5180 = scalar_lea.vmem %s3, 1128
    %v5181 = vld [vmem:[%s5180] sm:$0xff]
    %v5182 = vld [vmem:[%s5180 + $0x8] sm:$0xff]
    %v5183 = vld [vmem:[%s5180 + $0x10] sm:$0xf]
    %v5186 = vrot.slane %v5179, 7
    %v5187 = vsel %vm3332, %v5186, %v5178
    %v5188 = vsel %vm2819, %v5187, 0
    %v5191 = vsel %vm301, %v5183, 0
    %5193 = vmatpush.msra.mxu0 0.0
    %5194 = vmatpush.msra.mxu0 0.0
    %5195 = vmatpush.msra.mxu0 0.0
    %5196 = vmatpush.msra.mxu0 0.0
    %5197 = vmatpush.msra.mxu0 0.0
    %5198 = vmatpush.msra.mxu0 0.0
    %5199 = vmatpush.msra.mxu0 0.0
    %5200 = vmatpush.msra.mxu0 0.0
    %5201 = vmatpush.msra.mxu0 0.0
    %5202 = vmatpush.msra.mxu0 0.0
    %5203 = vmatpush.msra.mxu0 0.0
    %5204 = vmatpush.msra.mxu0 0.0
    %5205 = vmatpush.msra.mxu0 0.0
    %5206 = vmatpush.msra.mxu0 %v5191
    %5207 = vmatpush.msra.mxu0 %v5182
    %5208 = vmatpush.msra.mxu0 %v5181
    %5209 = vmatmul.f32.gmra.mxu0 %v5188
    %v5210 = vpop.f32.mrf.mxu0
    %v5211 = vadd.f32 0.0, %v5210
    %5212 = vdwg.mxu0
    %v5213 = vadd.f32 %v5177, %v5211
    %v5214 = vld [vmem:[%s4997 + $0x6] sm:$0x1]
    %v5215 = vld [vmem:[%s4997 + $0x46] sm:$0x1]
    %s5216 = scalar_lea.vmem %s3, 1152
    %v5217 = vld [vmem:[%s5216] sm:$0xff]
    %v5218 = vld [vmem:[%s5216 + $0x8] sm:$0xff]
    %v5219 = vld [vmem:[%s5216 + $0x10] sm:$0xf]
    %v5222 = vrot.slane %v5215, 7
    %v5223 = vsel %vm3332, %v5222, %v5214
    %v5224 = vsel %vm2819, %v5223, 0
    %v5227 = vsel %vm301, %v5219, 0
    %5229 = vmatpush.msra.mxu0 0.0
    %5230 = vmatpush.msra.mxu0 0.0
    %5231 = vmatpush.msra.mxu0 0.0
    %5232 = vmatpush.msra.mxu0 0.0
    %5233 = vmatpush.msra.mxu0 0.0
    %5234 = vmatpush.msra.mxu0 0.0
    %5235 = vmatpush.msra.mxu0 0.0
    %5236 = vmatpush.msra.mxu0 0.0
    %5237 = vmatpush.msra.mxu0 0.0
    %5238 = vmatpush.msra.mxu0 0.0
    %5239 = vmatpush.msra.mxu0 0.0
    %5240 = vmatpush.msra.mxu0 0.0
    %5241 = vmatpush.msra.mxu0 0.0
    %5242 = vmatpush.msra.mxu0 %v5227
    %5243 = vmatpush.msra.mxu0 %v5218
    %5244 = vmatpush.msra.mxu0 %v5217
    %5245 = vmatmul.f32.gmra.mxu0 %v5224
    %v5246 = vpop.f32.mrf.mxu0
    %v5247 = vadd.f32 0.0, %v5246
    %5248 = vdwg.mxu0
    %v5249 = vadd.f32 %v5213, %v5247
    %v5250 = vld [vmem:[%s4] sm:$0x1]
    %v5252 = vperm.slane %v5250, 0
    %v5254 = vadd.f32 %v5249, %v5252
    %v5255 = vmax.f32 %v5254, 0.0
    %v5256 = vld [vmem:[%s5] sm:$0xff]
    %v5257 = vld [vmem:[%s5 + $0x8] sm:$0xff]
    %v5258 = vld [vmem:[%s5 + $0x10] sm:$0xff]
    %v5259 = vld [vmem:[%s5 + $0x18] sm:$0xff]
    %v5260 = vld [vmem:[%s5 + $0x20] sm:$0xff]
    %v5261 = vld [vmem:[%s5 + $0x28] sm:$0xff]
    %v5262 = vld [vmem:[%s5 + $0x30] sm:$0xff]
    %v5263 = vld [vmem:[%s5 + $0x38] sm:$0xff]
    %v5264 = vld [vmem:[%s5 + $0x40] sm:$0xff]
    %v5265 = vld [vmem:[%s5 + $0x48] sm:$0xff]
    %v5266 = vld [vmem:[%s5 + $0x50] sm:$0xff]
    %v5267 = vld [vmem:[%s5 + $0x58] sm:$0xff]
    %v5268 = vld [vmem:[%s5 + $0x60] sm:$0xf]
    %v5269 = vld [vmem:[%s6] sm:$0x1]
    %v5271 = vperm.slane %v5269, 0
    %v5274 = vsel %vm108, %v5255, 0
    %v5277 = vsel %vm301, %v5268, 0
    %5279 = vmatpush.msra.mxu0 0.0
    %5280 = vmatpush.msra.mxu0 0.0
    %5281 = vmatpush.msra.mxu0 0.0
    %5282 = vmatpush.msra.mxu0 %v5277
    %5283 = vmatpush.msra.mxu0 %v5267
    %5284 = vmatpush.msra.mxu0 %v5266
    %5285 = vmatpush.msra.mxu0 %v5265
    %5286 = vmatpush.msra.mxu0 %v5264
    %5287 = vmatpush.msra.mxu0 %v5263
    %5288 = vmatpush.msra.mxu0 %v5262
    %5289 = vmatpush.msra.mxu0 %v5261
    %5290 = vmatpush.msra.mxu0 %v5260
    %5291 = vmatpush.msra.mxu0 %v5259
    %5292 = vmatpush.msra.mxu0 %v5258
    %5293 = vmatpush.msra.mxu0 %v5257
    %5294 = vmatpush.msra.mxu0 %v5256
    %5295 = vmatmul.f32.gmra.mxu0 %v5274
    %v5296 = vpop.f32.mrf.mxu0
    %v5297 = vadd.f32 %v5271, %v5296
    %5298 = vdwg.mxu0
    %vm5299 = vcmask 74752
    %v5300 = vsel %vm5299, %v5297, -inf
    %5301 = vmax.xlane.f32.xlu0 %v5300
    %v5302 = vpop.xlane.xlu0 %5301
    %v5303 = vsub.f32 %v5297, %v5302
    %v5304 = vmul.f32 %v5303, 1.442695
    %v5305 = vpow.pop %v5304
    %v5306 = vsel %vm5299, %v5305, 0.0
    %5307 = vadd.xlane.f32.xlu0 %v5306
    %v5308 = vpop.xlane.xlu0 %5307
    %v5309 = vlog2.pop %v5308
    %v5310 = vmul.f32 %v5309, 0.6931472
    %v5311 = vsub.f32 %v5303, %v5310
    %5312 = vst.msk [vmem:[#allocation3] sm:$0x3] %vm5299, %v5311
    // Predicated region
    $region30: #{model_one_forward.1} parent=1 // pred_check
      _
    $region31: #{model_one_forward.1} parent=1 // pred_check_branch
      %5314 = sbr.rel (0) target = $region33
    $region32: #{model_one_forward.1} parent=1 // pred_region
      %5316 = vsyncadd [#allocation4], 0
      %s5318 = sshll.u32 [#allocation3], 4
      %s5319 = int_to_ptr.vmem [resolvable:$true] %s5318
      %s5320 = sshll.u32 %s7, 4
      %s5321 = int_to_ptr.hbm [resolvable:$true] %s5320
      %5323 = dma.vmem_to_hbm [thread:$0]  %s5319, 32, %s5321, [#allocation4]
    $region33: #{model_one_forward.1} parent=1 // pred_fallthru
      _
    // Predicated region
    $region34: #{model_one_forward.1} parent=1 // pred_check
      _
    $region35: #{model_one_forward.1} parent=1 // pred_check_branch
      %5325 = sbr.rel (0) target = $region37
    $region36: #{model_one_forward.1} parent=1 // pred_region
      %5327 = dma.done [#allocation4], 32
    $region37: #{model_one_forward.1} parent=1 // pred_fallthru
      _
    %5328 = vsyncpa [#allocation4], 1

</llo_original>
